<compile_context>
chip_gen: v5e
topology: v5e:2x2
jax: 0.10.0
libtpu: 0.0.40
codegen_flags: <defaults>
</compile_context>

<pallas_src>
import random

import jax
import jax.numpy as jnp
from jax.experimental import pallas as pl
from jax.experimental.pallas import tpu as pltpu

HP = 128          # lane-slab width (padded gate / feature / vocab width)
BP = 8            # padded batch (sublane-aligned)
NEG_BIG = -1e30   # padded-vocab bias so argmax never picks a padded column


# ----------------------------------------------------------------------------
# Single fused kernel: encoder GRU over src, then the autoregressive decoder.
# ----------------------------------------------------------------------------
def seq2seq_kernel(tf_ref,                                   # SMEM int32 [T-1] teacher-force flags
                   emb_src_ref, emb0_ref, emb_tch_ref,       # embedded src / trg[0] / trg[1:]
                   w_enc_ref, b_enc_ref,                     # fused encoder GRU weights
                   w_gru_ref, b_gru_ref,                     # fused decoder GRU weights
                   w_fc_ref, b_fc_ref,                       # fused fc_out weights
                   etab_ref,                                 # padded decoder embedding table
                   out_ref):                                 # [T, Bp, HP] logits (lane-dense)
    S = emb_src_ref.shape[0]
    T, Bp, VP = out_ref.shape                                # VP == HP == 128

    w_enc = w_enc_ref[...]
    b_enc = b_enc_ref[...]
    w_gru = w_gru_ref[...]
    b_gru = b_gru_ref[...]
    w_fc = w_fc_ref[...]
    b_fc = b_fc_ref[...]
    etab = etab_ref[...]

    def gru_step(xcat, h, w, b):
        # One fused matmul produces the four gate slabs [r | z | gi_n | gh_n].
        g = jnp.dot(xcat, w, preferred_element_type=jnp.float32) + b
        rz = jax.nn.sigmoid(g[:, :2 * HP])          # one EUP pass over adjacent r|z slabs
        r, z = rz[:, :HP], rz[:, HP:]
        n = jnp.tanh(g[:, 2 * HP:3 * HP] + r * g[:, 3 * HP:])
        return (1.0 - z) * n + z * h

    # ---------------- Encoder: context = final hidden state ----------------
    h = jnp.zeros((Bp, HP), jnp.float32)
    for s in range(S):                              # fully unrolled, no grid steps
        x = emb_src_ref[s]                          # [Bp, HP]
        h = gru_step(jnp.concatenate([x, h], axis=1), h, w_enc, b_enc)
    ctx = h                                         # decoder initial hidden == context

    # ---------------- Decoder: greedy / teacher-forced loop ----------------
    out_ref[0] = jnp.zeros((Bp, VP), jnp.float32)   # outputs[0] is all-zeros (as in PyTorch)
    lane = jax.lax.broadcasted_iota(jnp.int32, (Bp, VP), 1).astype(jnp.float32)

    emb = emb0_ref[...]                             # [Bp, HP] embedding of trg[0]
    for t in range(T - 1):
        xcat = jnp.concatenate([emb, ctx, h], axis=1)          # [Bp, 3*HP]
        h = gru_step(xcat, h, w_gru, b_gru)
        fcat = jnp.concatenate([emb, ctx, h], axis=1)          # [Bp, 3*HP]
        pred = jnp.dot(fcat, w_fc, preferred_element_type=jnp.float32) + b_fc
        out_ref[t + 1] = pred                                   # lane-dense store

        # Greedy argmax (first-max tie break) -> one-hot -> embedding lookup on the MXU.
        m = jnp.max(pred, axis=-1, keepdims=True)
        idx = jnp.min(jnp.where(pred >= m, lane, float(VP)), axis=-1, keepdims=True)
        one_hot = (lane == idx).astype(jnp.float32)             # [Bp, VP]
        emb_top1 = jnp.dot(one_hot, etab, preferred_element_type=jnp.float32)  # [Bp, HP]

        tf = tf_ref[t].astype(jnp.float32)                      # exact 0/1 scalar from SMEM
        emb = tf * emb_tch_ref[t] + (1.0 - tf) * emb_top1


def _vmem():
    return pl.BlockSpec(memory_space=pltpu.MemorySpace.VMEM)


@jax.jit
def seq2seq_forward(src, trg, kp, tf_flags):
    """src, trg: [len, batch] int32; kp: pre-packed kernel params; tf_flags: [trg_len-1] int32."""
    S, B = src.shape
    T = trg.shape[0]
    V = kp["dec_emb_p"].shape[0]
    Bp = max(BP, ((B + 7) // 8) * 8)

    emb_src = jnp.take(kp["enc_emb_p"], src, axis=0)            # [S, B, HP]
    emb_src = jnp.pad(emb_src, ((0, 0), (0, Bp - B), (0, 0)))
    emb_trg = jnp.take(kp["dec_emb_p"], trg, axis=0)            # [T, B, HP]
    emb_trg = jnp.pad(emb_trg, ((0, 0), (0, Bp - B), (0, 0)))

    out = pl.pallas_call(
        seq2seq_kernel,
        out_shape=jax.ShapeDtypeStruct((T, Bp, HP), jnp.float32),
        in_specs=[pl.BlockSpec(memory_space=pltpu.MemorySpace.SMEM)]   # tf flags
                 + [_vmem() for _ in range(10)],
        out_specs=_vmem(),
    )(tf_flags.astype(jnp.int32), emb_src, emb_trg[0], emb_trg[1:],
      kp["w_enc"], kp["b_enc"], kp["w_gru"], kp["b_gru"],
      kp["w_fc"], kp["b_fc"], kp["etab"])

    return out[:, :B, :V]


# ----------------------------------------------------------------------------
# Parameter init (PyTorch-shaped) and one-time repacking into kernel layout.
# ----------------------------------------------------------------------------
def init_params(key, input_dim, output_dim, enc_emb, dec_emb, hid):
    ks = jax.random.split(key, 12)
    u = lambda k, shape: jax.random.uniform(k, shape, jnp.float32, -0.1, 0.1)
    return {
        "enc_embedding": u(ks[0], (input_dim, enc_emb)),
        "enc_w_ih": u(ks[1], (3 * hid, enc_emb)),          # PyTorch gate order: r, z, n
        "enc_w_hh": u(ks[2], (3 * hid, hid)),
        "enc_b_ih": u(ks[3], (3 * hid,)),
        "enc_b_hh": u(ks[4], (3 * hid,)),
        "dec_embedding": u(ks[5], (output_dim, dec_emb)),
        "dec_w_ih": u(ks[6], (3 * hid, dec_emb + hid)),    # input is [emb ; ctx]
        "dec_w_hh": u(ks[7], (3 * hid, hid)),
        "dec_b_ih": u(ks[8], (3 * hid,)),
        "dec_b_hh": u(ks[9], (3 * hid,)),
        "fc_w": u(ks[10], (output_dim, dec_emb + 2 * hid)),  # input is [emb ; hid ; ctx]
        "fc_b": u(ks[11], (output_dim,)),
    }


def pack_kernel_params(p):
    """Repack PyTorch-layout weights into 128-lane gate slabs (done once, outside forward)."""
    H = p["enc_w_hh"].shape[1]
    E = p["enc_embedding"].shape[1]
    Ed = p["dec_embedding"].shape[1]
    V = p["fc_w"].shape[0]
    assert H <= HP and E <= HP and Ed <= HP and V <= HP

    def gru_pack(in_blocks, w_hh, b_ih, b_hh):
        # Columns: [ r | z | gi_n | gh_n ] slabs of width HP each.
        # Rows: one HP-wide slab per input block, then one slab for the hidden state.
        n_in = len(in_blocks)
        W = jnp.zeros(((n_in + 1) * HP, 4 * HP), jnp.float32)
        for k, wb in enumerate(in_blocks):                 # wb: [3H, d]
            d = wb.shape[1]
            r0 = k * HP
            W = W.at[r0:r0 + d, 0 * HP:0 * HP + H].set(wb[0:H].T)
            W = W.at[r0:r0 + d, 1 * HP:1 * HP + H].set(wb[H:2 * H].T)
            W = W.at[r0:r0 + d, 2 * HP:2 * HP + H].set(wb[2 * H:3 * H].T)
        rh = n_in * HP
        W = W.at[rh:rh + H, 0 * HP:0 * HP + H].set(w_hh[0:H].T)
        W = W.at[rh:rh + H, 1 * HP:1 * HP + H].set(w_hh[H:2 * H].T)
        W = W.at[rh:rh + H, 3 * HP:3 * HP + H].set(w_hh[2 * H:3 * H].T)
        b = jnp.zeros((1, 4 * HP), jnp.float32)
        b = b.at[0, 0 * HP:0 * HP + H].set(b_ih[0:H] + b_hh[0:H])
        b = b.at[0, 1 * HP:1 * HP + H].set(b_ih[H:2 * H] + b_hh[H:2 * H])
        b = b.at[0, 2 * HP:2 * HP + H].set(b_ih[2 * H:3 * H])
        b = b.at[0, 3 * HP:3 * HP + H].set(b_hh[2 * H:3 * H])
        return W, b

    # Encoder GRU: input slabs = [x(emb)], then h.
    w_enc, b_enc = gru_pack([p["enc_w_ih"]], p["enc_w_hh"], p["enc_b_ih"], p["enc_b_hh"])
    # Decoder GRU: input slabs = [emb, ctx], then h.
    w_gru, b_gru = gru_pack([p["dec_w_ih"][:, :Ed], p["dec_w_ih"][:, Ed:]],
                            p["dec_w_hh"], p["dec_b_ih"], p["dec_b_hh"])

    # fc_out over in-kernel concat [emb | ctx | h_new]; PyTorch fc input order is [emb|hid|ctx].
    fc_w = p["fc_w"]
    w_fc = jnp.zeros((3 * HP, HP), jnp.float32)
    w_fc = w_fc.at[0:Ed, :V].set(fc_w[:, :Ed].T)                          # emb slab
    w_fc = w_fc.at[HP:HP + H, :V].set(fc_w[:, Ed + H:Ed + 2 * H].T)       # ctx slab
    w_fc = w_fc.at[2 * HP:2 * HP + H, :V].set(fc_w[:, Ed:Ed + H].T)       # h slab
    b_fc = jnp.full((1, HP), NEG_BIG, jnp.float32)
    b_fc = b_fc.at[0, :V].set(p["fc_b"])

    etab = jnp.zeros((HP, HP), jnp.float32).at[:V, :Ed].set(p["dec_embedding"])

    return {
        "w_enc": w_enc, "b_enc": b_enc,
        "w_gru": w_gru, "b_gru": b_gru,
        "w_fc": w_fc, "b_fc": b_fc,
        "etab": etab,
        "enc_emb_p": jnp.pad(p["enc_embedding"], ((0, 0), (0, HP - E))),
        "dec_emb_p": jnp.pad(p["dec_embedding"], ((0, 0), (0, HP - Ed))),
    }


# ----------------------------------------------------------------------------
# Pure-JAX reference (mirrors the PyTorch module)
# ----------------------------------------------------------------------------
def _gru_cell_ref(x, h, w_ih, w_hh, b_ih, b_hh, H):
    gi = x @ w_ih.T + b_ih
    gh = h @ w_hh.T + b_hh
    r = jax.nn.sigmoid(gi[:, :H] + gh[:, :H])
    z = jax.nn.sigmoid(gi[:, H:2 * H] + gh[:, H:2 * H])
    n = jnp.tanh(gi[:, 2 * H:] + r * gh[:, 2 * H:])
    return (1.0 - z) * n + z * h


def seq2seq_reference(src, trg, p, tf_decisions):
    H = p["enc_w_hh"].shape[1]
    V = p["fc_w"].shape[0]
    trg_len, batch = trg.shape

    emb_src = jnp.take(p["enc_embedding"], src, axis=0)
    h = jnp.zeros((batch, H), jnp.float32)
    for s in range(src.shape[0]):
        h = _gru_cell_ref(emb_src[s], h, p["enc_w_ih"], p["enc_w_hh"],
                          p["enc_b_ih"], p["enc_b_hh"], H)
    context = h
    hidden = context
    outputs = [jnp.zeros((batch, V), jnp.float32)]
    inp = trg[0]
    for t in range(1, trg_len):
        emb = jnp.take(p["dec_embedding"], inp, axis=0)
        x = jnp.concatenate([emb, context], axis=1)
        hidden = _gru_cell_ref(x, hidden, p["dec_w_ih"], p["dec_w_hh"],
                               p["dec_b_ih"], p["dec_b_hh"], H)
        pred = jnp.concatenate([emb, hidden, context], axis=1) @ p["fc_w"].T + p["fc_b"]
        outputs.append(pred)
        top1 = jnp.argmax(pred, axis=1).astype(trg.dtype)
        inp = trg[t] if tf_decisions[t - 1] else top1
    return jnp.stack(outputs, axis=0)


# ----------------------------------------------------------------------------
if __name__ == "__main__":
    INPUT_DIM, OUTPUT_DIM = 29, 23          # src / trg vocab sizes
    ENC_EMB = DEC_EMB = 16
    HID = 32
    SRC_LEN, TRG_LEN, BATCH = 7, 6, 4
    TEACHER_FORCING_RATIO = 0.5

    key = jax.random.PRNGKey(0)
    kp_key, ksrc, ktrg = jax.random.split(key, 3)
    params = init_params(kp_key, INPUT_DIM, OUTPUT_DIM, ENC_EMB, DEC_EMB, HID)
    src = jax.random.randint(ksrc, (SRC_LEN, BATCH), 0, INPUT_DIM, dtype=jnp.int32)
    trg = jax.random.randint(ktrg, (TRG_LEN, BATCH), 0, OUTPUT_DIM, dtype=jnp.int32)

    # Deterministic replication of `random.random() < teacher_forcing_ratio` (host-side).
    random.seed(0)
    tf_decisions = [random.random() < TEACHER_FORCING_RATIO for _ in range(TRG_LEN - 1)]
    tf_flags = jnp.asarray(tf_decisions, dtype=jnp.int32)      # traced arg -> no retrace

    kparams = pack_kernel_params(params)                       # repacked ONCE, outside forward

    outputs = seq2seq_forward(src, trg, kparams, tf_flags)
    outputs = jax.block_until_ready(outputs)

    ref = seq2seq_reference(src, trg, params, tf_decisions)
    assert outputs.shape == (TRG_LEN, BATCH, OUTPUT_DIM), outputs.shape
    max_err = float(jnp.max(jnp.abs(outputs - ref)))
    assert max_err < 1e-4, f"mismatch vs reference: {max_err}"
    print("KERNEL_OK")
</pallas_src>

<mosaic_0001>
module attributes {stable_mosaic.version = 11 : i64} {
  func.func @seq2seq_kernel(%arg0: memref<5xi32, #tpu.memory_space<smem>>, %arg1: memref<7x8x128xf32, #tpu.memory_space<vmem>>, %arg2: memref<8x128xf32, #tpu.memory_space<vmem>>, %arg3: memref<5x8x128xf32, #tpu.memory_space<vmem>>, %arg4: memref<256x512xf32, #tpu.memory_space<vmem>>, %arg5: memref<1x512xf32, #tpu.memory_space<vmem>>, %arg6: memref<384x512xf32, #tpu.memory_space<vmem>>, %arg7: memref<1x512xf32, #tpu.memory_space<vmem>>, %arg8: memref<384x128xf32, #tpu.memory_space<vmem>>, %arg9: memref<1x128xf32, #tpu.memory_space<vmem>>, %arg10: memref<128x128xf32, #tpu.memory_space<vmem>>, %arg11: memref<6x8x128xf32, #tpu.memory_space<vmem>>) attributes {dimension_semantics = [], scalar_prefetch = 0 : i64, scratch_operands = 0 : i64, tpu.core_type = #tpu.core_type<tc>} {
    %c0 = arith.constant 0 : index
    %c0_0 = arith.constant 0 : index
    %0 = vector.load %arg4[%c0, %c0_0] : memref<256x512xf32, #tpu.memory_space<vmem>>, vector<256x512xf32>
    %c0_1 = arith.constant 0 : index
    %c0_2 = arith.constant 0 : index
    %1 = vector.load %arg5[%c0_1, %c0_2] : memref<1x512xf32, #tpu.memory_space<vmem>>, vector<1x512xf32>
    %c0_3 = arith.constant 0 : index
    %c0_4 = arith.constant 0 : index
    %2 = vector.load %arg6[%c0_3, %c0_4] : memref<384x512xf32, #tpu.memory_space<vmem>>, vector<384x512xf32>
    %c0_5 = arith.constant 0 : index
    %c0_6 = arith.constant 0 : index
    %3 = vector.load %arg7[%c0_5, %c0_6] : memref<1x512xf32, #tpu.memory_space<vmem>>, vector<1x512xf32>
    %c0_7 = arith.constant 0 : index
    %c0_8 = arith.constant 0 : index
    %4 = vector.load %arg8[%c0_7, %c0_8] : memref<384x128xf32, #tpu.memory_space<vmem>>, vector<384x128xf32>
    %c0_9 = arith.constant 0 : index
    %c0_10 = arith.constant 0 : index
    %5 = vector.load %arg9[%c0_9, %c0_10] : memref<1x128xf32, #tpu.memory_space<vmem>>, vector<1x128xf32>
    %c0_11 = arith.constant 0 : index
    %c0_12 = arith.constant 0 : index
    %6 = vector.load %arg10[%c0_11, %c0_12] : memref<128x128xf32, #tpu.memory_space<vmem>>, vector<128x128xf32>
    %cst = arith.constant 0.000000e+00 : f32
    %7 = vector.broadcast %cst : f32 to vector<8x128xf32>
    %c0_13 = arith.constant 0 : index
    %c0_14 = arith.constant 0 : index
    %c0_15 = arith.constant 0 : index
    %8 = vector.load %arg1[%c0_13, %c0_14, %c0_15] : memref<7x8x128xf32, #tpu.memory_space<vmem>>, vector<1x8x128xf32>
    %9 = vector.shape_cast %8 : vector<1x8x128xf32> to vector<8x128xf32>
    %10 = tpu.concatenate %9, %7 in 1 : vector<8x128xf32>, vector<8x128xf32> -> vector<8x256xf32>
    %cst_16 = arith.constant dense<0.000000e+00> : vector<8x512xf32>
    %11 = tpu.matmul %10, %0, %cst_16 {dimension_numbers = #tpu.dot_dimension_numbers<[1], [0], [0], [1], [0, 0, 1, 1], [], []>} : vector<8x256xf32>, vector<256x512xf32>, vector<8x512xf32> -> vector<8x512xf32>
    %12 = vector.broadcast %1 : vector<1x512xf32> to vector<8x512xf32>
    %13 = arith.addf %11, %12 : vector<8x512xf32>
    %14 = vector.extract_strided_slice %13 {offsets = [0, 0], sizes = [8, 256], strides = [1, 1]} : vector<8x512xf32> to vector<8x256xf32>
    %15 = arith.negf %14 : vector<8x256xf32>
    %16 = math.exp %15 : vector<8x256xf32>
    %cst_17 = arith.constant 1.000000e+00 : f32
    %17 = vector.broadcast %cst_17 : f32 to vector<8x256xf32>
    %18 = arith.addf %17, %16 : vector<8x256xf32>
    %19 = arith.divf %17, %18 : vector<8x256xf32>
    %20 = vector.extract_strided_slice %19 {offsets = [0, 0], sizes = [8, 128], strides = [1, 1]} : vector<8x256xf32> to vector<8x128xf32>
    %21 = vector.extract_strided_slice %19 {offsets = [0, 128], sizes = [8, 128], strides = [1, 1]} : vector<8x256xf32> to vector<8x128xf32>
    %22 = vector.extract_strided_slice %13 {offsets = [0, 256], sizes = [8, 128], strides = [1, 1]} : vector<8x512xf32> to vector<8x128xf32>
    %23 = vector.extract_strided_slice %13 {offsets = [0, 384], sizes = [8, 128], strides = [1, 1]} : vector<8x512xf32> to vector<8x128xf32>
    %24 = arith.mulf %20, %23 : vector<8x128xf32>
    %25 = arith.addf %22, %24 : vector<8x128xf32>
    %26 = math.tanh %25 : vector<8x128xf32>
    %cst_18 = arith.constant 1.000000e+00 : f32
    %27 = vector.broadcast %cst_18 : f32 to vector<8x128xf32>
    %28 = arith.subf %27, %21 : vector<8x128xf32>
    %29 = arith.mulf %28, %26 : vector<8x128xf32>
    %30 = arith.mulf %21, %7 : vector<8x128xf32>
    %31 = arith.addf %29, %30 : vector<8x128xf32>
    %c1 = arith.constant 1 : index
    %c0_19 = arith.constant 0 : index
    %c0_20 = arith.constant 0 : index
    %32 = vector.load %arg1[%c1, %c0_19, %c0_20] : memref<7x8x128xf32, #tpu.memory_space<vmem>>, vector<1x8x128xf32>
    %33 = vector.shape_cast %32 : vector<1x8x128xf32> to vector<8x128xf32>
    %34 = tpu.concatenate %33, %31 in 1 : vector<8x128xf32>, vector<8x128xf32> -> vector<8x256xf32>
    %cst_21 = arith.constant dense<0.000000e+00> : vector<8x512xf32>
    %35 = tpu.matmul %34, %0, %cst_21 {dimension_numbers = #tpu.dot_dimension_numbers<[1], [0], [0], [1], [0, 0, 1, 1], [], []>} : vector<8x256xf32>, vector<256x512xf32>, vector<8x512xf32> -> vector<8x512xf32>
    %36 = vector.broadcast %1 : vector<1x512xf32> to vector<8x512xf32>
    %37 = arith.addf %35, %36 : vector<8x512xf32>
    %38 = vector.extract_strided_slice %37 {offsets = [0, 0], sizes = [8, 256], strides = [1, 1]} : vector<8x512xf32> to vector<8x256xf32>
    %39 = arith.negf %38 : vector<8x256xf32>
    %40 = math.exp %39 : vector<8x256xf32>
    %cst_22 = arith.constant 1.000000e+00 : f32
    %41 = vector.broadcast %cst_22 : f32 to vector<8x256xf32>
    %42 = arith.addf %41, %40 : vector<8x256xf32>
    %43 = arith.divf %41, %42 : vector<8x256xf32>
    %44 = vector.extract_strided_slice %43 {offsets = [0, 0], sizes = [8, 128], strides = [1, 1]} : vector<8x256xf32> to vector<8x128xf32>
    %45 = vector.extract_strided_slice %43 {offsets = [0, 128], sizes = [8, 128], strides = [1, 1]} : vector<8x256xf32> to vector<8x128xf32>
    %46 = vector.extract_strided_slice %37 {offsets = [0, 256], sizes = [8, 128], strides = [1, 1]} : vector<8x512xf32> to vector<8x128xf32>
    %47 = vector.extract_strided_slice %37 {offsets = [0, 384], sizes = [8, 128], strides = [1, 1]} : vector<8x512xf32> to vector<8x128xf32>
    %48 = arith.mulf %44, %47 : vector<8x128xf32>
    %49 = arith.addf %46, %48 : vector<8x128xf32>
    %50 = math.tanh %49 : vector<8x128xf32>
    %cst_23 = arith.constant 1.000000e+00 : f32
    %51 = vector.broadcast %cst_23 : f32 to vector<8x128xf32>
    %52 = arith.subf %51, %45 : vector<8x128xf32>
    %53 = arith.mulf %52, %50 : vector<8x128xf32>
    %54 = arith.mulf %45, %31 : vector<8x128xf32>
    %55 = arith.addf %53, %54 : vector<8x128xf32>
    %c2 = arith.constant 2 : index
    %c0_24 = arith.constant 0 : index
    %c0_25 = arith.constant 0 : index
    %56 = vector.load %arg1[%c2, %c0_24, %c0_25] : memref<7x8x128xf32, #tpu.memory_space<vmem>>, vector<1x8x128xf32>
    %57 = vector.shape_cast %56 : vector<1x8x128xf32> to vector<8x128xf32>
    %58 = tpu.concatenate %57, %55 in 1 : vector<8x128xf32>, vector<8x128xf32> -> vector<8x256xf32>
    %cst_26 = arith.constant dense<0.000000e+00> : vector<8x512xf32>
    %59 = tpu.matmul %58, %0, %cst_26 {dimension_numbers = #tpu.dot_dimension_numbers<[1], [0], [0], [1], [0, 0, 1, 1], [], []>} : vector<8x256xf32>, vector<256x512xf32>, vector<8x512xf32> -> vector<8x512xf32>
    %60 = vector.broadcast %1 : vector<1x512xf32> to vector<8x512xf32>
    %61 = arith.addf %59, %60 : vector<8x512xf32>
    %62 = vector.extract_strided_slice %61 {offsets = [0, 0], sizes = [8, 256], strides = [1, 1]} : vector<8x512xf32> to vector<8x256xf32>
    %63 = arith.negf %62 : vector<8x256xf32>
    %64 = math.exp %63 : vector<8x256xf32>
    %cst_27 = arith.constant 1.000000e+00 : f32
    %65 = vector.broadcast %cst_27 : f32 to vector<8x256xf32>
    %66 = arith.addf %65, %64 : vector<8x256xf32>
    %67 = arith.divf %65, %66 : vector<8x256xf32>
    %68 = vector.extract_strided_slice %67 {offsets = [0, 0], sizes = [8, 128], strides = [1, 1]} : vector<8x256xf32> to vector<8x128xf32>
    %69 = vector.extract_strided_slice %67 {offsets = [0, 128], sizes = [8, 128], strides = [1, 1]} : vector<8x256xf32> to vector<8x128xf32>
    %70 = vector.extract_strided_slice %61 {offsets = [0, 256], sizes = [8, 128], strides = [1, 1]} : vector<8x512xf32> to vector<8x128xf32>
    %71 = vector.extract_strided_slice %61 {offsets = [0, 384], sizes = [8, 128], strides = [1, 1]} : vector<8x512xf32> to vector<8x128xf32>
    %72 = arith.mulf %68, %71 : vector<8x128xf32>
    %73 = arith.addf %70, %72 : vector<8x128xf32>
    %74 = math.tanh %73 : vector<8x128xf32>
    %cst_28 = arith.constant 1.000000e+00 : f32
    %75 = vector.broadcast %cst_28 : f32 to vector<8x128xf32>
    %76 = arith.subf %75, %69 : vector<8x128xf32>
    %77 = arith.mulf %76, %74 : vector<8x128xf32>
    %78 = arith.mulf %69, %55 : vector<8x128xf32>
    %79 = arith.addf %77, %78 : vector<8x128xf32>
    %c3 = arith.constant 3 : index
    %c0_29 = arith.constant 0 : index
    %c0_30 = arith.constant 0 : index
    %80 = vector.load %arg1[%c3, %c0_29, %c0_30] : memref<7x8x128xf32, #tpu.memory_space<vmem>>, vector<1x8x128xf32>
    %81 = vector.shape_cast %80 : vector<1x8x128xf32> to vector<8x128xf32>
    %82 = tpu.concatenate %81, %79 in 1 : vector<8x128xf32>, vector<8x128xf32> -> vector<8x256xf32>
    %cst_31 = arith.constant dense<0.000000e+00> : vector<8x512xf32>
    %83 = tpu.matmul %82, %0, %cst_31 {dimension_numbers = #tpu.dot_dimension_numbers<[1], [0], [0], [1], [0, 0, 1, 1], [], []>} : vector<8x256xf32>, vector<256x512xf32>, vector<8x512xf32> -> vector<8x512xf32>
    %84 = vector.broadcast %1 : vector<1x512xf32> to vector<8x512xf32>
    %85 = arith.addf %83, %84 : vector<8x512xf32>
    %86 = vector.extract_strided_slice %85 {offsets = [0, 0], sizes = [8, 256], strides = [1, 1]} : vector<8x512xf32> to vector<8x256xf32>
    %87 = arith.negf %86 : vector<8x256xf32>
    %88 = math.exp %87 : vector<8x256xf32>
    %cst_32 = arith.constant 1.000000e+00 : f32
    %89 = vector.broadcast %cst_32 : f32 to vector<8x256xf32>
    %90 = arith.addf %89, %88 : vector<8x256xf32>
    %91 = arith.divf %89, %90 : vector<8x256xf32>
    %92 = vector.extract_strided_slice %91 {offsets = [0, 0], sizes = [8, 128], strides = [1, 1]} : vector<8x256xf32> to vector<8x128xf32>
    %93 = vector.extract_strided_slice %91 {offsets = [0, 128], sizes = [8, 128], strides = [1, 1]} : vector<8x256xf32> to vector<8x128xf32>
    %94 = vector.extract_strided_slice %85 {offsets = [0, 256], sizes = [8, 128], strides = [1, 1]} : vector<8x512xf32> to vector<8x128xf32>
    %95 = vector.extract_strided_slice %85 {offsets = [0, 384], sizes = [8, 128], strides = [1, 1]} : vector<8x512xf32> to vector<8x128xf32>
    %96 = arith.mulf %92, %95 : vector<8x128xf32>
    %97 = arith.addf %94, %96 : vector<8x128xf32>
    %98 = math.tanh %97 : vector<8x128xf32>
    %cst_33 = arith.constant 1.000000e+00 : f32
    %99 = vector.broadcast %cst_33 : f32 to vector<8x128xf32>
    %100 = arith.subf %99, %93 : vector<8x128xf32>
    %101 = arith.mulf %100, %98 : vector<8x128xf32>
    %102 = arith.mulf %93, %79 : vector<8x128xf32>
    %103 = arith.addf %101, %102 : vector<8x128xf32>
    %c4 = arith.constant 4 : index
    %c0_34 = arith.constant 0 : index
    %c0_35 = arith.constant 0 : index
    %104 = vector.load %arg1[%c4, %c0_34, %c0_35] : memref<7x8x128xf32, #tpu.memory_space<vmem>>, vector<1x8x128xf32>
    %105 = vector.shape_cast %104 : vector<1x8x128xf32> to vector<8x128xf32>
    %106 = tpu.concatenate %105, %103 in 1 : vector<8x128xf32>, vector<8x128xf32> -> vector<8x256xf32>
    %cst_36 = arith.constant dense<0.000000e+00> : vector<8x512xf32>
    %107 = tpu.matmul %106, %0, %cst_36 {dimension_numbers = #tpu.dot_dimension_numbers<[1], [0], [0], [1], [0, 0, 1, 1], [], []>} : vector<8x256xf32>, vector<256x512xf32>, vector<8x512xf32> -> vector<8x512xf32>
    %108 = vector.broadcast %1 : vector<1x512xf32> to vector<8x512xf32>
    %109 = arith.addf %107, %108 : vector<8x512xf32>
    %110 = vector.extract_strided_slice %109 {offsets = [0, 0], sizes = [8, 256], strides = [1, 1]} : vector<8x512xf32> to vector<8x256xf32>
    %111 = arith.negf %110 : vector<8x256xf32>
    %112 = math.exp %111 : vector<8x256xf32>
    %cst_37 = arith.constant 1.000000e+00 : f32
    %113 = vector.broadcast %cst_37 : f32 to vector<8x256xf32>
    %114 = arith.addf %113, %112 : vector<8x256xf32>
    %115 = arith.divf %113, %114 : vector<8x256xf32>
    %116 = vector.extract_strided_slice %115 {offsets = [0, 0], sizes = [8, 128], strides = [1, 1]} : vector<8x256xf32> to vector<8x128xf32>
    %117 = vector.extract_strided_slice %115 {offsets = [0, 128], sizes = [8, 128], strides = [1, 1]} : vector<8x256xf32> to vector<8x128xf32>
    %118 = vector.extract_strided_slice %109 {offsets = [0, 256], sizes = [8, 128], strides = [1, 1]} : vector<8x512xf32> to vector<8x128xf32>
    %119 = vector.extract_strided_slice %109 {offsets = [0, 384], sizes = [8, 128], strides = [1, 1]} : vector<8x512xf32> to vector<8x128xf32>
    %120 = arith.mulf %116, %119 : vector<8x128xf32>
    %121 = arith.addf %118, %120 : vector<8x128xf32>
    %122 = math.tanh %121 : vector<8x128xf32>
    %cst_38 = arith.constant 1.000000e+00 : f32
    %123 = vector.broadcast %cst_38 : f32 to vector<8x128xf32>
    %124 = arith.subf %123, %117 : vector<8x128xf32>
    %125 = arith.mulf %124, %122 : vector<8x128xf32>
    %126 = arith.mulf %117, %103 : vector<8x128xf32>
    %127 = arith.addf %125, %126 : vector<8x128xf32>
    %c5 = arith.constant 5 : index
    %c0_39 = arith.constant 0 : index
    %c0_40 = arith.constant 0 : index
    %128 = vector.load %arg1[%c5, %c0_39, %c0_40] : memref<7x8x128xf32, #tpu.memory_space<vmem>>, vector<1x8x128xf32>
    %129 = vector.shape_cast %128 : vector<1x8x128xf32> to vector<8x128xf32>
    %130 = tpu.concatenate %129, %127 in 1 : vector<8x128xf32>, vector<8x128xf32> -> vector<8x256xf32>
    %cst_41 = arith.constant dense<0.000000e+00> : vector<8x512xf32>
    %131 = tpu.matmul %130, %0, %cst_41 {dimension_numbers = #tpu.dot_dimension_numbers<[1], [0], [0], [1], [0, 0, 1, 1], [], []>} : vector<8x256xf32>, vector<256x512xf32>, vector<8x512xf32> -> vector<8x512xf32>
    %132 = vector.broadcast %1 : vector<1x512xf32> to vector<8x512xf32>
    %133 = arith.addf %131, %132 : vector<8x512xf32>
    %134 = vector.extract_strided_slice %133 {offsets = [0, 0], sizes = [8, 256], strides = [1, 1]} : vector<8x512xf32> to vector<8x256xf32>
    %135 = arith.negf %134 : vector<8x256xf32>
    %136 = math.exp %135 : vector<8x256xf32>
    %cst_42 = arith.constant 1.000000e+00 : f32
    %137 = vector.broadcast %cst_42 : f32 to vector<8x256xf32>
    %138 = arith.addf %137, %136 : vector<8x256xf32>
    %139 = arith.divf %137, %138 : vector<8x256xf32>
    %140 = vector.extract_strided_slice %139 {offsets = [0, 0], sizes = [8, 128], strides = [1, 1]} : vector<8x256xf32> to vector<8x128xf32>
    %141 = vector.extract_strided_slice %139 {offsets = [0, 128], sizes = [8, 128], strides = [1, 1]} : vector<8x256xf32> to vector<8x128xf32>
    %142 = vector.extract_strided_slice %133 {offsets = [0, 256], sizes = [8, 128], strides = [1, 1]} : vector<8x512xf32> to vector<8x128xf32>
    %143 = vector.extract_strided_slice %133 {offsets = [0, 384], sizes = [8, 128], strides = [1, 1]} : vector<8x512xf32> to vector<8x128xf32>
    %144 = arith.mulf %140, %143 : vector<8x128xf32>
    %145 = arith.addf %142, %144 : vector<8x128xf32>
    %146 = math.tanh %145 : vector<8x128xf32>
    %cst_43 = arith.constant 1.000000e+00 : f32
    %147 = vector.broadcast %cst_43 : f32 to vector<8x128xf32>
    %148 = arith.subf %147, %141 : vector<8x128xf32>
    %149 = arith.mulf %148, %146 : vector<8x128xf32>
    %150 = arith.mulf %141, %127 : vector<8x128xf32>
    %151 = arith.addf %149, %150 : vector<8x128xf32>
    %c6 = arith.constant 6 : index
    %c0_44 = arith.constant 0 : index
    %c0_45 = arith.constant 0 : index
    %152 = vector.load %arg1[%c6, %c0_44, %c0_45] : memref<7x8x128xf32, #tpu.memory_space<vmem>>, vector<1x8x128xf32>
    %153 = vector.shape_cast %152 : vector<1x8x128xf32> to vector<8x128xf32>
    %154 = tpu.concatenate %153, %151 in 1 : vector<8x128xf32>, vector<8x128xf32> -> vector<8x256xf32>
    %cst_46 = arith.constant dense<0.000000e+00> : vector<8x512xf32>
    %155 = tpu.matmul %154, %0, %cst_46 {dimension_numbers = #tpu.dot_dimension_numbers<[1], [0], [0], [1], [0, 0, 1, 1], [], []>} : vector<8x256xf32>, vector<256x512xf32>, vector<8x512xf32> -> vector<8x512xf32>
    %156 = vector.broadcast %1 : vector<1x512xf32> to vector<8x512xf32>
    %157 = arith.addf %155, %156 : vector<8x512xf32>
    %158 = vector.extract_strided_slice %157 {offsets = [0, 0], sizes = [8, 256], strides = [1, 1]} : vector<8x512xf32> to vector<8x256xf32>
    %159 = arith.negf %158 : vector<8x256xf32>
    %160 = math.exp %159 : vector<8x256xf32>
    %cst_47 = arith.constant 1.000000e+00 : f32
    %161 = vector.broadcast %cst_47 : f32 to vector<8x256xf32>
    %162 = arith.addf %161, %160 : vector<8x256xf32>
    %163 = arith.divf %161, %162 : vector<8x256xf32>
    %164 = vector.extract_strided_slice %163 {offsets = [0, 0], sizes = [8, 128], strides = [1, 1]} : vector<8x256xf32> to vector<8x128xf32>
    %165 = vector.extract_strided_slice %163 {offsets = [0, 128], sizes = [8, 128], strides = [1, 1]} : vector<8x256xf32> to vector<8x128xf32>
    %166 = vector.extract_strided_slice %157 {offsets = [0, 256], sizes = [8, 128], strides = [1, 1]} : vector<8x512xf32> to vector<8x128xf32>
    %167 = vector.extract_strided_slice %157 {offsets = [0, 384], sizes = [8, 128], strides = [1, 1]} : vector<8x512xf32> to vector<8x128xf32>
    %168 = arith.mulf %164, %167 : vector<8x128xf32>
    %169 = arith.addf %166, %168 : vector<8x128xf32>
    %170 = math.tanh %169 : vector<8x128xf32>
    %cst_48 = arith.constant 1.000000e+00 : f32
    %171 = vector.broadcast %cst_48 : f32 to vector<8x128xf32>
    %172 = arith.subf %171, %165 : vector<8x128xf32>
    %173 = arith.mulf %172, %170 : vector<8x128xf32>
    %174 = arith.mulf %165, %151 : vector<8x128xf32>
    %175 = arith.addf %173, %174 : vector<8x128xf32>
    %cst_49 = arith.constant 0.000000e+00 : f32
    %176 = vector.broadcast %cst_49 : f32 to vector<8x128xf32>
    %c0_50 = arith.constant 0 : index
    %c0_51 = arith.constant 0 : index
    %c0_52 = arith.constant 0 : index
    %177 = vector.load %arg11[%c0_50, %c0_51, %c0_52] : memref<6x8x128xf32, #tpu.memory_space<vmem>>, vector<1x8x128xf32>
    %178 = vector.shape_cast %177 : vector<1x8x128xf32> to vector<8x128xf32>
    %179 = vector.shape_cast %176 : vector<8x128xf32> to vector<1x8x128xf32>
    tpu.vector_store %arg11[%c0_50, %c0_51, %c0_52], %179 {strides = array<i32>} : memref<6x8x128xf32, #tpu.memory_space<vmem>>, vector<1x8x128xf32>,
    %180 = tpu.iota {dimensions = array<i32: 1>} : vector<8x128xi32>
    %181 = arith.sitofp %180 : vector<8x128xi32> to vector<8x128xf32>
    %c0_53 = arith.constant 0 : index
    %c0_54 = arith.constant 0 : index
    %182 = vector.load %arg2[%c0_53, %c0_54] : memref<8x128xf32, #tpu.memory_space<vmem>>, vector<8x128xf32>
    %183 = tpu.concatenate %182, %175, %175 in 1 : vector<8x128xf32>, vector<8x128xf32>, vector<8x128xf32> -> vector<8x384xf32>
    %cst_55 = arith.constant dense<0.000000e+00> : vector<8x512xf32>
    %184 = tpu.matmul %183, %2, %cst_55 {dimension_numbers = #tpu.dot_dimension_numbers<[1], [0], [0], [1], [0, 0, 1, 1], [], []>} : vector<8x384xf32>, vector<384x512xf32>, vector<8x512xf32> -> vector<8x512xf32>
    %185 = vector.broadcast %3 : vector<1x512xf32> to vector<8x512xf32>
    %186 = arith.addf %184, %185 : vector<8x512xf32>
    %187 = vector.extract_strided_slice %186 {offsets = [0, 0], sizes = [8, 256], strides = [1, 1]} : vector<8x512xf32> to vector<8x256xf32>
    %188 = arith.negf %187 : vector<8x256xf32>
    %189 = math.exp %188 : vector<8x256xf32>
    %cst_56 = arith.constant 1.000000e+00 : f32
    %190 = vector.broadcast %cst_56 : f32 to vector<8x256xf32>
    %191 = arith.addf %190, %189 : vector<8x256xf32>
    %192 = arith.divf %190, %191 : vector<8x256xf32>
    %193 = vector.extract_strided_slice %192 {offsets = [0, 0], sizes = [8, 128], strides = [1, 1]} : vector<8x256xf32> to vector<8x128xf32>
    %194 = vector.extract_strided_slice %192 {offsets = [0, 128], sizes = [8, 128], strides = [1, 1]} : vector<8x256xf32> to vector<8x128xf32>
    %195 = vector.extract_strided_slice %186 {offsets = [0, 256], sizes = [8, 128], strides = [1, 1]} : vector<8x512xf32> to vector<8x128xf32>
    %196 = vector.extract_strided_slice %186 {offsets = [0, 384], sizes = [8, 128], strides = [1, 1]} : vector<8x512xf32> to vector<8x128xf32>
    %197 = arith.mulf %193, %196 : vector<8x128xf32>
    %198 = arith.addf %195, %197 : vector<8x128xf32>
    %199 = math.tanh %198 : vector<8x128xf32>
    %cst_57 = arith.constant 1.000000e+00 : f32
    %200 = vector.broadcast %cst_57 : f32 to vector<8x128xf32>
    %201 = arith.subf %200, %194 : vector<8x128xf32>
    %202 = arith.mulf %201, %199 : vector<8x128xf32>
    %203 = arith.mulf %194, %175 : vector<8x128xf32>
    %204 = arith.addf %202, %203 : vector<8x128xf32>
    %205 = tpu.concatenate %182, %175, %204 in 1 : vector<8x128xf32>, vector<8x128xf32>, vector<8x128xf32> -> vector<8x384xf32>
    %cst_58 = arith.constant dense<0.000000e+00> : vector<8x128xf32>
    %206 = tpu.matmul %205, %4, %cst_58 {dimension_numbers = #tpu.dot_dimension_numbers<[1], [0], [0], [1], [0, 0, 1, 1], [], []>} : vector<8x384xf32>, vector<384x128xf32>, vector<8x128xf32> -> vector<8x128xf32>
    %207 = vector.broadcast %5 : vector<1x128xf32> to vector<8x128xf32>
    %208 = arith.addf %206, %207 : vector<8x128xf32>
    %c1_59 = arith.constant 1 : index
    %c0_60 = arith.constant 0 : index
    %c0_61 = arith.constant 0 : index
    %209 = vector.load %arg11[%c1_59, %c0_60, %c0_61] : memref<6x8x128xf32, #tpu.memory_space<vmem>>, vector<1x8x128xf32>
    %210 = vector.shape_cast %209 : vector<1x8x128xf32> to vector<8x128xf32>
    %211 = vector.shape_cast %208 : vector<8x128xf32> to vector<1x8x128xf32>
    tpu.vector_store %arg11[%c1_59, %c0_60, %c0_61], %211 {strides = array<i32>} : memref<6x8x128xf32, #tpu.memory_space<vmem>>, vector<1x8x128xf32>,
    %cst_62 = arith.constant dense<0xFF800000> : vector<8xf32>
    %212 = vector.multi_reduction <maximumf>, %208, %cst_62 [1] : vector<8x128xf32> to vector<8xf32>
    %213 = vector.shape_cast %212 : vector<8xf32> to vector<8x1xf32>
    %214 = vector.broadcast %213 : vector<8x1xf32> to vector<8x128xf32>
    %215 = arith.cmpf oge, %208, %214 : vector<8x128xf32>
    %cst_63 = arith.constant 1.280000e+02 : f32
    %216 = vector.broadcast %cst_63 : f32 to vector<8x128xf32>
    %217 = arith.select %215, %181, %216 : vector<8x128xi1>, vector<8x128xf32>
    %cst_64 = arith.constant dense<0x7F800000> : vector<8xf32>
    %218 = vector.multi_reduction <minimumf>, %217, %cst_64 [1] : vector<8x128xf32> to vector<8xf32>
    %219 = vector.shape_cast %218 : vector<8xf32> to vector<8x1xf32>
    %220 = vector.broadcast %219 : vector<8x1xf32> to vector<8x128xf32>
    %221 = arith.cmpf oeq, %181, %220 : vector<8x128xf32>
    %222 = arith.extui %221 : vector<8x128xi1> to vector<8x128xi32>
    %223 = arith.sitofp %222 : vector<8x128xi32> to vector<8x128xf32>
    %cst_65 = arith.constant dense<0.000000e+00> : vector<8x128xf32>
    %224 = tpu.matmul %223, %6, %cst_65 {dimension_numbers = #tpu.dot_dimension_numbers<[1], [0], [0], [1], [0, 0, 1, 1], [], []>} : vector<8x128xf32>, vector<128x128xf32>, vector<8x128xf32> -> vector<8x128xf32>
    %c0_66 = arith.constant 0 : index
    %225 = memref.load %arg0[%c0_66] : memref<5xi32, #tpu.memory_space<smem>>
    %226 = arith.sitofp %225 : i32 to f32
    %c0_67 = arith.constant 0 : index
    %c0_68 = arith.constant 0 : index
    %c0_69 = arith.constant 0 : index
    %227 = vector.load %arg3[%c0_67, %c0_68, %c0_69] : memref<5x8x128xf32, #tpu.memory_space<vmem>>, vector<1x8x128xf32>
    %228 = vector.shape_cast %227 : vector<1x8x128xf32> to vector<8x128xf32>
    %229 = vector.broadcast %226 : f32 to vector<8x128xf32>
    %230 = arith.mulf %229, %228 : vector<8x128xf32>
    %cst_70 = arith.constant 1.000000e+00 : f32
    %231 = arith.subf %cst_70, %226 : f32
    %232 = vector.broadcast %231 : f32 to vector<8x128xf32>
    %233 = arith.mulf %232, %224 : vector<8x128xf32>
    %234 = arith.addf %230, %233 : vector<8x128xf32>
    %235 = tpu.concatenate %234, %175, %204 in 1 : vector<8x128xf32>, vector<8x128xf32>, vector<8x128xf32> -> vector<8x384xf32>
    %cst_71 = arith.constant dense<0.000000e+00> : vector<8x512xf32>
    %236 = tpu.matmul %235, %2, %cst_71 {dimension_numbers = #tpu.dot_dimension_numbers<[1], [0], [0], [1], [0, 0, 1, 1], [], []>} : vector<8x384xf32>, vector<384x512xf32>, vector<8x512xf32> -> vector<8x512xf32>
    %237 = vector.broadcast %3 : vector<1x512xf32> to vector<8x512xf32>
    %238 = arith.addf %236, %237 : vector<8x512xf32>
    %239 = vector.extract_strided_slice %238 {offsets = [0, 0], sizes = [8, 256], strides = [1, 1]} : vector<8x512xf32> to vector<8x256xf32>
    %240 = arith.negf %239 : vector<8x256xf32>
    %241 = math.exp %240 : vector<8x256xf32>
    %cst_72 = arith.constant 1.000000e+00 : f32
    %242 = vector.broadcast %cst_72 : f32 to vector<8x256xf32>
    %243 = arith.addf %242, %241 : vector<8x256xf32>
    %244 = arith.divf %242, %243 : vector<8x256xf32>
    %245 = vector.extract_strided_slice %244 {offsets = [0, 0], sizes = [8, 128], strides = [1, 1]} : vector<8x256xf32> to vector<8x128xf32>
    %246 = vector.extract_strided_slice %244 {offsets = [0, 128], sizes = [8, 128], strides = [1, 1]} : vector<8x256xf32> to vector<8x128xf32>
    %247 = vector.extract_strided_slice %238 {offsets = [0, 256], sizes = [8, 128], strides = [1, 1]} : vector<8x512xf32> to vector<8x128xf32>
    %248 = vector.extract_strided_slice %238 {offsets = [0, 384], sizes = [8, 128], strides = [1, 1]} : vector<8x512xf32> to vector<8x128xf32>
    %249 = arith.mulf %245, %248 : vector<8x128xf32>
    %250 = arith.addf %247, %249 : vector<8x128xf32>
    %251 = math.tanh %250 : vector<8x128xf32>
    %cst_73 = arith.constant 1.000000e+00 : f32
    %252 = vector.broadcast %cst_73 : f32 to vector<8x128xf32>
    %253 = arith.subf %252, %246 : vector<8x128xf32>
    %254 = arith.mulf %253, %251 : vector<8x128xf32>
    %255 = arith.mulf %246, %204 : vector<8x128xf32>
    %256 = arith.addf %254, %255 : vector<8x128xf32>
    %257 = tpu.concatenate %234, %175, %256 in 1 : vector<8x128xf32>, vector<8x128xf32>, vector<8x128xf32> -> vector<8x384xf32>
    %cst_74 = arith.constant dense<0.000000e+00> : vector<8x128xf32>
    %258 = tpu.matmul %257, %4, %cst_74 {dimension_numbers = #tpu.dot_dimension_numbers<[1], [0], [0], [1], [0, 0, 1, 1], [], []>} : vector<8x384xf32>, vector<384x128xf32>, vector<8x128xf32> -> vector<8x128xf32>
    %259 = vector.broadcast %5 : vector<1x128xf32> to vector<8x128xf32>
    %260 = arith.addf %258, %259 : vector<8x128xf32>
    %c2_75 = arith.constant 2 : index
    %c0_76 = arith.constant 0 : index
    %c0_77 = arith.constant 0 : index
    %261 = vector.load %arg11[%c2_75, %c0_76, %c0_77] : memref<6x8x128xf32, #tpu.memory_space<vmem>>, vector<1x8x128xf32>
    %262 = vector.shape_cast %261 : vector<1x8x128xf32> to vector<8x128xf32>
    %263 = vector.shape_cast %260 : vector<8x128xf32> to vector<1x8x128xf32>
    tpu.vector_store %arg11[%c2_75, %c0_76, %c0_77], %263 {strides = array<i32>} : memref<6x8x128xf32, #tpu.memory_space<vmem>>, vector<1x8x128xf32>,
    %cst_78 = arith.constant dense<0xFF800000> : vector<8xf32>
    %264 = vector.multi_reduction <maximumf>, %260, %cst_78 [1] : vector<8x128xf32> to vector<8xf32>
    %265 = vector.shape_cast %264 : vector<8xf32> to vector<8x1xf32>
    %266 = vector.broadcast %265 : vector<8x1xf32> to vector<8x128xf32>
    %267 = arith.cmpf oge, %260, %266 : vector<8x128xf32>
    %cst_79 = arith.constant 1.280000e+02 : f32
    %268 = vector.broadcast %cst_79 : f32 to vector<8x128xf32>
    %269 = arith.select %267, %181, %268 : vector<8x128xi1>, vector<8x128xf32>
    %cst_80 = arith.constant dense<0x7F800000> : vector<8xf32>
    %270 = vector.multi_reduction <minimumf>, %269, %cst_80 [1] : vector<8x128xf32> to vector<8xf32>
    %271 = vector.shape_cast %270 : vector<8xf32> to vector<8x1xf32>
    %272 = vector.broadcast %271 : vector<8x1xf32> to vector<8x128xf32>
    %273 = arith.cmpf oeq, %181, %272 : vector<8x128xf32>
    %274 = arith.extui %273 : vector<8x128xi1> to vector<8x128xi32>
    %275 = arith.sitofp %274 : vector<8x128xi32> to vector<8x128xf32>
    %cst_81 = arith.constant dense<0.000000e+00> : vector<8x128xf32>
    %276 = tpu.matmul %275, %6, %cst_81 {dimension_numbers = #tpu.dot_dimension_numbers<[1], [0], [0], [1], [0, 0, 1, 1], [], []>} : vector<8x128xf32>, vector<128x128xf32>, vector<8x128xf32> -> vector<8x128xf32>
    %c1_82 = arith.constant 1 : index
    %277 = memref.load %arg0[%c1_82] : memref<5xi32, #tpu.memory_space<smem>>
    %278 = arith.sitofp %277 : i32 to f32
    %c1_83 = arith.constant 1 : index
    %c0_84 = arith.constant 0 : index
    %c0_85 = arith.constant 0 : index
    %279 = vector.load %arg3[%c1_83, %c0_84, %c0_85] : memref<5x8x128xf32, #tpu.memory_space<vmem>>, vector<1x8x128xf32>
    %280 = vector.shape_cast %279 : vector<1x8x128xf32> to vector<8x128xf32>
    %281 = vector.broadcast %278 : f32 to vector<8x128xf32>
    %282 = arith.mulf %281, %280 : vector<8x128xf32>
    %cst_86 = arith.constant 1.000000e+00 : f32
    %283 = arith.subf %cst_86, %278 : f32
    %284 = vector.broadcast %283 : f32 to vector<8x128xf32>
    %285 = arith.mulf %284, %276 : vector<8x128xf32>
    %286 = arith.addf %282, %285 : vector<8x128xf32>
    %287 = tpu.concatenate %286, %175, %256 in 1 : vector<8x128xf32>, vector<8x128xf32>, vector<8x128xf32> -> vector<8x384xf32>
    %cst_87 = arith.constant dense<0.000000e+00> : vector<8x512xf32>
    %288 = tpu.matmul %287, %2, %cst_87 {dimension_numbers = #tpu.dot_dimension_numbers<[1], [0], [0], [1], [0, 0, 1, 1], [], []>} : vector<8x384xf32>, vector<384x512xf32>, vector<8x512xf32> -> vector<8x512xf32>
    %289 = vector.broadcast %3 : vector<1x512xf32> to vector<8x512xf32>
    %290 = arith.addf %288, %289 : vector<8x512xf32>
    %291 = vector.extract_strided_slice %290 {offsets = [0, 0], sizes = [8, 256], strides = [1, 1]} : vector<8x512xf32> to vector<8x256xf32>
    %292 = arith.negf %291 : vector<8x256xf32>
    %293 = math.exp %292 : vector<8x256xf32>
    %cst_88 = arith.constant 1.000000e+00 : f32
    %294 = vector.broadcast %cst_88 : f32 to vector<8x256xf32>
    %295 = arith.addf %294, %293 : vector<8x256xf32>
    %296 = arith.divf %294, %295 : vector<8x256xf32>
    %297 = vector.extract_strided_slice %296 {offsets = [0, 0], sizes = [8, 128], strides = [1, 1]} : vector<8x256xf32> to vector<8x128xf32>
    %298 = vector.extract_strided_slice %296 {offsets = [0, 128], sizes = [8, 128], strides = [1, 1]} : vector<8x256xf32> to vector<8x128xf32>
    %299 = vector.extract_strided_slice %290 {offsets = [0, 256], sizes = [8, 128], strides = [1, 1]} : vector<8x512xf32> to vector<8x128xf32>
    %300 = vector.extract_strided_slice %290 {offsets = [0, 384], sizes = [8, 128], strides = [1, 1]} : vector<8x512xf32> to vector<8x128xf32>
    %301 = arith.mulf %297, %300 : vector<8x128xf32>
    %302 = arith.addf %299, %301 : vector<8x128xf32>
    %303 = math.tanh %302 : vector<8x128xf32>
    %cst_89 = arith.constant 1.000000e+00 : f32
    %304 = vector.broadcast %cst_89 : f32 to vector<8x128xf32>
    %305 = arith.subf %304, %298 : vector<8x128xf32>
    %306 = arith.mulf %305, %303 : vector<8x128xf32>
    %307 = arith.mulf %298, %256 : vector<8x128xf32>
    %308 = arith.addf %306, %307 : vector<8x128xf32>
    %309 = tpu.concatenate %286, %175, %308 in 1 : vector<8x128xf32>, vector<8x128xf32>, vector<8x128xf32> -> vector<8x384xf32>
    %cst_90 = arith.constant dense<0.000000e+00> : vector<8x128xf32>
    %310 = tpu.matmul %309, %4, %cst_90 {dimension_numbers = #tpu.dot_dimension_numbers<[1], [0], [0], [1], [0, 0, 1, 1], [], []>} : vector<8x384xf32>, vector<384x128xf32>, vector<8x128xf32> -> vector<8x128xf32>
    %311 = vector.broadcast %5 : vector<1x128xf32> to vector<8x128xf32>
    %312 = arith.addf %310, %311 : vector<8x128xf32>
    %c3_91 = arith.constant 3 : index
    %c0_92 = arith.constant 0 : index
    %c0_93 = arith.constant 0 : index
    %313 = vector.load %arg11[%c3_91, %c0_92, %c0_93] : memref<6x8x128xf32, #tpu.memory_space<vmem>>, vector<1x8x128xf32>
    %314 = vector.shape_cast %313 : vector<1x8x128xf32> to vector<8x128xf32>
    %315 = vector.shape_cast %312 : vector<8x128xf32> to vector<1x8x128xf32>
    tpu.vector_store %arg11[%c3_91, %c0_92, %c0_93], %315 {strides = array<i32>} : memref<6x8x128xf32, #tpu.memory_space<vmem>>, vector<1x8x128xf32>,
    %cst_94 = arith.constant dense<0xFF800000> : vector<8xf32>
    %316 = vector.multi_reduction <maximumf>, %312, %cst_94 [1] : vector<8x128xf32> to vector<8xf32>
    %317 = vector.shape_cast %316 : vector<8xf32> to vector<8x1xf32>
    %318 = vector.broadcast %317 : vector<8x1xf32> to vector<8x128xf32>
    %319 = arith.cmpf oge, %312, %318 : vector<8x128xf32>
    %cst_95 = arith.constant 1.280000e+02 : f32
    %320 = vector.broadcast %cst_95 : f32 to vector<8x128xf32>
    %321 = arith.select %319, %181, %320 : vector<8x128xi1>, vector<8x128xf32>
    %cst_96 = arith.constant dense<0x7F800000> : vector<8xf32>
    %322 = vector.multi_reduction <minimumf>, %321, %cst_96 [1] : vector<8x128xf32> to vector<8xf32>
    %323 = vector.shape_cast %322 : vector<8xf32> to vector<8x1xf32>
    %324 = vector.broadcast %323 : vector<8x1xf32> to vector<8x128xf32>
    %325 = arith.cmpf oeq, %181, %324 : vector<8x128xf32>
    %326 = arith.extui %325 : vector<8x128xi1> to vector<8x128xi32>
    %327 = arith.sitofp %326 : vector<8x128xi32> to vector<8x128xf32>
    %cst_97 = arith.constant dense<0.000000e+00> : vector<8x128xf32>
    %328 = tpu.matmul %327, %6, %cst_97 {dimension_numbers = #tpu.dot_dimension_numbers<[1], [0], [0], [1], [0, 0, 1, 1], [], []>} : vector<8x128xf32>, vector<128x128xf32>, vector<8x128xf32> -> vector<8x128xf32>
    %c2_98 = arith.constant 2 : index
    %329 = memref.load %arg0[%c2_98] : memref<5xi32, #tpu.memory_space<smem>>
    %330 = arith.sitofp %329 : i32 to f32
    %c2_99 = arith.constant 2 : index
    %c0_100 = arith.constant 0 : index
    %c0_101 = arith.constant 0 : index
    %331 = vector.load %arg3[%c2_99, %c0_100, %c0_101] : memref<5x8x128xf32, #tpu.memory_space<vmem>>, vector<1x8x128xf32>
    %332 = vector.shape_cast %331 : vector<1x8x128xf32> to vector<8x128xf32>
    %333 = vector.broadcast %330 : f32 to vector<8x128xf32>
    %334 = arith.mulf %333, %332 : vector<8x128xf32>
    %cst_102 = arith.constant 1.000000e+00 : f32
    %335 = arith.subf %cst_102, %330 : f32
    %336 = vector.broadcast %335 : f32 to vector<8x128xf32>
    %337 = arith.mulf %336, %328 : vector<8x128xf32>
    %338 = arith.addf %334, %337 : vector<8x128xf32>
    %339 = tpu.concatenate %338, %175, %308 in 1 : vector<8x128xf32>, vector<8x128xf32>, vector<8x128xf32> -> vector<8x384xf32>
    %cst_103 = arith.constant dense<0.000000e+00> : vector<8x512xf32>
    %340 = tpu.matmul %339, %2, %cst_103 {dimension_numbers = #tpu.dot_dimension_numbers<[1], [0], [0], [1], [0, 0, 1, 1], [], []>} : vector<8x384xf32>, vector<384x512xf32>, vector<8x512xf32> -> vector<8x512xf32>
    %341 = vector.broadcast %3 : vector<1x512xf32> to vector<8x512xf32>
    %342 = arith.addf %340, %341 : vector<8x512xf32>
    %343 = vector.extract_strided_slice %342 {offsets = [0, 0], sizes = [8, 256], strides = [1, 1]} : vector<8x512xf32> to vector<8x256xf32>
    %344 = arith.negf %343 : vector<8x256xf32>
    %345 = math.exp %344 : vector<8x256xf32>
    %cst_104 = arith.constant 1.000000e+00 : f32
    %346 = vector.broadcast %cst_104 : f32 to vector<8x256xf32>
    %347 = arith.addf %346, %345 : vector<8x256xf32>
    %348 = arith.divf %346, %347 : vector<8x256xf32>
    %349 = vector.extract_strided_slice %348 {offsets = [0, 0], sizes = [8, 128], strides = [1, 1]} : vector<8x256xf32> to vector<8x128xf32>
    %350 = vector.extract_strided_slice %348 {offsets = [0, 128], sizes = [8, 128], strides = [1, 1]} : vector<8x256xf32> to vector<8x128xf32>
    %351 = vector.extract_strided_slice %342 {offsets = [0, 256], sizes = [8, 128], strides = [1, 1]} : vector<8x512xf32> to vector<8x128xf32>
    %352 = vector.extract_strided_slice %342 {offsets = [0, 384], sizes = [8, 128], strides = [1, 1]} : vector<8x512xf32> to vector<8x128xf32>
    %353 = arith.mulf %349, %352 : vector<8x128xf32>
    %354 = arith.addf %351, %353 : vector<8x128xf32>
    %355 = math.tanh %354 : vector<8x128xf32>
    %cst_105 = arith.constant 1.000000e+00 : f32
    %356 = vector.broadcast %cst_105 : f32 to vector<8x128xf32>
    %357 = arith.subf %356, %350 : vector<8x128xf32>
    %358 = arith.mulf %357, %355 : vector<8x128xf32>
    %359 = arith.mulf %350, %308 : vector<8x128xf32>
    %360 = arith.addf %358, %359 : vector<8x128xf32>
    %361 = tpu.concatenate %338, %175, %360 in 1 : vector<8x128xf32>, vector<8x128xf32>, vector<8x128xf32> -> vector<8x384xf32>
    %cst_106 = arith.constant dense<0.000000e+00> : vector<8x128xf32>
    %362 = tpu.matmul %361, %4, %cst_106 {dimension_numbers = #tpu.dot_dimension_numbers<[1], [0], [0], [1], [0, 0, 1, 1], [], []>} : vector<8x384xf32>, vector<384x128xf32>, vector<8x128xf32> -> vector<8x128xf32>
    %363 = vector.broadcast %5 : vector<1x128xf32> to vector<8x128xf32>
    %364 = arith.addf %362, %363 : vector<8x128xf32>
    %c4_107 = arith.constant 4 : index
    %c0_108 = arith.constant 0 : index
    %c0_109 = arith.constant 0 : index
    %365 = vector.load %arg11[%c4_107, %c0_108, %c0_109] : memref<6x8x128xf32, #tpu.memory_space<vmem>>, vector<1x8x128xf32>
    %366 = vector.shape_cast %365 : vector<1x8x128xf32> to vector<8x128xf32>
    %367 = vector.shape_cast %364 : vector<8x128xf32> to vector<1x8x128xf32>
    tpu.vector_store %arg11[%c4_107, %c0_108, %c0_109], %367 {strides = array<i32>} : memref<6x8x128xf32, #tpu.memory_space<vmem>>, vector<1x8x128xf32>,
    %cst_110 = arith.constant dense<0xFF800000> : vector<8xf32>
    %368 = vector.multi_reduction <maximumf>, %364, %cst_110 [1] : vector<8x128xf32> to vector<8xf32>
    %369 = vector.shape_cast %368 : vector<8xf32> to vector<8x1xf32>
    %370 = vector.broadcast %369 : vector<8x1xf32> to vector<8x128xf32>
    %371 = arith.cmpf oge, %364, %370 : vector<8x128xf32>
    %cst_111 = arith.constant 1.280000e+02 : f32
    %372 = vector.broadcast %cst_111 : f32 to vector<8x128xf32>
    %373 = arith.select %371, %181, %372 : vector<8x128xi1>, vector<8x128xf32>
    %cst_112 = arith.constant dense<0x7F800000> : vector<8xf32>
    %374 = vector.multi_reduction <minimumf>, %373, %cst_112 [1] : vector<8x128xf32> to vector<8xf32>
    %375 = vector.shape_cast %374 : vector<8xf32> to vector<8x1xf32>
    %376 = vector.broadcast %375 : vector<8x1xf32> to vector<8x128xf32>
    %377 = arith.cmpf oeq, %181, %376 : vector<8x128xf32>
    %378 = arith.extui %377 : vector<8x128xi1> to vector<8x128xi32>
    %379 = arith.sitofp %378 : vector<8x128xi32> to vector<8x128xf32>
    %cst_113 = arith.constant dense<0.000000e+00> : vector<8x128xf32>
    %380 = tpu.matmul %379, %6, %cst_113 {dimension_numbers = #tpu.dot_dimension_numbers<[1], [0], [0], [1], [0, 0, 1, 1], [], []>} : vector<8x128xf32>, vector<128x128xf32>, vector<8x128xf32> -> vector<8x128xf32>
    %c3_114 = arith.constant 3 : index
    %381 = memref.load %arg0[%c3_114] : memref<5xi32, #tpu.memory_space<smem>>
    %382 = arith.sitofp %381 : i32 to f32
    %c3_115 = arith.constant 3 : index
    %c0_116 = arith.constant 0 : index
    %c0_117 = arith.constant 0 : index
    %383 = vector.load %arg3[%c3_115, %c0_116, %c0_117] : memref<5x8x128xf32, #tpu.memory_space<vmem>>, vector<1x8x128xf32>
    %384 = vector.shape_cast %383 : vector<1x8x128xf32> to vector<8x128xf32>
    %385 = vector.broadcast %382 : f32 to vector<8x128xf32>
    %386 = arith.mulf %385, %384 : vector<8x128xf32>
    %cst_118 = arith.constant 1.000000e+00 : f32
    %387 = arith.subf %cst_118, %382 : f32
    %388 = vector.broadcast %387 : f32 to vector<8x128xf32>
    %389 = arith.mulf %388, %380 : vector<8x128xf32>
    %390 = arith.addf %386, %389 : vector<8x128xf32>
    %391 = tpu.concatenate %390, %175, %360 in 1 : vector<8x128xf32>, vector<8x128xf32>, vector<8x128xf32> -> vector<8x384xf32>
    %cst_119 = arith.constant dense<0.000000e+00> : vector<8x512xf32>
    %392 = tpu.matmul %391, %2, %cst_119 {dimension_numbers = #tpu.dot_dimension_numbers<[1], [0], [0], [1], [0, 0, 1, 1], [], []>} : vector<8x384xf32>, vector<384x512xf32>, vector<8x512xf32> -> vector<8x512xf32>
    %393 = vector.broadcast %3 : vector<1x512xf32> to vector<8x512xf32>
    %394 = arith.addf %392, %393 : vector<8x512xf32>
    %395 = vector.extract_strided_slice %394 {offsets = [0, 0], sizes = [8, 256], strides = [1, 1]} : vector<8x512xf32> to vector<8x256xf32>
    %396 = arith.negf %395 : vector<8x256xf32>
    %397 = math.exp %396 : vector<8x256xf32>
    %cst_120 = arith.constant 1.000000e+00 : f32
    %398 = vector.broadcast %cst_120 : f32 to vector<8x256xf32>
    %399 = arith.addf %398, %397 : vector<8x256xf32>
    %400 = arith.divf %398, %399 : vector<8x256xf32>
    %401 = vector.extract_strided_slice %400 {offsets = [0, 0], sizes = [8, 128], strides = [1, 1]} : vector<8x256xf32> to vector<8x128xf32>
    %402 = vector.extract_strided_slice %400 {offsets = [0, 128], sizes = [8, 128], strides = [1, 1]} : vector<8x256xf32> to vector<8x128xf32>
    %403 = vector.extract_strided_slice %394 {offsets = [0, 256], sizes = [8, 128], strides = [1, 1]} : vector<8x512xf32> to vector<8x128xf32>
    %404 = vector.extract_strided_slice %394 {offsets = [0, 384], sizes = [8, 128], strides = [1, 1]} : vector<8x512xf32> to vector<8x128xf32>
    %405 = arith.mulf %401, %404 : vector<8x128xf32>
    %406 = arith.addf %403, %405 : vector<8x128xf32>
    %407 = math.tanh %406 : vector<8x128xf32>
    %cst_121 = arith.constant 1.000000e+00 : f32
    %408 = vector.broadcast %cst_121 : f32 to vector<8x128xf32>
    %409 = arith.subf %408, %402 : vector<8x128xf32>
    %410 = arith.mulf %409, %407 : vector<8x128xf32>
    %411 = arith.mulf %402, %360 : vector<8x128xf32>
    %412 = arith.addf %410, %411 : vector<8x128xf32>
    %413 = tpu.concatenate %390, %175, %412 in 1 : vector<8x128xf32>, vector<8x128xf32>, vector<8x128xf32> -> vector<8x384xf32>
    %cst_122 = arith.constant dense<0.000000e+00> : vector<8x128xf32>
    %414 = tpu.matmul %413, %4, %cst_122 {dimension_numbers = #tpu.dot_dimension_numbers<[1], [0], [0], [1], [0, 0, 1, 1], [], []>} : vector<8x384xf32>, vector<384x128xf32>, vector<8x128xf32> -> vector<8x128xf32>
    %415 = vector.broadcast %5 : vector<1x128xf32> to vector<8x128xf32>
    %416 = arith.addf %414, %415 : vector<8x128xf32>
    %c5_123 = arith.constant 5 : index
    %c0_124 = arith.constant 0 : index
    %c0_125 = arith.constant 0 : index
    %417 = vector.load %arg11[%c5_123, %c0_124, %c0_125] : memref<6x8x128xf32, #tpu.memory_space<vmem>>, vector<1x8x128xf32>
    %418 = vector.shape_cast %417 : vector<1x8x128xf32> to vector<8x128xf32>
    %419 = vector.shape_cast %416 : vector<8x128xf32> to vector<1x8x128xf32>
    tpu.vector_store %arg11[%c5_123, %c0_124, %c0_125], %419 {strides = array<i32>} : memref<6x8x128xf32, #tpu.memory_space<vmem>>, vector<1x8x128xf32>,
    return
  }
}

</mosaic_0001>

<llo_original>
// kernel: seq2seq_forward.1
$region0: #{seq2seq_forward.1}
  #allocation0 [shape = 'u32[]', space=smem, size = 0x4, offset = 0x4, fixed_abs, tag = 'smem constant byte address 0x4 - core index']
  #allocation1 [shape = 'u32[72,128]{1,0:T(1,128)}', space=vmem, size = 0x9000, scoped, tag = 'internal scratch']
  %s0 = inlined_call_operand.vmem [shape: s32[5], index: 0, kind: input, shape index: {}]
  %s1 = inlined_call_operand.vmem [shape: f32[7,8,128], index: 1, kind: input, shape index: {}]
  %s2 = inlined_call_operand.vmem [shape: f32[8,128], index: 2, kind: input, shape index: {}]
  %s3 = inlined_call_operand.vmem [shape: f32[5,8,128], index: 3, kind: input, shape index: {}]
  %s4 = inlined_call_operand.hbm [shape: f32[256,512], index: 4, kind: input, shape index: {}]
  %s5 = inlined_call_operand.vmem [shape: f32[1,512], index: 5, kind: input, shape index: {}]
  %s6 = inlined_call_operand.hbm [shape: f32[384,512], index: 6, kind: input, shape index: {}]
  %s7 = inlined_call_operand.vmem [shape: f32[1,512], index: 7, kind: input, shape index: {}]
  %s8 = inlined_call_operand.vmem [shape: f32[384,128], index: 8, kind: input, shape index: {}]
  %s9 = inlined_call_operand.vmem [shape: f32[1,128], index: 9, kind: input, shape index: {}]
  %s10 = inlined_call_operand.vmem [shape: f32[128,128], index: 10, kind: input, shape index: {}]
  %s11 = inlined_call_operand.vmem [shape: f32[6,8,128], index: 11, kind: output, shape index: {}]
  %s12 = sld [smem:[#allocation0]]
  $region66: #{seq2seq_forward.1} parent=0
    _
  %s14 = ssub.s32 1, %s12
  %s15 = scalar_select 0, %s14, %s12
  $region1: #{seq2seq_forward.1} parent=0
    #allocation2 [shape = 'u8[512]{0}', space=smem, size = 0x200, scoped, tag = 'input window, operand 0, single buffered']
    #allocation3 [shape = 's32[1]{0}', space=sflag, size = 0x4, scoped, tag = 'scoped memory for seq2seq_forward.1']
    #allocation4 [shape = 's32[1]{0}', space=sflag, size = 0x4, scoped, tag = 'scoped memory for seq2seq_forward.1']
    #allocation5 [shape = 'u8[524288]{0}', space=vmem, size = 0x80000, scoped, tag = 'input window, operand 4, single buffered']
    #allocation6 [shape = 'u8[786432]{0}', space=vmem, size = 0xc0000, scoped, tag = 'input window, operand 6, single buffered']
    #allocation7 [shape = 's32[1]{0}', space=sflag, size = 0x4, scoped, tag = 'scoped memory for seq2seq_forward.1']
    %16 = vsyncpa [#allocation4], 0
    %17 = vsyncpa [#allocation3], 0
    %18 = vsyncpa [#allocation7], 0
    // Predicated region
    $region2: #{seq2seq_forward.1} parent=1 // pred_check
      _
    $region3: #{seq2seq_forward.1} parent=1 // pred_check_branch
      %20 = sbr.rel (0) target = $region5
    $region4: #{seq2seq_forward.1} parent=1 // pred_region
      %22 = vsyncadd [#allocation4], 0
      %s24 = sshll.u32 %s0, 4
      %s25 = int_to_ptr.vmem [resolvable:$true] %s24
      %27 = dma.vmem_to_smem %s25, 16, [#allocation2], [#allocation4]
    $region5: #{seq2seq_forward.1} parent=1 // pred_fallthru
      _
    // Predicated region
    $region6: #{seq2seq_forward.1} parent=1 // pred_check
      _
    $region7: #{seq2seq_forward.1} parent=1 // pred_check_branch
      %29 = sbr.rel (0) target = $region9
    $region8: #{seq2seq_forward.1} parent=1 // pred_region
      _
    $region9: #{seq2seq_forward.1} parent=1 // pred_fallthru
      _
    // Predicated region
    $region10: #{seq2seq_forward.1} parent=1 // pred_check
      _
    $region11: #{seq2seq_forward.1} parent=1 // pred_check_branch
      %31 = sbr.rel (0) target = $region13
    $region12: #{seq2seq_forward.1} parent=1 // pred_region
      _
    $region13: #{seq2seq_forward.1} parent=1 // pred_fallthru
      _
    // Predicated region
    $region14: #{seq2seq_forward.1} parent=1 // pred_check
      _
    $region15: #{seq2seq_forward.1} parent=1 // pred_check_branch
      %33 = sbr.rel (0) target = $region17
    $region16: #{seq2seq_forward.1} parent=1 // pred_region
      _
    $region17: #{seq2seq_forward.1} parent=1 // pred_fallthru
      _
    // Predicated region
    $region18: #{seq2seq_forward.1} parent=1 // pred_check
      _
    $region19: #{seq2seq_forward.1} parent=1 // pred_check_branch
      %35 = sbr.rel (0) target = $region21
    $region20: #{seq2seq_forward.1} parent=1 // pred_region
      %37 = vsyncadd [#allocation3], 0
      %s38 = sshll.u32 %s4, 4
      %s39 = int_to_ptr.hbm [resolvable:$true] %s38
      %s40 = sshll.u32 [#allocation5], 4
      %s41 = int_to_ptr.vmem [resolvable:$true] %s40
      %46 = dma.hbm_to_vmem [thread:$0]  %s39, 16384, %s41, [#allocation3], 512, 512, 32
    $region21: #{seq2seq_forward.1} parent=1 // pred_fallthru
      _
    // Predicated region
    $region22: #{seq2seq_forward.1} parent=1 // pred_check
      _
    $region23: #{seq2seq_forward.1} parent=1 // pred_check_branch
      %48 = sbr.rel (0) target = $region25
    $region24: #{seq2seq_forward.1} parent=1 // pred_region
      _
    $region25: #{seq2seq_forward.1} parent=1 // pred_fallthru
      _
    // Predicated region
    $region26: #{seq2seq_forward.1} parent=1 // pred_check
      _
    $region27: #{seq2seq_forward.1} parent=1 // pred_check_branch
      %50 = sbr.rel (0) target = $region29
    $region28: #{seq2seq_forward.1} parent=1 // pred_region
      %52 = vsyncadd [#allocation7], 0
      %s53 = sshll.u32 %s6, 4
      %s54 = int_to_ptr.hbm [resolvable:$true] %s53
      %s55 = sshll.u32 [#allocation6], 4
      %s56 = int_to_ptr.vmem [resolvable:$true] %s55
      %61 = dma.hbm_to_vmem [thread:$0]  %s54, 24576, %s56, [#allocation7], 512, 512, 32
    $region29: #{seq2seq_forward.1} parent=1 // pred_fallthru
      _
    // Predicated region
    $region30: #{seq2seq_forward.1} parent=1 // pred_check
      _
    $region31: #{seq2seq_forward.1} parent=1 // pred_check_branch
      %63 = sbr.rel (0) target = $region33
    $region32: #{seq2seq_forward.1} parent=1 // pred_region
      _
    $region33: #{seq2seq_forward.1} parent=1 // pred_fallthru
      _
    // Predicated region
    $region34: #{seq2seq_forward.1} parent=1 // pred_check
      _
    $region35: #{seq2seq_forward.1} parent=1 // pred_check_branch
      %65 = sbr.rel (0) target = $region37
    $region36: #{seq2seq_forward.1} parent=1 // pred_region
      _
    $region37: #{seq2seq_forward.1} parent=1 // pred_fallthru
      _
    // Predicated region
    $region38: #{seq2seq_forward.1} parent=1 // pred_check
      _
    $region39: #{seq2seq_forward.1} parent=1 // pred_check_branch
      %67 = sbr.rel (0) target = $region41
    $region40: #{seq2seq_forward.1} parent=1 // pred_region
      _
    $region41: #{seq2seq_forward.1} parent=1 // pred_fallthru
      _
    // Predicated region
    $region42: #{seq2seq_forward.1} parent=1 // pred_check
      _
    $region43: #{seq2seq_forward.1} parent=1 // pred_check_branch
      %69 = sbr.rel (0) target = $region45
    $region44: #{seq2seq_forward.1} parent=1 // pred_region
      _
    $region45: #{seq2seq_forward.1} parent=1 // pred_fallthru
      _
    // Predicated region
    $region46: #{seq2seq_forward.1} parent=1 // pred_check
      _
    $region47: #{seq2seq_forward.1} parent=1 // pred_check_branch
      %71 = sbr.rel (0) target = $region49
    $region48: #{seq2seq_forward.1} parent=1 // pred_region
      %73 = dma.done [#allocation4], 16
    $region49: #{seq2seq_forward.1} parent=1 // pred_fallthru
      _
    // Predicated region
    $region50: #{seq2seq_forward.1} parent=1 // pred_check
      _
    $region51: #{seq2seq_forward.1} parent=1 // pred_check_branch
      %75 = sbr.rel (0) target = $region53
    $region52: #{seq2seq_forward.1} parent=1 // pred_region
      %77 = dma.done [#allocation3], 16384
    $region53: #{seq2seq_forward.1} parent=1 // pred_fallthru
      _
    // Predicated region
    $region54: #{seq2seq_forward.1} parent=1 // pred_check
      _
    $region55: #{seq2seq_forward.1} parent=1 // pred_check_branch
      %79 = sbr.rel (0) target = $region57
    $region56: #{seq2seq_forward.1} parent=1 // pred_region
      %81 = dma.done [#allocation7], 24576
    $region57: #{seq2seq_forward.1} parent=1 // pred_fallthru
      _
    %82 = sfence
    %v83 = vld [vmem:[#allocation5] sm:$0xff]
    %v84 = vld [vmem:[#allocation5 + $0x8] sm:$0xff]
    %v85 = vld [vmem:[#allocation5 + $0x10] sm:$0xff]
    %v86 = vld [vmem:[#allocation5 + $0x18] sm:$0xff]
    %v87 = vld [vmem:[#allocation5 + $0x20] sm:$0xff]
    %v88 = vld [vmem:[#allocation5 + $0x28] sm:$0xff]
    %v89 = vld [vmem:[#allocation5 + $0x30] sm:$0xff]
    %v90 = vld [vmem:[#allocation5 + $0x38] sm:$0xff]
    %v91 = vld [vmem:[#allocation5 + $0x40] sm:$0xff]
    %v92 = vld [vmem:[#allocation5 + $0x48] sm:$0xff]
    %v93 = vld [vmem:[#allocation5 + $0x50] sm:$0xff]
    %v94 = vld [vmem:[#allocation5 + $0x58] sm:$0xff]
    %v95 = vld [vmem:[#allocation5 + $0x60] sm:$0xff]
    %v96 = vld [vmem:[#allocation5 + $0x68] sm:$0xff]
    %v97 = vld [vmem:[#allocation5 + $0x70] sm:$0xff]
    %v98 = vld [vmem:[#allocation5 + $0x78] sm:$0xff]
    %v99 = vld [vmem:[#allocation5 + $0x80] sm:$0xff]
    %v100 = vld [vmem:[#allocation5 + $0x88] sm:$0xff]
    %v101 = vld [vmem:[#allocation5 + $0x90] sm:$0xff]
    %v102 = vld [vmem:[#allocation5 + $0x98] sm:$0xff]
    %v103 = vld [vmem:[#allocation5 + $0xa0] sm:$0xff]
    %v104 = vld [vmem:[#allocation5 + $0xa8] sm:$0xff]
    %v105 = vld [vmem:[#allocation5 + $0xb0] sm:$0xff]
    %v106 = vld [vmem:[#allocation5 + $0xb8] sm:$0xff]
    %v107 = vld [vmem:[#allocation5 + $0xc0] sm:$0xff]
    %v108 = vld [vmem:[#allocation5 + $0xc8] sm:$0xff]
    %v109 = vld [vmem:[#allocation5 + $0xd0] sm:$0xff]
    %v110 = vld [vmem:[#allocation5 + $0xd8] sm:$0xff]
    %v111 = vld [vmem:[#allocation5 + $0xe0] sm:$0xff]
    %v112 = vld [vmem:[#allocation5 + $0xe8] sm:$0xff]
    %v113 = vld [vmem:[#allocation5 + $0xf0] sm:$0xff]
    %v114 = vld [vmem:[#allocation5 + $0xf8] sm:$0xff]
    %v115 = vld [vmem:[#allocation5 + $0x100] sm:$0xff]
    %v116 = vld [vmem:[#allocation5 + $0x108] sm:$0xff]
    %v117 = vld [vmem:[#allocation5 + $0x110] sm:$0xff]
    %v118 = vld [vmem:[#allocation5 + $0x118] sm:$0xff]
    %v119 = vld [vmem:[#allocation5 + $0x120] sm:$0xff]
    %v120 = vld [vmem:[#allocation5 + $0x128] sm:$0xff]
    %v121 = vld [vmem:[#allocation5 + $0x130] sm:$0xff]
    %v122 = vld [vmem:[#allocation5 + $0x138] sm:$0xff]
    %v123 = vld [vmem:[#allocation5 + $0x140] sm:$0xff]
    %v124 = vld [vmem:[#allocation5 + $0x148] sm:$0xff]
    %v125 = vld [vmem:[#allocation5 + $0x150] sm:$0xff]
    %v126 = vld [vmem:[#allocation5 + $0x158] sm:$0xff]
    %v127 = vld [vmem:[#allocation5 + $0x160] sm:$0xff]
    %v128 = vld [vmem:[#allocation5 + $0x168] sm:$0xff]
    %v129 = vld [vmem:[#allocation5 + $0x170] sm:$0xff]
    %v130 = vld [vmem:[#allocation5 + $0x178] sm:$0xff]
    %v131 = vld [vmem:[#allocation5 + $0x180] sm:$0xff]
    %v132 = vld [vmem:[#allocation5 + $0x188] sm:$0xff]
    %v133 = vld [vmem:[#allocation5 + $0x190] sm:$0xff]
    %v134 = vld [vmem:[#allocation5 + $0x198] sm:$0xff]
    %v135 = vld [vmem:[#allocation5 + $0x1a0] sm:$0xff]
    %v136 = vld [vmem:[#allocation5 + $0x1a8] sm:$0xff]
    %v137 = vld [vmem:[#allocation5 + $0x1b0] sm:$0xff]
    %v138 = vld [vmem:[#allocation5 + $0x1b8] sm:$0xff]
    %v139 = vld [vmem:[#allocation5 + $0x1c0] sm:$0xff]
    %v140 = vld [vmem:[#allocation5 + $0x1c8] sm:$0xff]
    %v141 = vld [vmem:[#allocation5 + $0x1d0] sm:$0xff]
    %v142 = vld [vmem:[#allocation5 + $0x1d8] sm:$0xff]
    %v143 = vld [vmem:[#allocation5 + $0x1e0] sm:$0xff]
    %v144 = vld [vmem:[#allocation5 + $0x1e8] sm:$0xff]
    %v145 = vld [vmem:[#allocation5 + $0x1f0] sm:$0xff]
    %v146 = vld [vmem:[#allocation5 + $0x1f8] sm:$0xff]
    %v147 = vld [vmem:[#allocation5 + $0x200] sm:$0xff]
    %v148 = vld [vmem:[#allocation5 + $0x208] sm:$0xff]
    %v149 = vld [vmem:[#allocation5 + $0x210] sm:$0xff]
    %v150 = vld [vmem:[#allocation5 + $0x218] sm:$0xff]
    %v151 = vld [vmem:[#allocation5 + $0x220] sm:$0xff]
    %v152 = vld [vmem:[#allocation5 + $0x228] sm:$0xff]
    %v153 = vld [vmem:[#allocation5 + $0x230] sm:$0xff]
    %v154 = vld [vmem:[#allocation5 + $0x238] sm:$0xff]
    %v155 = vld [vmem:[#allocation5 + $0x240] sm:$0xff]
    %v156 = vld [vmem:[#allocation5 + $0x248] sm:$0xff]
    %v157 = vld [vmem:[#allocation5 + $0x250] sm:$0xff]
    %v158 = vld [vmem:[#allocation5 + $0x258] sm:$0xff]
    %v159 = vld [vmem:[#allocation5 + $0x260] sm:$0xff]
    %v160 = vld [vmem:[#allocation5 + $0x268] sm:$0xff]
    %v161 = vld [vmem:[#allocation5 + $0x270] sm:$0xff]
    %v162 = vld [vmem:[#allocation5 + $0x278] sm:$0xff]
    %v163 = vld [vmem:[#allocation5 + $0x280] sm:$0xff]
    %v164 = vld [vmem:[#allocation5 + $0x288] sm:$0xff]
    %v165 = vld [vmem:[#allocation5 + $0x290] sm:$0xff]
    %v166 = vld [vmem:[#allocation5 + $0x298] sm:$0xff]
    %v167 = vld [vmem:[#allocation5 + $0x2a0] sm:$0xff]
    %v168 = vld [vmem:[#allocation5 + $0x2a8] sm:$0xff]
    %v169 = vld [vmem:[#allocation5 + $0x2b0] sm:$0xff]
    %v170 = vld [vmem:[#allocation5 + $0x2b8] sm:$0xff]
    %v171 = vld [vmem:[#allocation5 + $0x2c0] sm:$0xff]
    %v172 = vld [vmem:[#allocation5 + $0x2c8] sm:$0xff]
    %v173 = vld [vmem:[#allocation5 + $0x2d0] sm:$0xff]
    %v174 = vld [vmem:[#allocation5 + $0x2d8] sm:$0xff]
    %v175 = vld [vmem:[#allocation5 + $0x2e0] sm:$0xff]
    %v176 = vld [vmem:[#allocation5 + $0x2e8] sm:$0xff]
    %v177 = vld [vmem:[#allocation5 + $0x2f0] sm:$0xff]
    %v178 = vld [vmem:[#allocation5 + $0x2f8] sm:$0xff]
    %v179 = vld [vmem:[#allocation5 + $0x300] sm:$0xff]
    %v180 = vld [vmem:[#allocation5 + $0x308] sm:$0xff]
    %v181 = vld [vmem:[#allocation5 + $0x310] sm:$0xff]
    %v182 = vld [vmem:[#allocation5 + $0x318] sm:$0xff]
    %v183 = vld [vmem:[#allocation5 + $0x320] sm:$0xff]
    %v184 = vld [vmem:[#allocation5 + $0x328] sm:$0xff]
    %v185 = vld [vmem:[#allocation5 + $0x330] sm:$0xff]
    %v186 = vld [vmem:[#allocation5 + $0x338] sm:$0xff]
    %v187 = vld [vmem:[#allocation5 + $0x340] sm:$0xff]
    %v188 = vld [vmem:[#allocation5 + $0x348] sm:$0xff]
    %v189 = vld [vmem:[#allocation5 + $0x350] sm:$0xff]
    %v190 = vld [vmem:[#allocation5 + $0x358] sm:$0xff]
    %v191 = vld [vmem:[#allocation5 + $0x360] sm:$0xff]
    %v192 = vld [vmem:[#allocation5 + $0x368] sm:$0xff]
    %v193 = vld [vmem:[#allocation5 + $0x370] sm:$0xff]
    %v194 = vld [vmem:[#allocation5 + $0x378] sm:$0xff]
    %v195 = vld [vmem:[#allocation5 + $0x380] sm:$0xff]
    %v196 = vld [vmem:[#allocation5 + $0x388] sm:$0xff]
    %v197 = vld [vmem:[#allocation5 + $0x390] sm:$0xff]
    %v198 = vld [vmem:[#allocation5 + $0x398] sm:$0xff]
    %v199 = vld [vmem:[#allocation5 + $0x3a0] sm:$0xff]
    %v200 = vld [vmem:[#allocation5 + $0x3a8] sm:$0xff]
    %v201 = vld [vmem:[#allocation5 + $0x3b0] sm:$0xff]
    %v202 = vld [vmem:[#allocation5 + $0x3b8] sm:$0xff]
    %v203 = vld [vmem:[#allocation5 + $0x3c0] sm:$0xff]
    %v204 = vld [vmem:[#allocation5 + $0x3c8] sm:$0xff]
    %v205 = vld [vmem:[#allocation5 + $0x3d0] sm:$0xff]
    %v206 = vld [vmem:[#allocation5 + $0x3d8] sm:$0xff]
    %v207 = vld [vmem:[#allocation5 + $0x3e0] sm:$0xff]
    %v208 = vld [vmem:[#allocation5 + $0x3e8] sm:$0xff]
    %v209 = vld [vmem:[#allocation5 + $0x3f0] sm:$0xff]
    %v210 = vld [vmem:[#allocation5 + $0x3f8] sm:$0xff]
    %v211 = vld [vmem:[%s5] sm:$0xf]
    %v212 = vld [vmem:[#allocation6] sm:$0xff]
    %v213 = vld [vmem:[#allocation6 + $0x8] sm:$0xff]
    %v214 = vld [vmem:[#allocation6 + $0x10] sm:$0xff]
    %v215 = vld [vmem:[#allocation6 + $0x18] sm:$0xff]
    %v216 = vld [vmem:[#allocation6 + $0x20] sm:$0xff]
    %v217 = vld [vmem:[#allocation6 + $0x28] sm:$0xff]
    %v218 = vld [vmem:[#allocation6 + $0x30] sm:$0xff]
    %v219 = vld [vmem:[#allocation6 + $0x38] sm:$0xff]
    %v220 = vld [vmem:[#allocation6 + $0x40] sm:$0xff]
    %v221 = vld [vmem:[#allocation6 + $0x48] sm:$0xff]
    %v222 = vld [vmem:[#allocation6 + $0x50] sm:$0xff]
    %v223 = vld [vmem:[#allocation6 + $0x58] sm:$0xff]
    %v224 = vld [vmem:[#allocation6 + $0x60] sm:$0xff]
    %v225 = vld [vmem:[#allocation6 + $0x68] sm:$0xff]
    %v226 = vld [vmem:[#allocation6 + $0x70] sm:$0xff]
    %v227 = vld [vmem:[#allocation6 + $0x78] sm:$0xff]
    %v228 = vld [vmem:[#allocation6 + $0x80] sm:$0xff]
    %v229 = vld [vmem:[#allocation6 + $0x88] sm:$0xff]
    %v230 = vld [vmem:[#allocation6 + $0x90] sm:$0xff]
    %v231 = vld [vmem:[#allocation6 + $0x98] sm:$0xff]
    %v232 = vld [vmem:[#allocation6 + $0xa0] sm:$0xff]
    %v233 = vld [vmem:[#allocation6 + $0xa8] sm:$0xff]
    %v234 = vld [vmem:[#allocation6 + $0xb0] sm:$0xff]
    %v235 = vld [vmem:[#allocation6 + $0xb8] sm:$0xff]
    %v236 = vld [vmem:[#allocation6 + $0xc0] sm:$0xff]
    %v237 = vld [vmem:[#allocation6 + $0xc8] sm:$0xff]
    %v238 = vld [vmem:[#allocation6 + $0xd0] sm:$0xff]
    %v239 = vld [vmem:[#allocation6 + $0xd8] sm:$0xff]
    %v240 = vld [vmem:[#allocation6 + $0xe0] sm:$0xff]
    %v241 = vld [vmem:[#allocation6 + $0xe8] sm:$0xff]
    %v242 = vld [vmem:[#allocation6 + $0xf0] sm:$0xff]
    %v243 = vld [vmem:[#allocation6 + $0xf8] sm:$0xff]
    %v244 = vld [vmem:[#allocation6 + $0x100] sm:$0xff]
    %v245 = vld [vmem:[#allocation6 + $0x108] sm:$0xff]
    %v246 = vld [vmem:[#allocation6 + $0x110] sm:$0xff]
    %v247 = vld [vmem:[#allocation6 + $0x118] sm:$0xff]
    %v248 = vld [vmem:[#allocation6 + $0x120] sm:$0xff]
    %v249 = vld [vmem:[#allocation6 + $0x128] sm:$0xff]
    %v250 = vld [vmem:[#allocation6 + $0x130] sm:$0xff]
    %v251 = vld [vmem:[#allocation6 + $0x138] sm:$0xff]
    %v252 = vld [vmem:[#allocation6 + $0x140] sm:$0xff]
    %v253 = vld [vmem:[#allocation6 + $0x148] sm:$0xff]
    %v254 = vld [vmem:[#allocation6 + $0x150] sm:$0xff]
    %v255 = vld [vmem:[#allocation6 + $0x158] sm:$0xff]
    %v256 = vld [vmem:[#allocation6 + $0x160] sm:$0xff]
    %v257 = vld [vmem:[#allocation6 + $0x168] sm:$0xff]
    %v258 = vld [vmem:[#allocation6 + $0x170] sm:$0xff]
    %v259 = vld [vmem:[#allocation6 + $0x178] sm:$0xff]
    %v260 = vld [vmem:[#allocation6 + $0x180] sm:$0xff]
    %v261 = vld [vmem:[#allocation6 + $0x188] sm:$0xff]
    %v262 = vld [vmem:[#allocation6 + $0x190] sm:$0xff]
    %v263 = vld [vmem:[#allocation6 + $0x198] sm:$0xff]
    %v264 = vld [vmem:[#allocation6 + $0x1a0] sm:$0xff]
    %v265 = vld [vmem:[#allocation6 + $0x1a8] sm:$0xff]
    %v266 = vld [vmem:[#allocation6 + $0x1b0] sm:$0xff]
    %v267 = vld [vmem:[#allocation6 + $0x1b8] sm:$0xff]
    %v268 = vld [vmem:[#allocation6 + $0x1c0] sm:$0xff]
    %v269 = vld [vmem:[#allocation6 + $0x1c8] sm:$0xff]
    %v270 = vld [vmem:[#allocation6 + $0x1d0] sm:$0xff]
    %v271 = vld [vmem:[#allocation6 + $0x1d8] sm:$0xff]
    %v272 = vld [vmem:[#allocation6 + $0x1e0] sm:$0xff]
    %v273 = vld [vmem:[#allocation6 + $0x1e8] sm:$0xff]
    %v274 = vld [vmem:[#allocation6 + $0x1f0] sm:$0xff]
    %v275 = vld [vmem:[#allocation6 + $0x1f8] sm:$0xff]
    %v276 = vld [vmem:[#allocation6 + $0x200] sm:$0xff]
    %v277 = vld [vmem:[#allocation6 + $0x208] sm:$0xff]
    %v278 = vld [vmem:[#allocation6 + $0x210] sm:$0xff]
    %v279 = vld [vmem:[#allocation6 + $0x218] sm:$0xff]
    %v280 = vld [vmem:[#allocation6 + $0x220] sm:$0xff]
    %v281 = vld [vmem:[#allocation6 + $0x228] sm:$0xff]
    %v282 = vld [vmem:[#allocation6 + $0x230] sm:$0xff]
    %v283 = vld [vmem:[#allocation6 + $0x238] sm:$0xff]
    %v284 = vld [vmem:[#allocation6 + $0x240] sm:$0xff]
    %v285 = vld [vmem:[#allocation6 + $0x248] sm:$0xff]
    %v286 = vld [vmem:[#allocation6 + $0x250] sm:$0xff]
    %v287 = vld [vmem:[#allocation6 + $0x258] sm:$0xff]
    %v288 = vld [vmem:[#allocation6 + $0x260] sm:$0xff]
    %v289 = vld [vmem:[#allocation6 + $0x268] sm:$0xff]
    %v290 = vld [vmem:[#allocation6 + $0x270] sm:$0xff]
    %v291 = vld [vmem:[#allocation6 + $0x278] sm:$0xff]
    %v292 = vld [vmem:[#allocation6 + $0x280] sm:$0xff]
    %v293 = vld [vmem:[#allocation6 + $0x288] sm:$0xff]
    %v294 = vld [vmem:[#allocation6 + $0x290] sm:$0xff]
    %v295 = vld [vmem:[#allocation6 + $0x298] sm:$0xff]
    %v296 = vld [vmem:[#allocation6 + $0x2a0] sm:$0xff]
    %v297 = vld [vmem:[#allocation6 + $0x2a8] sm:$0xff]
    %v298 = vld [vmem:[#allocation6 + $0x2b0] sm:$0xff]
    %v299 = vld [vmem:[#allocation6 + $0x2b8] sm:$0xff]
    %v300 = vld [vmem:[#allocation6 + $0x2c0] sm:$0xff]
    %v301 = vld [vmem:[#allocation6 + $0x2c8] sm:$0xff]
    %v302 = vld [vmem:[#allocation6 + $0x2d0] sm:$0xff]
    %v303 = vld [vmem:[#allocation6 + $0x2d8] sm:$0xff]
    %v304 = vld [vmem:[#allocation6 + $0x2e0] sm:$0xff]
    %v305 = vld [vmem:[#allocation6 + $0x2e8] sm:$0xff]
    %v306 = vld [vmem:[#allocation6 + $0x2f0] sm:$0xff]
    %v307 = vld [vmem:[#allocation6 + $0x2f8] sm:$0xff]
    %v308 = vld [vmem:[#allocation6 + $0x300] sm:$0xff]
    %v309 = vld [vmem:[#allocation6 + $0x308] sm:$0xff]
    %v310 = vld [vmem:[#allocation6 + $0x310] sm:$0xff]
    %v311 = vld [vmem:[#allocation6 + $0x318] sm:$0xff]
    %v312 = vld [vmem:[#allocation6 + $0x320] sm:$0xff]
    %v313 = vld [vmem:[#allocation6 + $0x328] sm:$0xff]
    %v314 = vld [vmem:[#allocation6 + $0x330] sm:$0xff]
    %v315 = vld [vmem:[#allocation6 + $0x338] sm:$0xff]
    %v316 = vld [vmem:[#allocation6 + $0x340] sm:$0xff]
    %v317 = vld [vmem:[#allocation6 + $0x348] sm:$0xff]
    %v318 = vld [vmem:[#allocation6 + $0x350] sm:$0xff]
    %v319 = vld [vmem:[#allocation6 + $0x358] sm:$0xff]
    %v320 = vld [vmem:[#allocation6 + $0x360] sm:$0xff]
    %v321 = vld [vmem:[#allocation6 + $0x368] sm:$0xff]
    %v322 = vld [vmem:[#allocation6 + $0x370] sm:$0xff]
    %v323 = vld [vmem:[#allocation6 + $0x378] sm:$0xff]
    %v324 = vld [vmem:[#allocation6 + $0x380] sm:$0xff]
    %v325 = vld [vmem:[#allocation6 + $0x388] sm:$0xff]
    %v326 = vld [vmem:[#allocation6 + $0x390] sm:$0xff]
    %v327 = vld [vmem:[#allocation6 + $0x398] sm:$0xff]
    %v328 = vld [vmem:[#allocation6 + $0x3a0] sm:$0xff]
    %v329 = vld [vmem:[#allocation6 + $0x3a8] sm:$0xff]
    %v330 = vld [vmem:[#allocation6 + $0x3b0] sm:$0xff]
    %v331 = vld [vmem:[#allocation6 + $0x3b8] sm:$0xff]
    %v332 = vld [vmem:[#allocation6 + $0x3c0] sm:$0xff]
    %v333 = vld [vmem:[#allocation6 + $0x3c8] sm:$0xff]
    %v334 = vld [vmem:[#allocation6 + $0x3d0] sm:$0xff]
    %v335 = vld [vmem:[#allocation6 + $0x3d8] sm:$0xff]
    %v336 = vld [vmem:[#allocation6 + $0x3e0] sm:$0xff]
    %v337 = vld [vmem:[#allocation6 + $0x3e8] sm:$0xff]
    %v338 = vld [vmem:[#allocation6 + $0x3f0] sm:$0xff]
    %v339 = vld [vmem:[#allocation6 + $0x3f8] sm:$0xff]
    %v340 = vld [vmem:[#allocation6 + $0x400] sm:$0xff]
    %v341 = vld [vmem:[#allocation6 + $0x408] sm:$0xff]
    %v342 = vld [vmem:[#allocation6 + $0x410] sm:$0xff]
    %v343 = vld [vmem:[#allocation6 + $0x418] sm:$0xff]
    %v344 = vld [vmem:[#allocation6 + $0x420] sm:$0xff]
    %v345 = vld [vmem:[#allocation6 + $0x428] sm:$0xff]
    %v346 = vld [vmem:[#allocation6 + $0x430] sm:$0xff]
    %v347 = vld [vmem:[#allocation6 + $0x438] sm:$0xff]
    %v348 = vld [vmem:[#allocation6 + $0x440] sm:$0xff]
    %v349 = vld [vmem:[#allocation6 + $0x448] sm:$0xff]
    %v350 = vld [vmem:[#allocation6 + $0x450] sm:$0xff]
    %v351 = vld [vmem:[#allocation6 + $0x458] sm:$0xff]
    %v352 = vld [vmem:[#allocation6 + $0x460] sm:$0xff]
    %v353 = vld [vmem:[#allocation6 + $0x468] sm:$0xff]
    %v354 = vld [vmem:[#allocation6 + $0x470] sm:$0xff]
    %v355 = vld [vmem:[#allocation6 + $0x478] sm:$0xff]
    %v356 = vld [vmem:[#allocation6 + $0x480] sm:$0xff]
    %v357 = vld [vmem:[#allocation6 + $0x488] sm:$0xff]
    %v358 = vld [vmem:[#allocation6 + $0x490] sm:$0xff]
    %v359 = vld [vmem:[#allocation6 + $0x498] sm:$0xff]
    %v360 = vld [vmem:[#allocation6 + $0x4a0] sm:$0xff]
    %v361 = vld [vmem:[#allocation6 + $0x4a8] sm:$0xff]
    %v362 = vld [vmem:[#allocation6 + $0x4b0] sm:$0xff]
    %v363 = vld [vmem:[#allocation6 + $0x4b8] sm:$0xff]
    %v364 = vld [vmem:[#allocation6 + $0x4c0] sm:$0xff]
    %v365 = vld [vmem:[#allocation6 + $0x4c8] sm:$0xff]
    %v366 = vld [vmem:[#allocation6 + $0x4d0] sm:$0xff]
    %v367 = vld [vmem:[#allocation6 + $0x4d8] sm:$0xff]
    %v368 = vld [vmem:[#allocation6 + $0x4e0] sm:$0xff]
    %v369 = vld [vmem:[#allocation6 + $0x4e8] sm:$0xff]
    %v370 = vld [vmem:[#allocation6 + $0x4f0] sm:$0xff]
    %v371 = vld [vmem:[#allocation6 + $0x4f8] sm:$0xff]
    %v372 = vld [vmem:[#allocation6 + $0x500] sm:$0xff]
    %v373 = vld [vmem:[#allocation6 + $0x508] sm:$0xff]
    %v374 = vld [vmem:[#allocation6 + $0x510] sm:$0xff]
    %v375 = vld [vmem:[#allocation6 + $0x518] sm:$0xff]
    %v376 = vld [vmem:[#allocation6 + $0x520] sm:$0xff]
    %v377 = vld [vmem:[#allocation6 + $0x528] sm:$0xff]
    %v378 = vld [vmem:[#allocation6 + $0x530] sm:$0xff]
    %v379 = vld [vmem:[#allocation6 + $0x538] sm:$0xff]
    %v380 = vld [vmem:[#allocation6 + $0x540] sm:$0xff]
    %v381 = vld [vmem:[#allocation6 + $0x548] sm:$0xff]
    %v382 = vld [vmem:[#allocation6 + $0x550] sm:$0xff]
    %v383 = vld [vmem:[#allocation6 + $0x558] sm:$0xff]
    %v384 = vld [vmem:[#allocation6 + $0x560] sm:$0xff]
    %v385 = vld [vmem:[#allocation6 + $0x568] sm:$0xff]
    %v386 = vld [vmem:[#allocation6 + $0x570] sm:$0xff]
    %v387 = vld [vmem:[#allocation6 + $0x578] sm:$0xff]
    %v388 = vld [vmem:[#allocation6 + $0x580] sm:$0xff]
    %v389 = vld [vmem:[#allocation6 + $0x588] sm:$0xff]
    %v390 = vld [vmem:[#allocation6 + $0x590] sm:$0xff]
    %v391 = vld [vmem:[#allocation6 + $0x598] sm:$0xff]
    %v392 = vld [vmem:[#allocation6 + $0x5a0] sm:$0xff]
    %v393 = vld [vmem:[#allocation6 + $0x5a8] sm:$0xff]
    %v394 = vld [vmem:[#allocation6 + $0x5b0] sm:$0xff]
    %v395 = vld [vmem:[#allocation6 + $0x5b8] sm:$0xff]
    %v396 = vld [vmem:[#allocation6 + $0x5c0] sm:$0xff]
    %v397 = vld [vmem:[#allocation6 + $0x5c8] sm:$0xff]
    %v398 = vld [vmem:[#allocation6 + $0x5d0] sm:$0xff]
    %v399 = vld [vmem:[#allocation6 + $0x5d8] sm:$0xff]
    %v400 = vld [vmem:[#allocation6 + $0x5e0] sm:$0xff]
    %v401 = vld [vmem:[#allocation6 + $0x5e8] sm:$0xff]
    %v402 = vld [vmem:[#allocation6 + $0x5f0] sm:$0xff]
    %v403 = vld [vmem:[#allocation6 + $0x5f8] sm:$0xff]
    %v404 = vld [vmem:[%s7] sm:$0xf]
    %v405 = vld [vmem:[%s8] sm:$0xff]
    %v406 = vld [vmem:[%s8 + $0x8] sm:$0xff]
    %v407 = vld [vmem:[%s8 + $0x10] sm:$0xff]
    %v408 = vld [vmem:[%s8 + $0x18] sm:$0xff]
    %v409 = vld [vmem:[%s8 + $0x20] sm:$0xff]
    %v410 = vld [vmem:[%s8 + $0x28] sm:$0xff]
    %v411 = vld [vmem:[%s8 + $0x30] sm:$0xff]
    %v412 = vld [vmem:[%s8 + $0x38] sm:$0xff]
    %v413 = vld [vmem:[%s8 + $0x40] sm:$0xff]
    %v414 = vld [vmem:[%s8 + $0x48] sm:$0xff]
    %v415 = vld [vmem:[%s8 + $0x50] sm:$0xff]
    %v416 = vld [vmem:[%s8 + $0x58] sm:$0xff]
    %v417 = vld [vmem:[%s8 + $0x60] sm:$0xff]
    %v418 = vld [vmem:[%s8 + $0x68] sm:$0xff]
    %v419 = vld [vmem:[%s8 + $0x70] sm:$0xff]
    %v420 = vld [vmem:[%s8 + $0x78] sm:$0xff]
    %v421 = vld [vmem:[%s8 + $0x80] sm:$0xff]
    %v422 = vld [vmem:[%s8 + $0x88] sm:$0xff]
    %v423 = vld [vmem:[%s8 + $0x90] sm:$0xff]
    %v424 = vld [vmem:[%s8 + $0x98] sm:$0xff]
    %v425 = vld [vmem:[%s8 + $0xa0] sm:$0xff]
    %v426 = vld [vmem:[%s8 + $0xa8] sm:$0xff]
    %v427 = vld [vmem:[%s8 + $0xb0] sm:$0xff]
    %v428 = vld [vmem:[%s8 + $0xb8] sm:$0xff]
    %v429 = vld [vmem:[%s8 + $0xc0] sm:$0xff]
    %v430 = vld [vmem:[%s8 + $0xc8] sm:$0xff]
    %v431 = vld [vmem:[%s8 + $0xd0] sm:$0xff]
    %v432 = vld [vmem:[%s8 + $0xd8] sm:$0xff]
    %v433 = vld [vmem:[%s8 + $0xe0] sm:$0xff]
    %v434 = vld [vmem:[%s8 + $0xe8] sm:$0xff]
    %v435 = vld [vmem:[%s8 + $0xf0] sm:$0xff]
    %v436 = vld [vmem:[%s8 + $0xf8] sm:$0xff]
    %v437 = vld [vmem:[%s8 + $0x100] sm:$0xff]
    %v438 = vld [vmem:[%s8 + $0x108] sm:$0xff]
    %v439 = vld [vmem:[%s8 + $0x110] sm:$0xff]
    %v440 = vld [vmem:[%s8 + $0x118] sm:$0xff]
    %v441 = vld [vmem:[%s8 + $0x120] sm:$0xff]
    %v442 = vld [vmem:[%s8 + $0x128] sm:$0xff]
    %v443 = vld [vmem:[%s8 + $0x130] sm:$0xff]
    %v444 = vld [vmem:[%s8 + $0x138] sm:$0xff]
    %v445 = vld [vmem:[%s8 + $0x140] sm:$0xff]
    %v446 = vld [vmem:[%s8 + $0x148] sm:$0xff]
    %v447 = vld [vmem:[%s8 + $0x150] sm:$0xff]
    %v448 = vld [vmem:[%s8 + $0x158] sm:$0xff]
    %v449 = vld [vmem:[%s8 + $0x160] sm:$0xff]
    %v450 = vld [vmem:[%s8 + $0x168] sm:$0xff]
    %v451 = vld [vmem:[%s8 + $0x170] sm:$0xff]
    %v452 = vld [vmem:[%s8 + $0x178] sm:$0xff]
    %v453 = vld [vmem:[%s9] sm:$0x1]
    %v454 = vld [vmem:[%s10] sm:$0xff]
    %v455 = vld [vmem:[%s10 + $0x8] sm:$0xff]
    %v456 = vld [vmem:[%s10 + $0x10] sm:$0xff]
    %v457 = vld [vmem:[%s10 + $0x18] sm:$0xff]
    %v458 = vld [vmem:[%s10 + $0x20] sm:$0xff]
    %v459 = vld [vmem:[%s10 + $0x28] sm:$0xff]
    %v460 = vld [vmem:[%s10 + $0x30] sm:$0xff]
    %v461 = vld [vmem:[%s10 + $0x38] sm:$0xff]
    %v462 = vld [vmem:[%s10 + $0x40] sm:$0xff]
    %v463 = vld [vmem:[%s10 + $0x48] sm:$0xff]
    %v464 = vld [vmem:[%s10 + $0x50] sm:$0xff]
    %v465 = vld [vmem:[%s10 + $0x58] sm:$0xff]
    %v466 = vld [vmem:[%s10 + $0x60] sm:$0xff]
    %v467 = vld [vmem:[%s10 + $0x68] sm:$0xff]
    %v468 = vld [vmem:[%s10 + $0x70] sm:$0xff]
    %v469 = vld [vmem:[%s10 + $0x78] sm:$0xff]
    %v470 = vld [vmem:[%s1] sm:$0xff]
    %v472 = vperm.slane %v211, 0
    %v473 = vperm.slane %v211, 1
    %v474 = vperm.slane %v211, 2
    %v475 = vperm.slane %v211, 3
    %480 = vmatpush.msra.mxu0 %v143
    %481 = vmatpush.msra.mxu0 %v139
    %482 = vmatpush.msra.mxu0 %v135
    %483 = vmatpush.msra.mxu0 %v131
    %484 = vmatpush.msra.mxu0 %v127
    %485 = vmatpush.msra.mxu0 %v123
    %486 = vmatpush.msra.mxu0 %v119
    %487 = vmatpush.msra.mxu0 %v115
    %488 = vmatpush.msra.mxu0 %v111
    %489 = vmatpush.msra.mxu0 %v107
    %490 = vmatpush.msra.mxu0 %v103
    %491 = vmatpush.msra.mxu0 %v99
    %492 = vmatpush.msra.mxu0 %v95
    %493 = vmatpush.msra.mxu0 %v91
    %494 = vmatpush.msra.mxu0 %v87
    %495 = vmatpush.msra.mxu0 %v83
    %496 = vmatmul.f32.gmra.mxu0 %v470
    %v497 = vpop.f32.mrf.mxu0
    %v498 = vadd.f32 %v472, %v497
    %499 = vdwg.mxu0
    %500 = vmatpush.msra.mxu0 %v207
    %501 = vmatpush.msra.mxu0 %v203
    %502 = vmatpush.msra.mxu0 %v199
    %503 = vmatpush.msra.mxu0 %v195
    %504 = vmatpush.msra.mxu0 %v191
    %505 = vmatpush.msra.mxu0 %v187
    %506 = vmatpush.msra.mxu0 %v183
    %507 = vmatpush.msra.mxu0 %v179
    %508 = vmatpush.msra.mxu0 %v175
    %509 = vmatpush.msra.mxu0 %v171
    %510 = vmatpush.msra.mxu0 %v167
    %511 = vmatpush.msra.mxu0 %v163
    %512 = vmatpush.msra.mxu0 %v159
    %513 = vmatpush.msra.mxu0 %v155
    %514 = vmatpush.msra.mxu0 %v151
    %515 = vmatpush.msra.mxu0 %v147
    %516 = vmatmul.f32.gmra.mxu0 0.0
    %v517 = vpop.f32.mrf.mxu0
    %v518 = vadd.f32 %v498, %v517
    %519 = vdwg.mxu0
    %520 = vmatpush.msra.mxu0 %v144
    %521 = vmatpush.msra.mxu0 %v140
    %522 = vmatpush.msra.mxu0 %v136
    %523 = vmatpush.msra.mxu0 %v132
    %524 = vmatpush.msra.mxu0 %v128
    %525 = vmatpush.msra.mxu0 %v124
    %526 = vmatpush.msra.mxu0 %v120
    %527 = vmatpush.msra.mxu0 %v116
    %528 = vmatpush.msra.mxu0 %v112
    %529 = vmatpush.msra.mxu0 %v108
    %530 = vmatpush.msra.mxu0 %v104
    %531 = vmatpush.msra.mxu0 %v100
    %532 = vmatpush.msra.mxu0 %v96
    %533 = vmatpush.msra.mxu0 %v92
    %534 = vmatpush.msra.mxu0 %v88
    %535 = vmatpush.msra.mxu0 %v84
    %536 = vmatmul.f32.gmra.mxu0 %v470
    %v537 = vpop.f32.mrf.mxu0
    %v538 = vadd.f32 %v473, %v537
    %539 = vdwg.mxu0
    %540 = vmatpush.msra.mxu0 %v208
    %541 = vmatpush.msra.mxu0 %v204
    %542 = vmatpush.msra.mxu0 %v200
    %543 = vmatpush.msra.mxu0 %v196
    %544 = vmatpush.msra.mxu0 %v192
    %545 = vmatpush.msra.mxu0 %v188
    %546 = vmatpush.msra.mxu0 %v184
    %547 = vmatpush.msra.mxu0 %v180
    %548 = vmatpush.msra.mxu0 %v176
    %549 = vmatpush.msra.mxu0 %v172
    %550 = vmatpush.msra.mxu0 %v168
    %551 = vmatpush.msra.mxu0 %v164
    %552 = vmatpush.msra.mxu0 %v160
    %553 = vmatpush.msra.mxu0 %v156
    %554 = vmatpush.msra.mxu0 %v152
    %555 = vmatpush.msra.mxu0 %v148
    %556 = vmatmul.f32.gmra.mxu0 0.0
    %v557 = vpop.f32.mrf.mxu0
    %v558 = vadd.f32 %v538, %v557
    %559 = vdwg.mxu0
    %560 = vmatpush.msra.mxu0 %v145
    %561 = vmatpush.msra.mxu0 %v141
    %562 = vmatpush.msra.mxu0 %v137
    %563 = vmatpush.msra.mxu0 %v133
    %564 = vmatpush.msra.mxu0 %v129
    %565 = vmatpush.msra.mxu0 %v125
    %566 = vmatpush.msra.mxu0 %v121
    %567 = vmatpush.msra.mxu0 %v117
    %568 = vmatpush.msra.mxu0 %v113
    %569 = vmatpush.msra.mxu0 %v109
    %570 = vmatpush.msra.mxu0 %v105
    %571 = vmatpush.msra.mxu0 %v101
    %572 = vmatpush.msra.mxu0 %v97
    %573 = vmatpush.msra.mxu0 %v93
    %574 = vmatpush.msra.mxu0 %v89
    %575 = vmatpush.msra.mxu0 %v85
    %576 = vmatmul.f32.gmra.mxu0 %v470
    %v577 = vpop.f32.mrf.mxu0
    %v578 = vadd.f32 %v474, %v577
    %579 = vdwg.mxu0
    %580 = vmatpush.msra.mxu0 %v209
    %581 = vmatpush.msra.mxu0 %v205
    %582 = vmatpush.msra.mxu0 %v201
    %583 = vmatpush.msra.mxu0 %v197
    %584 = vmatpush.msra.mxu0 %v193
    %585 = vmatpush.msra.mxu0 %v189
    %586 = vmatpush.msra.mxu0 %v185
    %587 = vmatpush.msra.mxu0 %v181
    %588 = vmatpush.msra.mxu0 %v177
    %589 = vmatpush.msra.mxu0 %v173
    %590 = vmatpush.msra.mxu0 %v169
    %591 = vmatpush.msra.mxu0 %v165
    %592 = vmatpush.msra.mxu0 %v161
    %593 = vmatpush.msra.mxu0 %v157
    %594 = vmatpush.msra.mxu0 %v153
    %595 = vmatpush.msra.mxu0 %v149
    %596 = vmatmul.f32.gmra.mxu0 0.0
    %v597 = vpop.f32.mrf.mxu0
    %v598 = vadd.f32 %v578, %v597
    %599 = vdwg.mxu0
    %600 = vmatpush.msra.mxu0 %v146
    %601 = vmatpush.msra.mxu0 %v142
    %602 = vmatpush.msra.mxu0 %v138
    %603 = vmatpush.msra.mxu0 %v134
    %604 = vmatpush.msra.mxu0 %v130
    %605 = vmatpush.msra.mxu0 %v126
    %606 = vmatpush.msra.mxu0 %v122
    %607 = vmatpush.msra.mxu0 %v118
    %608 = vmatpush.msra.mxu0 %v114
    %609 = vmatpush.msra.mxu0 %v110
    %610 = vmatpush.msra.mxu0 %v106
    %611 = vmatpush.msra.mxu0 %v102
    %612 = vmatpush.msra.mxu0 %v98
    %613 = vmatpush.msra.mxu0 %v94
    %614 = vmatpush.msra.mxu0 %v90
    %615 = vmatpush.msra.mxu0 %v86
    %616 = vmatmul.f32.gmra.mxu0 %v470
    %v617 = vpop.f32.mrf.mxu0
    %v618 = vadd.f32 %v475, %v617
    %619 = vdwg.mxu0
    %620 = vmatpush.msra.mxu0 %v210
    %621 = vmatpush.msra.mxu0 %v206
    %622 = vmatpush.msra.mxu0 %v202
    %623 = vmatpush.msra.mxu0 %v198
    %624 = vmatpush.msra.mxu0 %v194
    %625 = vmatpush.msra.mxu0 %v190
    %626 = vmatpush.msra.mxu0 %v186
    %627 = vmatpush.msra.mxu0 %v182
    %628 = vmatpush.msra.mxu0 %v178
    %629 = vmatpush.msra.mxu0 %v174
    %630 = vmatpush.msra.mxu0 %v170
    %631 = vmatpush.msra.mxu0 %v166
    %632 = vmatpush.msra.mxu0 %v162
    %633 = vmatpush.msra.mxu0 %v158
    %634 = vmatpush.msra.mxu0 %v154
    %635 = vmatpush.msra.mxu0 %v150
    %636 = vmatmul.f32.gmra.mxu0 0.0
    %v637 = vpop.f32.mrf.mxu0
    %v638 = vadd.f32 %v618, %v637
    %639 = vdwg.mxu0
    %v640 = vxor.u32 %v518, 2147483648
    %v641 = vxor.u32 %v558, 2147483648
    %v642 = vmul.f32 %v640, 1.442695
    %v643 = vpow.pop %v642
    %v644 = vmul.f32 %v641, 1.442695
    %v645 = vpow.pop %v644
    %v646 = vadd.f32 %v643, 1.0
    %v647 = vadd.f32 %v645, 1.0
    %v648 = vrcp.pop %v646
    %v649 = vmul.f32 %v646, %v648
    %v650 = vsub.f32 1.0, %v649
    %v651 = vmul.f32 %v648, %v650
    %v652 = vadd.f32 %v648, %v651
    %vm653 = vweird.f32 %v646
    %vm654 = vweird.f32 %v648
    %vm655 = vmor %vm653, %vm654
    %v656 = vsel %vm655, %v648, %v652
    %v657 = vand.u32 2147483647, %v646
    %vm658 = vcmp.eq.f32.partialorder %v657, 8.507059e+37
    %v659 = vand.u32 %v646, 2147483648
    %v660 = vor.u32 1.1754944e-38, %v659
    %v661 = vsel %vm658, %v660, %v656
    %v662 = vmul.f32 1.0, %v661
    %v663 = vrcp.pop %v647
    %v664 = vmul.f32 %v647, %v663
    %v665 = vsub.f32 1.0, %v664
    %v666 = vmul.f32 %v663, %v665
    %v667 = vadd.f32 %v663, %v666
    %vm668 = vweird.f32 %v647
    %vm669 = vweird.f32 %v663
    %vm670 = vmor %vm668, %vm669
    %v671 = vsel %vm670, %v663, %v667
    %v672 = vand.u32 2147483647, %v647
    %vm673 = vcmp.eq.f32.partialorder %v672, 8.507059e+37
    %v674 = vand.u32 %v647, 2147483648
    %v675 = vor.u32 1.1754944e-38, %v674
    %v676 = vsel %vm673, %v675, %v671
    %v677 = vmul.f32 1.0, %v676
    %v678 = vmul.f32 %v662, %v638
    %v679 = vadd.f32 %v598, %v678
    %v680 = vtanh.pop %v679
    %v681 = vsub.f32 1.0, %v677
    %v682 = vmul.f32 %v681, %v680
    %v683 = vmul.f32 %v677, 0.0
    %v684 = vadd.f32 %v682, %v683
    %s685 = scalar_lea.vmem %s1, 8
    %v686 = vld [vmem:[%s685] sm:$0xff]
    %687 = vmatpush.msra.mxu0 %v143
    %688 = vmatpush.msra.mxu0 %v139
    %689 = vmatpush.msra.mxu0 %v135
    %690 = vmatpush.msra.mxu0 %v131
    %691 = vmatpush.msra.mxu0 %v127
    %692 = vmatpush.msra.mxu0 %v123
    %693 = vmatpush.msra.mxu0 %v119
    %694 = vmatpush.msra.mxu0 %v115
    %695 = vmatpush.msra.mxu0 %v111
    %696 = vmatpush.msra.mxu0 %v107
    %697 = vmatpush.msra.mxu0 %v103
    %698 = vmatpush.msra.mxu0 %v99
    %699 = vmatpush.msra.mxu0 %v95
    %700 = vmatpush.msra.mxu0 %v91
    %701 = vmatpush.msra.mxu0 %v87
    %702 = vmatpush.msra.mxu0 %v83
    %703 = vmatmul.f32.gmra.mxu0 %v686
    %v704 = vpop.f32.mrf.mxu0
    %v705 = vadd.f32 %v472, %v704
    %706 = vdwg.mxu0
    %707 = vmatpush.msra.mxu0 %v207
    %708 = vmatpush.msra.mxu0 %v203
    %709 = vmatpush.msra.mxu0 %v199
    %710 = vmatpush.msra.mxu0 %v195
    %711 = vmatpush.msra.mxu0 %v191
    %712 = vmatpush.msra.mxu0 %v187
    %713 = vmatpush.msra.mxu0 %v183
    %714 = vmatpush.msra.mxu0 %v179
    %715 = vmatpush.msra.mxu0 %v175
    %716 = vmatpush.msra.mxu0 %v171
    %717 = vmatpush.msra.mxu0 %v167
    %718 = vmatpush.msra.mxu0 %v163
    %719 = vmatpush.msra.mxu0 %v159
    %720 = vmatpush.msra.mxu0 %v155
    %721 = vmatpush.msra.mxu0 %v151
    %722 = vmatpush.msra.mxu0 %v147
    %723 = vmatmul.f32.gmra.mxu0 %v684
    %v724 = vpop.f32.mrf.mxu0
    %v725 = vadd.f32 %v705, %v724
    %726 = vdwg.mxu0
    %727 = vmatpush.msra.mxu0 %v144
    %728 = vmatpush.msra.mxu0 %v140
    %729 = vmatpush.msra.mxu0 %v136
    %730 = vmatpush.msra.mxu0 %v132
    %731 = vmatpush.msra.mxu0 %v128
    %732 = vmatpush.msra.mxu0 %v124
    %733 = vmatpush.msra.mxu0 %v120
    %734 = vmatpush.msra.mxu0 %v116
    %735 = vmatpush.msra.mxu0 %v112
    %736 = vmatpush.msra.mxu0 %v108
    %737 = vmatpush.msra.mxu0 %v104
    %738 = vmatpush.msra.mxu0 %v100
    %739 = vmatpush.msra.mxu0 %v96
    %740 = vmatpush.msra.mxu0 %v92
    %741 = vmatpush.msra.mxu0 %v88
    %742 = vmatpush.msra.mxu0 %v84
    %743 = vmatmul.f32.gmra.mxu0 %v686
    %v744 = vpop.f32.mrf.mxu0
    %v745 = vadd.f32 %v473, %v744
    %746 = vdwg.mxu0
    %747 = vmatpush.msra.mxu0 %v208
    %748 = vmatpush.msra.mxu0 %v204
    %749 = vmatpush.msra.mxu0 %v200
    %750 = vmatpush.msra.mxu0 %v196
    %751 = vmatpush.msra.mxu0 %v192
    %752 = vmatpush.msra.mxu0 %v188
    %753 = vmatpush.msra.mxu0 %v184
    %754 = vmatpush.msra.mxu0 %v180
    %755 = vmatpush.msra.mxu0 %v176
    %756 = vmatpush.msra.mxu0 %v172
    %757 = vmatpush.msra.mxu0 %v168
    %758 = vmatpush.msra.mxu0 %v164
    %759 = vmatpush.msra.mxu0 %v160
    %760 = vmatpush.msra.mxu0 %v156
    %761 = vmatpush.msra.mxu0 %v152
    %762 = vmatpush.msra.mxu0 %v148
    %763 = vmatmul.f32.gmra.mxu0 %v684
    %v764 = vpop.f32.mrf.mxu0
    %v765 = vadd.f32 %v745, %v764
    %766 = vdwg.mxu0
    %767 = vmatpush.msra.mxu0 %v145
    %768 = vmatpush.msra.mxu0 %v141
    %769 = vmatpush.msra.mxu0 %v137
    %770 = vmatpush.msra.mxu0 %v133
    %771 = vmatpush.msra.mxu0 %v129
    %772 = vmatpush.msra.mxu0 %v125
    %773 = vmatpush.msra.mxu0 %v121
    %774 = vmatpush.msra.mxu0 %v117
    %775 = vmatpush.msra.mxu0 %v113
    %776 = vmatpush.msra.mxu0 %v109
    %777 = vmatpush.msra.mxu0 %v105
    %778 = vmatpush.msra.mxu0 %v101
    %779 = vmatpush.msra.mxu0 %v97
    %780 = vmatpush.msra.mxu0 %v93
    %781 = vmatpush.msra.mxu0 %v89
    %782 = vmatpush.msra.mxu0 %v85
    %783 = vmatmul.f32.gmra.mxu0 %v686
    %v784 = vpop.f32.mrf.mxu0
    %v785 = vadd.f32 %v474, %v784
    %786 = vdwg.mxu0
    %787 = vmatpush.msra.mxu0 %v209
    %788 = vmatpush.msra.mxu0 %v205
    %789 = vmatpush.msra.mxu0 %v201
    %790 = vmatpush.msra.mxu0 %v197
    %791 = vmatpush.msra.mxu0 %v193
    %792 = vmatpush.msra.mxu0 %v189
    %793 = vmatpush.msra.mxu0 %v185
    %794 = vmatpush.msra.mxu0 %v181
    %795 = vmatpush.msra.mxu0 %v177
    %796 = vmatpush.msra.mxu0 %v173
    %797 = vmatpush.msra.mxu0 %v169
    %798 = vmatpush.msra.mxu0 %v165
    %799 = vmatpush.msra.mxu0 %v161
    %800 = vmatpush.msra.mxu0 %v157
    %801 = vmatpush.msra.mxu0 %v153
    %802 = vmatpush.msra.mxu0 %v149
    %803 = vmatmul.f32.gmra.mxu0 %v684
    %v804 = vpop.f32.mrf.mxu0
    %v805 = vadd.f32 %v785, %v804
    %806 = vdwg.mxu0
    %807 = vmatpush.msra.mxu0 %v146
    %808 = vmatpush.msra.mxu0 %v142
    %809 = vmatpush.msra.mxu0 %v138
    %810 = vmatpush.msra.mxu0 %v134
    %811 = vmatpush.msra.mxu0 %v130
    %812 = vmatpush.msra.mxu0 %v126
    %813 = vmatpush.msra.mxu0 %v122
    %814 = vmatpush.msra.mxu0 %v118
    %815 = vmatpush.msra.mxu0 %v114
    %816 = vmatpush.msra.mxu0 %v110
    %817 = vmatpush.msra.mxu0 %v106
    %818 = vmatpush.msra.mxu0 %v102
    %819 = vmatpush.msra.mxu0 %v98
    %820 = vmatpush.msra.mxu0 %v94
    %821 = vmatpush.msra.mxu0 %v90
    %822 = vmatpush.msra.mxu0 %v86
    %823 = vmatmul.f32.gmra.mxu0 %v686
    %v824 = vpop.f32.mrf.mxu0
    %v825 = vadd.f32 %v475, %v824
    %826 = vdwg.mxu0
    %827 = vmatpush.msra.mxu0 %v210
    %828 = vmatpush.msra.mxu0 %v206
    %829 = vmatpush.msra.mxu0 %v202
    %830 = vmatpush.msra.mxu0 %v198
    %831 = vmatpush.msra.mxu0 %v194
    %832 = vmatpush.msra.mxu0 %v190
    %833 = vmatpush.msra.mxu0 %v186
    %834 = vmatpush.msra.mxu0 %v182
    %835 = vmatpush.msra.mxu0 %v178
    %836 = vmatpush.msra.mxu0 %v174
    %837 = vmatpush.msra.mxu0 %v170
    %838 = vmatpush.msra.mxu0 %v166
    %839 = vmatpush.msra.mxu0 %v162
    %840 = vmatpush.msra.mxu0 %v158
    %841 = vmatpush.msra.mxu0 %v154
    %842 = vmatpush.msra.mxu0 %v150
    %843 = vmatmul.f32.gmra.mxu0 %v684
    %v844 = vpop.f32.mrf.mxu0
    %v845 = vadd.f32 %v825, %v844
    %846 = vdwg.mxu0
    %v847 = vxor.u32 %v725, 2147483648
    %v848 = vxor.u32 %v765, 2147483648
    %v849 = vmul.f32 %v847, 1.442695
    %v850 = vpow.pop %v849
    %v851 = vmul.f32 %v848, 1.442695
    %v852 = vpow.pop %v851
    %v853 = vadd.f32 %v850, 1.0
    %v854 = vadd.f32 %v852, 1.0
    %v855 = vrcp.pop %v853
    %v856 = vmul.f32 %v853, %v855
    %v857 = vsub.f32 1.0, %v856
    %v858 = vmul.f32 %v855, %v857
    %v859 = vadd.f32 %v855, %v858
    %vm860 = vweird.f32 %v853
    %vm861 = vweird.f32 %v855
    %vm862 = vmor %vm860, %vm861
    %v863 = vsel %vm862, %v855, %v859
    %v864 = vand.u32 2147483647, %v853
    %vm865 = vcmp.eq.f32.partialorder %v864, 8.507059e+37
    %v866 = vand.u32 %v853, 2147483648
    %v867 = vor.u32 1.1754944e-38, %v866
    %v868 = vsel %vm865, %v867, %v863
    %v869 = vmul.f32 1.0, %v868
    %v870 = vrcp.pop %v854
    %v871 = vmul.f32 %v854, %v870
    %v872 = vsub.f32 1.0, %v871
    %v873 = vmul.f32 %v870, %v872
    %v874 = vadd.f32 %v870, %v873
    %vm875 = vweird.f32 %v854
    %vm876 = vweird.f32 %v870
    %vm877 = vmor %vm875, %vm876
    %v878 = vsel %vm877, %v870, %v874
    %v879 = vand.u32 2147483647, %v854
    %vm880 = vcmp.eq.f32.partialorder %v879, 8.507059e+37
    %v881 = vand.u32 %v854, 2147483648
    %v882 = vor.u32 1.1754944e-38, %v881
    %v883 = vsel %vm880, %v882, %v878
    %v884 = vmul.f32 1.0, %v883
    %v885 = vmul.f32 %v869, %v845
    %v886 = vadd.f32 %v805, %v885
    %v887 = vtanh.pop %v886
    %v888 = vsub.f32 1.0, %v884
    %v889 = vmul.f32 %v888, %v887
    %v890 = vmul.f32 %v884, %v684
    %v891 = vadd.f32 %v889, %v890
    %s892 = scalar_lea.vmem %s1, 16
    %v893 = vld [vmem:[%s892] sm:$0xff]
    %894 = vmatpush.msra.mxu0 %v143
    %895 = vmatpush.msra.mxu0 %v139
    %896 = vmatpush.msra.mxu0 %v135
    %897 = vmatpush.msra.mxu0 %v131
    %898 = vmatpush.msra.mxu0 %v127
    %899 = vmatpush.msra.mxu0 %v123
    %900 = vmatpush.msra.mxu0 %v119
    %901 = vmatpush.msra.mxu0 %v115
    %902 = vmatpush.msra.mxu0 %v111
    %903 = vmatpush.msra.mxu0 %v107
    %904 = vmatpush.msra.mxu0 %v103
    %905 = vmatpush.msra.mxu0 %v99
    %906 = vmatpush.msra.mxu0 %v95
    %907 = vmatpush.msra.mxu0 %v91
    %908 = vmatpush.msra.mxu0 %v87
    %909 = vmatpush.msra.mxu0 %v83
    %910 = vmatmul.f32.gmra.mxu0 %v893
    %v911 = vpop.f32.mrf.mxu0
    %v912 = vadd.f32 %v472, %v911
    %913 = vdwg.mxu0
    %914 = vmatpush.msra.mxu0 %v207
    %915 = vmatpush.msra.mxu0 %v203
    %916 = vmatpush.msra.mxu0 %v199
    %917 = vmatpush.msra.mxu0 %v195
    %918 = vmatpush.msra.mxu0 %v191
    %919 = vmatpush.msra.mxu0 %v187
    %920 = vmatpush.msra.mxu0 %v183
    %921 = vmatpush.msra.mxu0 %v179
    %922 = vmatpush.msra.mxu0 %v175
    %923 = vmatpush.msra.mxu0 %v171
    %924 = vmatpush.msra.mxu0 %v167
    %925 = vmatpush.msra.mxu0 %v163
    %926 = vmatpush.msra.mxu0 %v159
    %927 = vmatpush.msra.mxu0 %v155
    %928 = vmatpush.msra.mxu0 %v151
    %929 = vmatpush.msra.mxu0 %v147
    %930 = vmatmul.f32.gmra.mxu0 %v891
    %v931 = vpop.f32.mrf.mxu0
    %v932 = vadd.f32 %v912, %v931
    %933 = vdwg.mxu0
    %934 = vmatpush.msra.mxu0 %v144
    %935 = vmatpush.msra.mxu0 %v140
    %936 = vmatpush.msra.mxu0 %v136
    %937 = vmatpush.msra.mxu0 %v132
    %938 = vmatpush.msra.mxu0 %v128
    %939 = vmatpush.msra.mxu0 %v124
    %940 = vmatpush.msra.mxu0 %v120
    %941 = vmatpush.msra.mxu0 %v116
    %942 = vmatpush.msra.mxu0 %v112
    %943 = vmatpush.msra.mxu0 %v108
    %944 = vmatpush.msra.mxu0 %v104
    %945 = vmatpush.msra.mxu0 %v100
    %946 = vmatpush.msra.mxu0 %v96
    %947 = vmatpush.msra.mxu0 %v92
    %948 = vmatpush.msra.mxu0 %v88
    %949 = vmatpush.msra.mxu0 %v84
    %950 = vmatmul.f32.gmra.mxu0 %v893
    %v951 = vpop.f32.mrf.mxu0
    %v952 = vadd.f32 %v473, %v951
    %953 = vdwg.mxu0
    %954 = vmatpush.msra.mxu0 %v208
    %955 = vmatpush.msra.mxu0 %v204
    %956 = vmatpush.msra.mxu0 %v200
    %957 = vmatpush.msra.mxu0 %v196
    %958 = vmatpush.msra.mxu0 %v192
    %959 = vmatpush.msra.mxu0 %v188
    %960 = vmatpush.msra.mxu0 %v184
    %961 = vmatpush.msra.mxu0 %v180
    %962 = vmatpush.msra.mxu0 %v176
    %963 = vmatpush.msra.mxu0 %v172
    %964 = vmatpush.msra.mxu0 %v168
    %965 = vmatpush.msra.mxu0 %v164
    %966 = vmatpush.msra.mxu0 %v160
    %967 = vmatpush.msra.mxu0 %v156
    %968 = vmatpush.msra.mxu0 %v152
    %969 = vmatpush.msra.mxu0 %v148
    %970 = vmatmul.f32.gmra.mxu0 %v891
    %v971 = vpop.f32.mrf.mxu0
    %v972 = vadd.f32 %v952, %v971
    %973 = vdwg.mxu0
    %974 = vmatpush.msra.mxu0 %v145
    %975 = vmatpush.msra.mxu0 %v141
    %976 = vmatpush.msra.mxu0 %v137
    %977 = vmatpush.msra.mxu0 %v133
    %978 = vmatpush.msra.mxu0 %v129
    %979 = vmatpush.msra.mxu0 %v125
    %980 = vmatpush.msra.mxu0 %v121
    %981 = vmatpush.msra.mxu0 %v117
    %982 = vmatpush.msra.mxu0 %v113
    %983 = vmatpush.msra.mxu0 %v109
    %984 = vmatpush.msra.mxu0 %v105
    %985 = vmatpush.msra.mxu0 %v101
    %986 = vmatpush.msra.mxu0 %v97
    %987 = vmatpush.msra.mxu0 %v93
    %988 = vmatpush.msra.mxu0 %v89
    %989 = vmatpush.msra.mxu0 %v85
    %990 = vmatmul.f32.gmra.mxu0 %v893
    %v991 = vpop.f32.mrf.mxu0
    %v992 = vadd.f32 %v474, %v991
    %993 = vdwg.mxu0
    %994 = vmatpush.msra.mxu0 %v209
    %995 = vmatpush.msra.mxu0 %v205
    %996 = vmatpush.msra.mxu0 %v201
    %997 = vmatpush.msra.mxu0 %v197
    %998 = vmatpush.msra.mxu0 %v193
    %999 = vmatpush.msra.mxu0 %v189
    %1000 = vmatpush.msra.mxu0 %v185
    %1001 = vmatpush.msra.mxu0 %v181
    %1002 = vmatpush.msra.mxu0 %v177
    %1003 = vmatpush.msra.mxu0 %v173
    %1004 = vmatpush.msra.mxu0 %v169
    %1005 = vmatpush.msra.mxu0 %v165
    %1006 = vmatpush.msra.mxu0 %v161
    %1007 = vmatpush.msra.mxu0 %v157
    %1008 = vmatpush.msra.mxu0 %v153
    %1009 = vmatpush.msra.mxu0 %v149
    %1010 = vmatmul.f32.gmra.mxu0 %v891
    %v1011 = vpop.f32.mrf.mxu0
    %v1012 = vadd.f32 %v992, %v1011
    %1013 = vdwg.mxu0
    %1014 = vmatpush.msra.mxu0 %v146
    %1015 = vmatpush.msra.mxu0 %v142
    %1016 = vmatpush.msra.mxu0 %v138
    %1017 = vmatpush.msra.mxu0 %v134
    %1018 = vmatpush.msra.mxu0 %v130
    %1019 = vmatpush.msra.mxu0 %v126
    %1020 = vmatpush.msra.mxu0 %v122
    %1021 = vmatpush.msra.mxu0 %v118
    %1022 = vmatpush.msra.mxu0 %v114
    %1023 = vmatpush.msra.mxu0 %v110
    %1024 = vmatpush.msra.mxu0 %v106
    %1025 = vmatpush.msra.mxu0 %v102
    %1026 = vmatpush.msra.mxu0 %v98
    %1027 = vmatpush.msra.mxu0 %v94
    %1028 = vmatpush.msra.mxu0 %v90
    %1029 = vmatpush.msra.mxu0 %v86
    %1030 = vmatmul.f32.gmra.mxu0 %v893
    %v1031 = vpop.f32.mrf.mxu0
    %v1032 = vadd.f32 %v475, %v1031
    %1033 = vdwg.mxu0
    %1034 = vmatpush.msra.mxu0 %v210
    %1035 = vmatpush.msra.mxu0 %v206
    %1036 = vmatpush.msra.mxu0 %v202
    %1037 = vmatpush.msra.mxu0 %v198
    %1038 = vmatpush.msra.mxu0 %v194
    %1039 = vmatpush.msra.mxu0 %v190
    %1040 = vmatpush.msra.mxu0 %v186
    %1041 = vmatpush.msra.mxu0 %v182
    %1042 = vmatpush.msra.mxu0 %v178
    %1043 = vmatpush.msra.mxu0 %v174
    %1044 = vmatpush.msra.mxu0 %v170
    %1045 = vmatpush.msra.mxu0 %v166
    %1046 = vmatpush.msra.mxu0 %v162
    %1047 = vmatpush.msra.mxu0 %v158
    %1048 = vmatpush.msra.mxu0 %v154
    %1049 = vmatpush.msra.mxu0 %v150
    %1050 = vmatmul.f32.gmra.mxu0 %v891
    %v1051 = vpop.f32.mrf.mxu0
    %v1052 = vadd.f32 %v1032, %v1051
    %1053 = vdwg.mxu0
    %v1054 = vxor.u32 %v932, 2147483648
    %v1055 = vxor.u32 %v972, 2147483648
    %v1056 = vmul.f32 %v1054, 1.442695
    %v1057 = vpow.pop %v1056
    %v1058 = vmul.f32 %v1055, 1.442695
    %v1059 = vpow.pop %v1058
    %v1060 = vadd.f32 %v1057, 1.0
    %v1061 = vadd.f32 %v1059, 1.0
    %v1062 = vrcp.pop %v1060
    %v1063 = vmul.f32 %v1060, %v1062
    %v1064 = vsub.f32 1.0, %v1063
    %v1065 = vmul.f32 %v1062, %v1064
    %v1066 = vadd.f32 %v1062, %v1065
    %vm1067 = vweird.f32 %v1060
    %vm1068 = vweird.f32 %v1062
    %vm1069 = vmor %vm1067, %vm1068
    %v1070 = vsel %vm1069, %v1062, %v1066
    %v1071 = vand.u32 2147483647, %v1060
    %vm1072 = vcmp.eq.f32.partialorder %v1071, 8.507059e+37
    %v1073 = vand.u32 %v1060, 2147483648
    %v1074 = vor.u32 1.1754944e-38, %v1073
    %v1075 = vsel %vm1072, %v1074, %v1070
    %v1076 = vmul.f32 1.0, %v1075
    %v1077 = vrcp.pop %v1061
    %v1078 = vmul.f32 %v1061, %v1077
    %v1079 = vsub.f32 1.0, %v1078
    %v1080 = vmul.f32 %v1077, %v1079
    %v1081 = vadd.f32 %v1077, %v1080
    %vm1082 = vweird.f32 %v1061
    %vm1083 = vweird.f32 %v1077
    %vm1084 = vmor %vm1082, %vm1083
    %v1085 = vsel %vm1084, %v1077, %v1081
    %v1086 = vand.u32 2147483647, %v1061
    %vm1087 = vcmp.eq.f32.partialorder %v1086, 8.507059e+37
    %v1088 = vand.u32 %v1061, 2147483648
    %v1089 = vor.u32 1.1754944e-38, %v1088
    %v1090 = vsel %vm1087, %v1089, %v1085
    %v1091 = vmul.f32 1.0, %v1090
    %v1092 = vmul.f32 %v1076, %v1052
    %v1093 = vadd.f32 %v1012, %v1092
    %v1094 = vtanh.pop %v1093
    %v1095 = vsub.f32 1.0, %v1091
    %v1096 = vmul.f32 %v1095, %v1094
    %v1097 = vmul.f32 %v1091, %v891
    %v1098 = vadd.f32 %v1096, %v1097
    %s1099 = scalar_lea.vmem %s1, 24
    %v1100 = vld [vmem:[%s1099] sm:$0xff]
    %1101 = vmatpush.msra.mxu0 %v143
    %1102 = vmatpush.msra.mxu0 %v139
    %1103 = vmatpush.msra.mxu0 %v135
    %1104 = vmatpush.msra.mxu0 %v131
    %1105 = vmatpush.msra.mxu0 %v127
    %1106 = vmatpush.msra.mxu0 %v123
    %1107 = vmatpush.msra.mxu0 %v119
    %1108 = vmatpush.msra.mxu0 %v115
    %1109 = vmatpush.msra.mxu0 %v111
    %1110 = vmatpush.msra.mxu0 %v107
    %1111 = vmatpush.msra.mxu0 %v103
    %1112 = vmatpush.msra.mxu0 %v99
    %1113 = vmatpush.msra.mxu0 %v95
    %1114 = vmatpush.msra.mxu0 %v91
    %1115 = vmatpush.msra.mxu0 %v87
    %1116 = vmatpush.msra.mxu0 %v83
    %1117 = vmatmul.f32.gmra.mxu0 %v1100
    %v1118 = vpop.f32.mrf.mxu0
    %v1119 = vadd.f32 %v472, %v1118
    %1120 = vdwg.mxu0
    %1121 = vmatpush.msra.mxu0 %v207
    %1122 = vmatpush.msra.mxu0 %v203
    %1123 = vmatpush.msra.mxu0 %v199
    %1124 = vmatpush.msra.mxu0 %v195
    %1125 = vmatpush.msra.mxu0 %v191
    %1126 = vmatpush.msra.mxu0 %v187
    %1127 = vmatpush.msra.mxu0 %v183
    %1128 = vmatpush.msra.mxu0 %v179
    %1129 = vmatpush.msra.mxu0 %v175
    %1130 = vmatpush.msra.mxu0 %v171
    %1131 = vmatpush.msra.mxu0 %v167
    %1132 = vmatpush.msra.mxu0 %v163
    %1133 = vmatpush.msra.mxu0 %v159
    %1134 = vmatpush.msra.mxu0 %v155
    %1135 = vmatpush.msra.mxu0 %v151
    %1136 = vmatpush.msra.mxu0 %v147
    %1137 = vmatmul.f32.gmra.mxu0 %v1098
    %v1138 = vpop.f32.mrf.mxu0
    %v1139 = vadd.f32 %v1119, %v1138
    %1140 = vdwg.mxu0
    %1141 = vmatpush.msra.mxu0 %v144
    %1142 = vmatpush.msra.mxu0 %v140
    %1143 = vmatpush.msra.mxu0 %v136
    %1144 = vmatpush.msra.mxu0 %v132
    %1145 = vmatpush.msra.mxu0 %v128
    %1146 = vmatpush.msra.mxu0 %v124
    %1147 = vmatpush.msra.mxu0 %v120
    %1148 = vmatpush.msra.mxu0 %v116
    %1149 = vmatpush.msra.mxu0 %v112
    %1150 = vmatpush.msra.mxu0 %v108
    %1151 = vmatpush.msra.mxu0 %v104
    %1152 = vmatpush.msra.mxu0 %v100
    %1153 = vmatpush.msra.mxu0 %v96
    %1154 = vmatpush.msra.mxu0 %v92
    %1155 = vmatpush.msra.mxu0 %v88
    %1156 = vmatpush.msra.mxu0 %v84
    %1157 = vmatmul.f32.gmra.mxu0 %v1100
    %v1158 = vpop.f32.mrf.mxu0
    %v1159 = vadd.f32 %v473, %v1158
    %1160 = vdwg.mxu0
    %1161 = vmatpush.msra.mxu0 %v208
    %1162 = vmatpush.msra.mxu0 %v204
    %1163 = vmatpush.msra.mxu0 %v200
    %1164 = vmatpush.msra.mxu0 %v196
    %1165 = vmatpush.msra.mxu0 %v192
    %1166 = vmatpush.msra.mxu0 %v188
    %1167 = vmatpush.msra.mxu0 %v184
    %1168 = vmatpush.msra.mxu0 %v180
    %1169 = vmatpush.msra.mxu0 %v176
    %1170 = vmatpush.msra.mxu0 %v172
    %1171 = vmatpush.msra.mxu0 %v168
    %1172 = vmatpush.msra.mxu0 %v164
    %1173 = vmatpush.msra.mxu0 %v160
    %1174 = vmatpush.msra.mxu0 %v156
    %1175 = vmatpush.msra.mxu0 %v152
    %1176 = vmatpush.msra.mxu0 %v148
    %1177 = vmatmul.f32.gmra.mxu0 %v1098
    %v1178 = vpop.f32.mrf.mxu0
    %v1179 = vadd.f32 %v1159, %v1178
    %1180 = vdwg.mxu0
    %1181 = vmatpush.msra.mxu0 %v145
    %1182 = vmatpush.msra.mxu0 %v141
    %1183 = vmatpush.msra.mxu0 %v137
    %1184 = vmatpush.msra.mxu0 %v133
    %1185 = vmatpush.msra.mxu0 %v129
    %1186 = vmatpush.msra.mxu0 %v125
    %1187 = vmatpush.msra.mxu0 %v121
    %1188 = vmatpush.msra.mxu0 %v117
    %1189 = vmatpush.msra.mxu0 %v113
    %1190 = vmatpush.msra.mxu0 %v109
    %1191 = vmatpush.msra.mxu0 %v105
    %1192 = vmatpush.msra.mxu0 %v101
    %1193 = vmatpush.msra.mxu0 %v97
    %1194 = vmatpush.msra.mxu0 %v93
    %1195 = vmatpush.msra.mxu0 %v89
    %1196 = vmatpush.msra.mxu0 %v85
    %1197 = vmatmul.f32.gmra.mxu0 %v1100
    %v1198 = vpop.f32.mrf.mxu0
    %v1199 = vadd.f32 %v474, %v1198
    %1200 = vdwg.mxu0
    %1201 = vmatpush.msra.mxu0 %v209
    %1202 = vmatpush.msra.mxu0 %v205
    %1203 = vmatpush.msra.mxu0 %v201
    %1204 = vmatpush.msra.mxu0 %v197
    %1205 = vmatpush.msra.mxu0 %v193
    %1206 = vmatpush.msra.mxu0 %v189
    %1207 = vmatpush.msra.mxu0 %v185
    %1208 = vmatpush.msra.mxu0 %v181
    %1209 = vmatpush.msra.mxu0 %v177
    %1210 = vmatpush.msra.mxu0 %v173
    %1211 = vmatpush.msra.mxu0 %v169
    %1212 = vmatpush.msra.mxu0 %v165
    %1213 = vmatpush.msra.mxu0 %v161
    %1214 = vmatpush.msra.mxu0 %v157
    %1215 = vmatpush.msra.mxu0 %v153
    %1216 = vmatpush.msra.mxu0 %v149
    %1217 = vmatmul.f32.gmra.mxu0 %v1098
    %v1218 = vpop.f32.mrf.mxu0
    %v1219 = vadd.f32 %v1199, %v1218
    %1220 = vdwg.mxu0
    %1221 = vmatpush.msra.mxu0 %v146
    %1222 = vmatpush.msra.mxu0 %v142
    %1223 = vmatpush.msra.mxu0 %v138
    %1224 = vmatpush.msra.mxu0 %v134
    %1225 = vmatpush.msra.mxu0 %v130
    %1226 = vmatpush.msra.mxu0 %v126
    %1227 = vmatpush.msra.mxu0 %v122
    %1228 = vmatpush.msra.mxu0 %v118
    %1229 = vmatpush.msra.mxu0 %v114
    %1230 = vmatpush.msra.mxu0 %v110
    %1231 = vmatpush.msra.mxu0 %v106
    %1232 = vmatpush.msra.mxu0 %v102
    %1233 = vmatpush.msra.mxu0 %v98
    %1234 = vmatpush.msra.mxu0 %v94
    %1235 = vmatpush.msra.mxu0 %v90
    %1236 = vmatpush.msra.mxu0 %v86
    %1237 = vmatmul.f32.gmra.mxu0 %v1100
    %v1238 = vpop.f32.mrf.mxu0
    %v1239 = vadd.f32 %v475, %v1238
    %1240 = vdwg.mxu0
    %1241 = vmatpush.msra.mxu0 %v210
    %1242 = vmatpush.msra.mxu0 %v206
    %1243 = vmatpush.msra.mxu0 %v202
    %1244 = vmatpush.msra.mxu0 %v198
    %1245 = vmatpush.msra.mxu0 %v194
    %1246 = vmatpush.msra.mxu0 %v190
    %1247 = vmatpush.msra.mxu0 %v186
    %1248 = vmatpush.msra.mxu0 %v182
    %1249 = vmatpush.msra.mxu0 %v178
    %1250 = vmatpush.msra.mxu0 %v174
    %1251 = vmatpush.msra.mxu0 %v170
    %1252 = vmatpush.msra.mxu0 %v166
    %1253 = vmatpush.msra.mxu0 %v162
    %1254 = vmatpush.msra.mxu0 %v158
    %1255 = vmatpush.msra.mxu0 %v154
    %1256 = vmatpush.msra.mxu0 %v150
    %1257 = vmatmul.f32.gmra.mxu0 %v1098
    %v1258 = vpop.f32.mrf.mxu0
    %v1259 = vadd.f32 %v1239, %v1258
    %1260 = vdwg.mxu0
    %v1261 = vxor.u32 %v1139, 2147483648
    %v1262 = vxor.u32 %v1179, 2147483648
    %v1263 = vmul.f32 %v1261, 1.442695
    %v1264 = vpow.pop %v1263
    %v1265 = vmul.f32 %v1262, 1.442695
    %v1266 = vpow.pop %v1265
    %v1267 = vadd.f32 %v1264, 1.0
    %v1268 = vadd.f32 %v1266, 1.0
    %v1269 = vrcp.pop %v1267
    %v1270 = vmul.f32 %v1267, %v1269
    %v1271 = vsub.f32 1.0, %v1270
    %v1272 = vmul.f32 %v1269, %v1271
    %v1273 = vadd.f32 %v1269, %v1272
    %vm1274 = vweird.f32 %v1267
    %vm1275 = vweird.f32 %v1269
    %vm1276 = vmor %vm1274, %vm1275
    %v1277 = vsel %vm1276, %v1269, %v1273
    %v1278 = vand.u32 2147483647, %v1267
    %vm1279 = vcmp.eq.f32.partialorder %v1278, 8.507059e+37
    %v1280 = vand.u32 %v1267, 2147483648
    %v1281 = vor.u32 1.1754944e-38, %v1280
    %v1282 = vsel %vm1279, %v1281, %v1277
    %v1283 = vmul.f32 1.0, %v1282
    %v1284 = vrcp.pop %v1268
    %v1285 = vmul.f32 %v1268, %v1284
    %v1286 = vsub.f32 1.0, %v1285
    %v1287 = vmul.f32 %v1284, %v1286
    %v1288 = vadd.f32 %v1284, %v1287
    %vm1289 = vweird.f32 %v1268
    %vm1290 = vweird.f32 %v1284
    %vm1291 = vmor %vm1289, %vm1290
    %v1292 = vsel %vm1291, %v1284, %v1288
    %v1293 = vand.u32 2147483647, %v1268
    %vm1294 = vcmp.eq.f32.partialorder %v1293, 8.507059e+37
    %v1295 = vand.u32 %v1268, 2147483648
    %v1296 = vor.u32 1.1754944e-38, %v1295
    %v1297 = vsel %vm1294, %v1296, %v1292
    %v1298 = vmul.f32 1.0, %v1297
    %v1299 = vmul.f32 %v1283, %v1259
    %v1300 = vadd.f32 %v1219, %v1299
    %v1301 = vtanh.pop %v1300
    %v1302 = vsub.f32 1.0, %v1298
    %v1303 = vmul.f32 %v1302, %v1301
    %v1304 = vmul.f32 %v1298, %v1098
    %v1305 = vadd.f32 %v1303, %v1304
    %s1306 = scalar_lea.vmem %s1, 32
    %v1307 = vld [vmem:[%s1306] sm:$0xff]
    %1308 = vmatpush.msra.mxu0 %v143
    %1309 = vmatpush.msra.mxu0 %v139
    %1310 = vmatpush.msra.mxu0 %v135
    %1311 = vmatpush.msra.mxu0 %v131
    %1312 = vmatpush.msra.mxu0 %v127
    %1313 = vmatpush.msra.mxu0 %v123
    %1314 = vmatpush.msra.mxu0 %v119
    %1315 = vmatpush.msra.mxu0 %v115
    %1316 = vmatpush.msra.mxu0 %v111
    %1317 = vmatpush.msra.mxu0 %v107
    %1318 = vmatpush.msra.mxu0 %v103
    %1319 = vmatpush.msra.mxu0 %v99
    %1320 = vmatpush.msra.mxu0 %v95
    %1321 = vmatpush.msra.mxu0 %v91
    %1322 = vmatpush.msra.mxu0 %v87
    %1323 = vmatpush.msra.mxu0 %v83
    %1324 = vmatmul.f32.gmra.mxu0 %v1307
    %v1325 = vpop.f32.mrf.mxu0
    %v1326 = vadd.f32 %v472, %v1325
    %1327 = vdwg.mxu0
    %1328 = vmatpush.msra.mxu0 %v207
    %1329 = vmatpush.msra.mxu0 %v203
    %1330 = vmatpush.msra.mxu0 %v199
    %1331 = vmatpush.msra.mxu0 %v195
    %1332 = vmatpush.msra.mxu0 %v191
    %1333 = vmatpush.msra.mxu0 %v187
    %1334 = vmatpush.msra.mxu0 %v183
    %1335 = vmatpush.msra.mxu0 %v179
    %1336 = vmatpush.msra.mxu0 %v175
    %1337 = vmatpush.msra.mxu0 %v171
    %1338 = vmatpush.msra.mxu0 %v167
    %1339 = vmatpush.msra.mxu0 %v163
    %1340 = vmatpush.msra.mxu0 %v159
    %1341 = vmatpush.msra.mxu0 %v155
    %1342 = vmatpush.msra.mxu0 %v151
    %1343 = vmatpush.msra.mxu0 %v147
    %1344 = vmatmul.f32.gmra.mxu0 %v1305
    %v1345 = vpop.f32.mrf.mxu0
    %v1346 = vadd.f32 %v1326, %v1345
    %1347 = vdwg.mxu0
    %1348 = vmatpush.msra.mxu0 %v144
    %1349 = vmatpush.msra.mxu0 %v140
    %1350 = vmatpush.msra.mxu0 %v136
    %1351 = vmatpush.msra.mxu0 %v132
    %1352 = vmatpush.msra.mxu0 %v128
    %1353 = vmatpush.msra.mxu0 %v124
    %1354 = vmatpush.msra.mxu0 %v120
    %1355 = vmatpush.msra.mxu0 %v116
    %1356 = vmatpush.msra.mxu0 %v112
    %1357 = vmatpush.msra.mxu0 %v108
    %1358 = vmatpush.msra.mxu0 %v104
    %1359 = vmatpush.msra.mxu0 %v100
    %1360 = vmatpush.msra.mxu0 %v96
    %1361 = vmatpush.msra.mxu0 %v92
    %1362 = vmatpush.msra.mxu0 %v88
    %1363 = vmatpush.msra.mxu0 %v84
    %1364 = vmatmul.f32.gmra.mxu0 %v1307
    %v1365 = vpop.f32.mrf.mxu0
    %v1366 = vadd.f32 %v473, %v1365
    %1367 = vdwg.mxu0
    %1368 = vmatpush.msra.mxu0 %v208
    %1369 = vmatpush.msra.mxu0 %v204
    %1370 = vmatpush.msra.mxu0 %v200
    %1371 = vmatpush.msra.mxu0 %v196
    %1372 = vmatpush.msra.mxu0 %v192
    %1373 = vmatpush.msra.mxu0 %v188
    %1374 = vmatpush.msra.mxu0 %v184
    %1375 = vmatpush.msra.mxu0 %v180
    %1376 = vmatpush.msra.mxu0 %v176
    %1377 = vmatpush.msra.mxu0 %v172
    %1378 = vmatpush.msra.mxu0 %v168
    %1379 = vmatpush.msra.mxu0 %v164
    %1380 = vmatpush.msra.mxu0 %v160
    %1381 = vmatpush.msra.mxu0 %v156
    %1382 = vmatpush.msra.mxu0 %v152
    %1383 = vmatpush.msra.mxu0 %v148
    %1384 = vmatmul.f32.gmra.mxu0 %v1305
    %v1385 = vpop.f32.mrf.mxu0
    %v1386 = vadd.f32 %v1366, %v1385
    %1387 = vdwg.mxu0
    %1388 = vmatpush.msra.mxu0 %v145
    %1389 = vmatpush.msra.mxu0 %v141
    %1390 = vmatpush.msra.mxu0 %v137
    %1391 = vmatpush.msra.mxu0 %v133
    %1392 = vmatpush.msra.mxu0 %v129
    %1393 = vmatpush.msra.mxu0 %v125
    %1394 = vmatpush.msra.mxu0 %v121
    %1395 = vmatpush.msra.mxu0 %v117
    %1396 = vmatpush.msra.mxu0 %v113
    %1397 = vmatpush.msra.mxu0 %v109
    %1398 = vmatpush.msra.mxu0 %v105
    %1399 = vmatpush.msra.mxu0 %v101
    %1400 = vmatpush.msra.mxu0 %v97
    %1401 = vmatpush.msra.mxu0 %v93
    %1402 = vmatpush.msra.mxu0 %v89
    %1403 = vmatpush.msra.mxu0 %v85
    %1404 = vmatmul.f32.gmra.mxu0 %v1307
    %v1405 = vpop.f32.mrf.mxu0
    %v1406 = vadd.f32 %v474, %v1405
    %1407 = vdwg.mxu0
    %1408 = vmatpush.msra.mxu0 %v209
    %1409 = vmatpush.msra.mxu0 %v205
    %1410 = vmatpush.msra.mxu0 %v201
    %1411 = vmatpush.msra.mxu0 %v197
    %1412 = vmatpush.msra.mxu0 %v193
    %1413 = vmatpush.msra.mxu0 %v189
    %1414 = vmatpush.msra.mxu0 %v185
    %1415 = vmatpush.msra.mxu0 %v181
    %1416 = vmatpush.msra.mxu0 %v177
    %1417 = vmatpush.msra.mxu0 %v173
    %1418 = vmatpush.msra.mxu0 %v169
    %1419 = vmatpush.msra.mxu0 %v165
    %1420 = vmatpush.msra.mxu0 %v161
    %1421 = vmatpush.msra.mxu0 %v157
    %1422 = vmatpush.msra.mxu0 %v153
    %1423 = vmatpush.msra.mxu0 %v149
    %1424 = vmatmul.f32.gmra.mxu0 %v1305
    %v1425 = vpop.f32.mrf.mxu0
    %v1426 = vadd.f32 %v1406, %v1425
    %1427 = vdwg.mxu0
    %1428 = vmatpush.msra.mxu0 %v146
    %1429 = vmatpush.msra.mxu0 %v142
    %1430 = vmatpush.msra.mxu0 %v138
    %1431 = vmatpush.msra.mxu0 %v134
    %1432 = vmatpush.msra.mxu0 %v130
    %1433 = vmatpush.msra.mxu0 %v126
    %1434 = vmatpush.msra.mxu0 %v122
    %1435 = vmatpush.msra.mxu0 %v118
    %1436 = vmatpush.msra.mxu0 %v114
    %1437 = vmatpush.msra.mxu0 %v110
    %1438 = vmatpush.msra.mxu0 %v106
    %1439 = vmatpush.msra.mxu0 %v102
    %1440 = vmatpush.msra.mxu0 %v98
    %1441 = vmatpush.msra.mxu0 %v94
    %1442 = vmatpush.msra.mxu0 %v90
    %1443 = vmatpush.msra.mxu0 %v86
    %1444 = vmatmul.f32.gmra.mxu0 %v1307
    %v1445 = vpop.f32.mrf.mxu0
    %v1446 = vadd.f32 %v475, %v1445
    %1447 = vdwg.mxu0
    %1448 = vmatpush.msra.mxu0 %v210
    %1449 = vmatpush.msra.mxu0 %v206
    %1450 = vmatpush.msra.mxu0 %v202
    %1451 = vmatpush.msra.mxu0 %v198
    %1452 = vmatpush.msra.mxu0 %v194
    %1453 = vmatpush.msra.mxu0 %v190
    %1454 = vmatpush.msra.mxu0 %v186
    %1455 = vmatpush.msra.mxu0 %v182
    %1456 = vmatpush.msra.mxu0 %v178
    %1457 = vmatpush.msra.mxu0 %v174
    %1458 = vmatpush.msra.mxu0 %v170
    %1459 = vmatpush.msra.mxu0 %v166
    %1460 = vmatpush.msra.mxu0 %v162
    %1461 = vmatpush.msra.mxu0 %v158
    %1462 = vmatpush.msra.mxu0 %v154
    %1463 = vmatpush.msra.mxu0 %v150
    %1464 = vmatmul.f32.gmra.mxu0 %v1305
    %v1465 = vpop.f32.mrf.mxu0
    %v1466 = vadd.f32 %v1446, %v1465
    %1467 = vdwg.mxu0
    %v1468 = vxor.u32 %v1346, 2147483648
    %v1469 = vxor.u32 %v1386, 2147483648
    %v1470 = vmul.f32 %v1468, 1.442695
    %v1471 = vpow.pop %v1470
    %v1472 = vmul.f32 %v1469, 1.442695
    %v1473 = vpow.pop %v1472
    %v1474 = vadd.f32 %v1471, 1.0
    %v1475 = vadd.f32 %v1473, 1.0
    %v1476 = vrcp.pop %v1474
    %v1477 = vmul.f32 %v1474, %v1476
    %v1478 = vsub.f32 1.0, %v1477
    %v1479 = vmul.f32 %v1476, %v1478
    %v1480 = vadd.f32 %v1476, %v1479
    %vm1481 = vweird.f32 %v1474
    %vm1482 = vweird.f32 %v1476
    %vm1483 = vmor %vm1481, %vm1482
    %v1484 = vsel %vm1483, %v1476, %v1480
    %v1485 = vand.u32 2147483647, %v1474
    %vm1486 = vcmp.eq.f32.partialorder %v1485, 8.507059e+37
    %v1487 = vand.u32 %v1474, 2147483648
    %v1488 = vor.u32 1.1754944e-38, %v1487
    %v1489 = vsel %vm1486, %v1488, %v1484
    %v1490 = vmul.f32 1.0, %v1489
    %v1491 = vrcp.pop %v1475
    %v1492 = vmul.f32 %v1475, %v1491
    %v1493 = vsub.f32 1.0, %v1492
    %v1494 = vmul.f32 %v1491, %v1493
    %v1495 = vadd.f32 %v1491, %v1494
    %vm1496 = vweird.f32 %v1475
    %vm1497 = vweird.f32 %v1491
    %vm1498 = vmor %vm1496, %vm1497
    %v1499 = vsel %vm1498, %v1491, %v1495
    %v1500 = vand.u32 2147483647, %v1475
    %vm1501 = vcmp.eq.f32.partialorder %v1500, 8.507059e+37
    %v1502 = vand.u32 %v1475, 2147483648
    %v1503 = vor.u32 1.1754944e-38, %v1502
    %v1504 = vsel %vm1501, %v1503, %v1499
    %v1505 = vmul.f32 1.0, %v1504
    %v1506 = vmul.f32 %v1490, %v1466
    %v1507 = vadd.f32 %v1426, %v1506
    %v1508 = vtanh.pop %v1507
    %v1509 = vsub.f32 1.0, %v1505
    %v1510 = vmul.f32 %v1509, %v1508
    %v1511 = vmul.f32 %v1505, %v1305
    %v1512 = vadd.f32 %v1510, %v1511
    %s1513 = scalar_lea.vmem %s1, 40
    %v1514 = vld [vmem:[%s1513] sm:$0xff]
    %1515 = vmatpush.msra.mxu0 %v143
    %1516 = vmatpush.msra.mxu0 %v139
    %1517 = vmatpush.msra.mxu0 %v135
    %1518 = vmatpush.msra.mxu0 %v131
    %1519 = vmatpush.msra.mxu0 %v127
    %1520 = vmatpush.msra.mxu0 %v123
    %1521 = vmatpush.msra.mxu0 %v119
    %1522 = vmatpush.msra.mxu0 %v115
    %1523 = vmatpush.msra.mxu0 %v111
    %1524 = vmatpush.msra.mxu0 %v107
    %1525 = vmatpush.msra.mxu0 %v103
    %1526 = vmatpush.msra.mxu0 %v99
    %1527 = vmatpush.msra.mxu0 %v95
    %1528 = vmatpush.msra.mxu0 %v91
    %1529 = vmatpush.msra.mxu0 %v87
    %1530 = vmatpush.msra.mxu0 %v83
    %1531 = vmatmul.f32.gmra.mxu0 %v1514
    %v1532 = vpop.f32.mrf.mxu0
    %v1533 = vadd.f32 %v472, %v1532
    %1534 = vdwg.mxu0
    %1535 = vmatpush.msra.mxu0 %v207
    %1536 = vmatpush.msra.mxu0 %v203
    %1537 = vmatpush.msra.mxu0 %v199
    %1538 = vmatpush.msra.mxu0 %v195
    %1539 = vmatpush.msra.mxu0 %v191
    %1540 = vmatpush.msra.mxu0 %v187
    %1541 = vmatpush.msra.mxu0 %v183
    %1542 = vmatpush.msra.mxu0 %v179
    %1543 = vmatpush.msra.mxu0 %v175
    %1544 = vmatpush.msra.mxu0 %v171
    %1545 = vmatpush.msra.mxu0 %v167
    %1546 = vmatpush.msra.mxu0 %v163
    %1547 = vmatpush.msra.mxu0 %v159
    %1548 = vmatpush.msra.mxu0 %v155
    %1549 = vmatpush.msra.mxu0 %v151
    %1550 = vmatpush.msra.mxu0 %v147
    %1551 = vmatmul.f32.gmra.mxu0 %v1512
    %v1552 = vpop.f32.mrf.mxu0
    %v1553 = vadd.f32 %v1533, %v1552
    %1554 = vdwg.mxu0
    %1555 = vmatpush.msra.mxu0 %v144
    %1556 = vmatpush.msra.mxu0 %v140
    %1557 = vmatpush.msra.mxu0 %v136
    %1558 = vmatpush.msra.mxu0 %v132
    %1559 = vmatpush.msra.mxu0 %v128
    %1560 = vmatpush.msra.mxu0 %v124
    %1561 = vmatpush.msra.mxu0 %v120
    %1562 = vmatpush.msra.mxu0 %v116
    %1563 = vmatpush.msra.mxu0 %v112
    %1564 = vmatpush.msra.mxu0 %v108
    %1565 = vmatpush.msra.mxu0 %v104
    %1566 = vmatpush.msra.mxu0 %v100
    %1567 = vmatpush.msra.mxu0 %v96
    %1568 = vmatpush.msra.mxu0 %v92
    %1569 = vmatpush.msra.mxu0 %v88
    %1570 = vmatpush.msra.mxu0 %v84
    %1571 = vmatmul.f32.gmra.mxu0 %v1514
    %v1572 = vpop.f32.mrf.mxu0
    %v1573 = vadd.f32 %v473, %v1572
    %1574 = vdwg.mxu0
    %1575 = vmatpush.msra.mxu0 %v208
    %1576 = vmatpush.msra.mxu0 %v204
    %1577 = vmatpush.msra.mxu0 %v200
    %1578 = vmatpush.msra.mxu0 %v196
    %1579 = vmatpush.msra.mxu0 %v192
    %1580 = vmatpush.msra.mxu0 %v188
    %1581 = vmatpush.msra.mxu0 %v184
    %1582 = vmatpush.msra.mxu0 %v180
    %1583 = vmatpush.msra.mxu0 %v176
    %1584 = vmatpush.msra.mxu0 %v172
    %1585 = vmatpush.msra.mxu0 %v168
    %1586 = vmatpush.msra.mxu0 %v164
    %1587 = vmatpush.msra.mxu0 %v160
    %1588 = vmatpush.msra.mxu0 %v156
    %1589 = vmatpush.msra.mxu0 %v152
    %1590 = vmatpush.msra.mxu0 %v148
    %1591 = vmatmul.f32.gmra.mxu0 %v1512
    %v1592 = vpop.f32.mrf.mxu0
    %v1593 = vadd.f32 %v1573, %v1592
    %1594 = vdwg.mxu0
    %1595 = vmatpush.msra.mxu0 %v145
    %1596 = vmatpush.msra.mxu0 %v141
    %1597 = vmatpush.msra.mxu0 %v137
    %1598 = vmatpush.msra.mxu0 %v133
    %1599 = vmatpush.msra.mxu0 %v129
    %1600 = vmatpush.msra.mxu0 %v125
    %1601 = vmatpush.msra.mxu0 %v121
    %1602 = vmatpush.msra.mxu0 %v117
    %1603 = vmatpush.msra.mxu0 %v113
    %1604 = vmatpush.msra.mxu0 %v109
    %1605 = vmatpush.msra.mxu0 %v105
    %1606 = vmatpush.msra.mxu0 %v101
    %1607 = vmatpush.msra.mxu0 %v97
    %1608 = vmatpush.msra.mxu0 %v93
    %1609 = vmatpush.msra.mxu0 %v89
    %1610 = vmatpush.msra.mxu0 %v85
    %1611 = vmatmul.f32.gmra.mxu0 %v1514
    %v1612 = vpop.f32.mrf.mxu0
    %v1613 = vadd.f32 %v474, %v1612
    %1614 = vdwg.mxu0
    %1615 = vmatpush.msra.mxu0 %v209
    %1616 = vmatpush.msra.mxu0 %v205
    %1617 = vmatpush.msra.mxu0 %v201
    %1618 = vmatpush.msra.mxu0 %v197
    %1619 = vmatpush.msra.mxu0 %v193
    %1620 = vmatpush.msra.mxu0 %v189
    %1621 = vmatpush.msra.mxu0 %v185
    %1622 = vmatpush.msra.mxu0 %v181
    %1623 = vmatpush.msra.mxu0 %v177
    %1624 = vmatpush.msra.mxu0 %v173
    %1625 = vmatpush.msra.mxu0 %v169
    %1626 = vmatpush.msra.mxu0 %v165
    %1627 = vmatpush.msra.mxu0 %v161
    %1628 = vmatpush.msra.mxu0 %v157
    %1629 = vmatpush.msra.mxu0 %v153
    %1630 = vmatpush.msra.mxu0 %v149
    %1631 = vmatmul.f32.gmra.mxu0 %v1512
    %v1632 = vpop.f32.mrf.mxu0
    %v1633 = vadd.f32 %v1613, %v1632
    %1634 = vdwg.mxu0
    %1635 = vmatpush.msra.mxu0 %v146
    %1636 = vmatpush.msra.mxu0 %v142
    %1637 = vmatpush.msra.mxu0 %v138
    %1638 = vmatpush.msra.mxu0 %v134
    %1639 = vmatpush.msra.mxu0 %v130
    %1640 = vmatpush.msra.mxu0 %v126
    %1641 = vmatpush.msra.mxu0 %v122
    %1642 = vmatpush.msra.mxu0 %v118
    %1643 = vmatpush.msra.mxu0 %v114
    %1644 = vmatpush.msra.mxu0 %v110
    %1645 = vmatpush.msra.mxu0 %v106
    %1646 = vmatpush.msra.mxu0 %v102
    %1647 = vmatpush.msra.mxu0 %v98
    %1648 = vmatpush.msra.mxu0 %v94
    %1649 = vmatpush.msra.mxu0 %v90
    %1650 = vmatpush.msra.mxu0 %v86
    %1651 = vmatmul.f32.gmra.mxu0 %v1514
    %v1652 = vpop.f32.mrf.mxu0
    %v1653 = vadd.f32 %v475, %v1652
    %1654 = vdwg.mxu0
    %1655 = vmatpush.msra.mxu0 %v210
    %1656 = vmatpush.msra.mxu0 %v206
    %1657 = vmatpush.msra.mxu0 %v202
    %1658 = vmatpush.msra.mxu0 %v198
    %1659 = vmatpush.msra.mxu0 %v194
    %1660 = vmatpush.msra.mxu0 %v190
    %1661 = vmatpush.msra.mxu0 %v186
    %1662 = vmatpush.msra.mxu0 %v182
    %1663 = vmatpush.msra.mxu0 %v178
    %1664 = vmatpush.msra.mxu0 %v174
    %1665 = vmatpush.msra.mxu0 %v170
    %1666 = vmatpush.msra.mxu0 %v166
    %1667 = vmatpush.msra.mxu0 %v162
    %1668 = vmatpush.msra.mxu0 %v158
    %1669 = vmatpush.msra.mxu0 %v154
    %1670 = vmatpush.msra.mxu0 %v150
    %1671 = vmatmul.f32.gmra.mxu0 %v1512
    %v1672 = vpop.f32.mrf.mxu0
    %v1673 = vadd.f32 %v1653, %v1672
    %1674 = vdwg.mxu0
    %v1675 = vxor.u32 %v1553, 2147483648
    %v1676 = vxor.u32 %v1593, 2147483648
    %v1677 = vmul.f32 %v1675, 1.442695
    %v1678 = vpow.pop %v1677
    %v1679 = vmul.f32 %v1676, 1.442695
    %v1680 = vpow.pop %v1679
    %v1681 = vadd.f32 %v1678, 1.0
    %v1682 = vadd.f32 %v1680, 1.0
    %v1683 = vrcp.pop %v1681
    %v1684 = vmul.f32 %v1681, %v1683
    %v1685 = vsub.f32 1.0, %v1684
    %v1686 = vmul.f32 %v1683, %v1685
    %v1687 = vadd.f32 %v1683, %v1686
    %vm1688 = vweird.f32 %v1681
    %vm1689 = vweird.f32 %v1683
    %vm1690 = vmor %vm1688, %vm1689
    %v1691 = vsel %vm1690, %v1683, %v1687
    %v1692 = vand.u32 2147483647, %v1681
    %vm1693 = vcmp.eq.f32.partialorder %v1692, 8.507059e+37
    %v1694 = vand.u32 %v1681, 2147483648
    %v1695 = vor.u32 1.1754944e-38, %v1694
    %v1696 = vsel %vm1693, %v1695, %v1691
    %v1697 = vmul.f32 1.0, %v1696
    %v1698 = vrcp.pop %v1682
    %v1699 = vmul.f32 %v1682, %v1698
    %v1700 = vsub.f32 1.0, %v1699
    %v1701 = vmul.f32 %v1698, %v1700
    %v1702 = vadd.f32 %v1698, %v1701
    %vm1703 = vweird.f32 %v1682
    %vm1704 = vweird.f32 %v1698
    %vm1705 = vmor %vm1703, %vm1704
    %v1706 = vsel %vm1705, %v1698, %v1702
    %v1707 = vand.u32 2147483647, %v1682
    %vm1708 = vcmp.eq.f32.partialorder %v1707, 8.507059e+37
    %v1709 = vand.u32 %v1682, 2147483648
    %v1710 = vor.u32 1.1754944e-38, %v1709
    %v1711 = vsel %vm1708, %v1710, %v1706
    %v1712 = vmul.f32 1.0, %v1711
    %v1713 = vmul.f32 %v1697, %v1673
    %v1714 = vadd.f32 %v1633, %v1713
    %v1715 = vtanh.pop %v1714
    %v1716 = vsub.f32 1.0, %v1712
    %v1717 = vmul.f32 %v1716, %v1715
    %v1718 = vmul.f32 %v1712, %v1512
    %v1719 = vadd.f32 %v1717, %v1718
    %s1720 = scalar_lea.vmem %s1, 48
    %v1721 = vld [vmem:[%s1720] sm:$0xff]
    %1722 = vmatpush.msra.mxu0 %v143
    %1723 = vmatpush.msra.mxu0 %v139
    %1724 = vmatpush.msra.mxu0 %v135
    %1725 = vmatpush.msra.mxu0 %v131
    %1726 = vmatpush.msra.mxu0 %v127
    %1727 = vmatpush.msra.mxu0 %v123
    %1728 = vmatpush.msra.mxu0 %v119
    %1729 = vmatpush.msra.mxu0 %v115
    %1730 = vmatpush.msra.mxu0 %v111
    %1731 = vmatpush.msra.mxu0 %v107
    %1732 = vmatpush.msra.mxu0 %v103
    %1733 = vmatpush.msra.mxu0 %v99
    %1734 = vmatpush.msra.mxu0 %v95
    %1735 = vmatpush.msra.mxu0 %v91
    %1736 = vmatpush.msra.mxu0 %v87
    %1737 = vmatpush.msra.mxu0 %v83
    %1738 = vmatmul.f32.gmra.mxu0 %v1721
    %v1739 = vpop.f32.mrf.mxu0
    %v1740 = vadd.f32 %v472, %v1739
    %1741 = vdwg.mxu0
    %1742 = vmatpush.msra.mxu0 %v207
    %1743 = vmatpush.msra.mxu0 %v203
    %1744 = vmatpush.msra.mxu0 %v199
    %1745 = vmatpush.msra.mxu0 %v195
    %1746 = vmatpush.msra.mxu0 %v191
    %1747 = vmatpush.msra.mxu0 %v187
    %1748 = vmatpush.msra.mxu0 %v183
    %1749 = vmatpush.msra.mxu0 %v179
    %1750 = vmatpush.msra.mxu0 %v175
    %1751 = vmatpush.msra.mxu0 %v171
    %1752 = vmatpush.msra.mxu0 %v167
    %1753 = vmatpush.msra.mxu0 %v163
    %1754 = vmatpush.msra.mxu0 %v159
    %1755 = vmatpush.msra.mxu0 %v155
    %1756 = vmatpush.msra.mxu0 %v151
    %1757 = vmatpush.msra.mxu0 %v147
    %1758 = vmatmul.f32.gmra.mxu0 %v1719
    %v1759 = vpop.f32.mrf.mxu0
    %v1760 = vadd.f32 %v1740, %v1759
    %1761 = vdwg.mxu0
    %1762 = vmatpush.msra.mxu0 %v144
    %1763 = vmatpush.msra.mxu0 %v140
    %1764 = vmatpush.msra.mxu0 %v136
    %1765 = vmatpush.msra.mxu0 %v132
    %1766 = vmatpush.msra.mxu0 %v128
    %1767 = vmatpush.msra.mxu0 %v124
    %1768 = vmatpush.msra.mxu0 %v120
    %1769 = vmatpush.msra.mxu0 %v116
    %1770 = vmatpush.msra.mxu0 %v112
    %1771 = vmatpush.msra.mxu0 %v108
    %1772 = vmatpush.msra.mxu0 %v104
    %1773 = vmatpush.msra.mxu0 %v100
    %1774 = vmatpush.msra.mxu0 %v96
    %1775 = vmatpush.msra.mxu0 %v92
    %1776 = vmatpush.msra.mxu0 %v88
    %1777 = vmatpush.msra.mxu0 %v84
    %1778 = vmatmul.f32.gmra.mxu0 %v1721
    %v1779 = vpop.f32.mrf.mxu0
    %v1780 = vadd.f32 %v473, %v1779
    %1781 = vdwg.mxu0
    %1782 = vmatpush.msra.mxu0 %v208
    %1783 = vmatpush.msra.mxu0 %v204
    %1784 = vmatpush.msra.mxu0 %v200
    %1785 = vmatpush.msra.mxu0 %v196
    %1786 = vmatpush.msra.mxu0 %v192
    %1787 = vmatpush.msra.mxu0 %v188
    %1788 = vmatpush.msra.mxu0 %v184
    %1789 = vmatpush.msra.mxu0 %v180
    %1790 = vmatpush.msra.mxu0 %v176
    %1791 = vmatpush.msra.mxu0 %v172
    %1792 = vmatpush.msra.mxu0 %v168
    %1793 = vmatpush.msra.mxu0 %v164
    %1794 = vmatpush.msra.mxu0 %v160
    %1795 = vmatpush.msra.mxu0 %v156
    %1796 = vmatpush.msra.mxu0 %v152
    %1797 = vmatpush.msra.mxu0 %v148
    %1798 = vmatmul.f32.gmra.mxu0 %v1719
    %v1799 = vpop.f32.mrf.mxu0
    %v1800 = vadd.f32 %v1780, %v1799
    %1801 = vdwg.mxu0
    %1802 = vmatpush.msra.mxu0 %v145
    %1803 = vmatpush.msra.mxu0 %v141
    %1804 = vmatpush.msra.mxu0 %v137
    %1805 = vmatpush.msra.mxu0 %v133
    %1806 = vmatpush.msra.mxu0 %v129
    %1807 = vmatpush.msra.mxu0 %v125
    %1808 = vmatpush.msra.mxu0 %v121
    %1809 = vmatpush.msra.mxu0 %v117
    %1810 = vmatpush.msra.mxu0 %v113
    %1811 = vmatpush.msra.mxu0 %v109
    %1812 = vmatpush.msra.mxu0 %v105
    %1813 = vmatpush.msra.mxu0 %v101
    %1814 = vmatpush.msra.mxu0 %v97
    %1815 = vmatpush.msra.mxu0 %v93
    %1816 = vmatpush.msra.mxu0 %v89
    %1817 = vmatpush.msra.mxu0 %v85
    %1818 = vmatmul.f32.gmra.mxu0 %v1721
    %v1819 = vpop.f32.mrf.mxu0
    %v1820 = vadd.f32 %v474, %v1819
    %1821 = vdwg.mxu0
    %1822 = vmatpush.msra.mxu0 %v209
    %1823 = vmatpush.msra.mxu0 %v205
    %1824 = vmatpush.msra.mxu0 %v201
    %1825 = vmatpush.msra.mxu0 %v197
    %1826 = vmatpush.msra.mxu0 %v193
    %1827 = vmatpush.msra.mxu0 %v189
    %1828 = vmatpush.msra.mxu0 %v185
    %1829 = vmatpush.msra.mxu0 %v181
    %1830 = vmatpush.msra.mxu0 %v177
    %1831 = vmatpush.msra.mxu0 %v173
    %1832 = vmatpush.msra.mxu0 %v169
    %1833 = vmatpush.msra.mxu0 %v165
    %1834 = vmatpush.msra.mxu0 %v161
    %1835 = vmatpush.msra.mxu0 %v157
    %1836 = vmatpush.msra.mxu0 %v153
    %1837 = vmatpush.msra.mxu0 %v149
    %1838 = vmatmul.f32.gmra.mxu0 %v1719
    %v1839 = vpop.f32.mrf.mxu0
    %v1840 = vadd.f32 %v1820, %v1839
    %1841 = vdwg.mxu0
    %1842 = vmatpush.msra.mxu0 %v146
    %1843 = vmatpush.msra.mxu0 %v142
    %1844 = vmatpush.msra.mxu0 %v138
    %1845 = vmatpush.msra.mxu0 %v134
    %1846 = vmatpush.msra.mxu0 %v130
    %1847 = vmatpush.msra.mxu0 %v126
    %1848 = vmatpush.msra.mxu0 %v122
    %1849 = vmatpush.msra.mxu0 %v118
    %1850 = vmatpush.msra.mxu0 %v114
    %1851 = vmatpush.msra.mxu0 %v110
    %1852 = vmatpush.msra.mxu0 %v106
    %1853 = vmatpush.msra.mxu0 %v102
    %1854 = vmatpush.msra.mxu0 %v98
    %1855 = vmatpush.msra.mxu0 %v94
    %1856 = vmatpush.msra.mxu0 %v90
    %1857 = vmatpush.msra.mxu0 %v86
    %1858 = vmatmul.f32.gmra.mxu0 %v1721
    %v1859 = vpop.f32.mrf.mxu0
    %v1860 = vadd.f32 %v475, %v1859
    %1861 = vdwg.mxu0
    %1862 = vmatpush.msra.mxu0 %v210
    %1863 = vmatpush.msra.mxu0 %v206
    %1864 = vmatpush.msra.mxu0 %v202
    %1865 = vmatpush.msra.mxu0 %v198
    %1866 = vmatpush.msra.mxu0 %v194
    %1867 = vmatpush.msra.mxu0 %v190
    %1868 = vmatpush.msra.mxu0 %v186
    %1869 = vmatpush.msra.mxu0 %v182
    %1870 = vmatpush.msra.mxu0 %v178
    %1871 = vmatpush.msra.mxu0 %v174
    %1872 = vmatpush.msra.mxu0 %v170
    %1873 = vmatpush.msra.mxu0 %v166
    %1874 = vmatpush.msra.mxu0 %v162
    %1875 = vmatpush.msra.mxu0 %v158
    %1876 = vmatpush.msra.mxu0 %v154
    %1877 = vmatpush.msra.mxu0 %v150
    %1878 = vmatmul.f32.gmra.mxu0 %v1719
    %v1879 = vpop.f32.mrf.mxu0
    %v1880 = vadd.f32 %v1860, %v1879
    %1881 = vdwg.mxu0
    %v1882 = vxor.u32 %v1760, 2147483648
    %v1883 = vxor.u32 %v1800, 2147483648
    %v1884 = vmul.f32 %v1882, 1.442695
    %v1885 = vpow.pop %v1884
    %v1886 = vmul.f32 %v1883, 1.442695
    %v1887 = vpow.pop %v1886
    %v1888 = vadd.f32 %v1885, 1.0
    %v1889 = vadd.f32 %v1887, 1.0
    %v1890 = vrcp.pop %v1888
    %v1891 = vmul.f32 %v1888, %v1890
    %v1892 = vsub.f32 1.0, %v1891
    %v1893 = vmul.f32 %v1890, %v1892
    %v1894 = vadd.f32 %v1890, %v1893
    %vm1895 = vweird.f32 %v1888
    %vm1896 = vweird.f32 %v1890
    %vm1897 = vmor %vm1895, %vm1896
    %v1898 = vsel %vm1897, %v1890, %v1894
    %v1899 = vand.u32 2147483647, %v1888
    %vm1900 = vcmp.eq.f32.partialorder %v1899, 8.507059e+37
    %v1901 = vand.u32 %v1888, 2147483648
    %v1902 = vor.u32 1.1754944e-38, %v1901
    %v1903 = vsel %vm1900, %v1902, %v1898
    %v1904 = vmul.f32 1.0, %v1903
    %v1905 = vrcp.pop %v1889
    %v1906 = vmul.f32 %v1889, %v1905
    %v1907 = vsub.f32 1.0, %v1906
    %v1908 = vmul.f32 %v1905, %v1907
    %v1909 = vadd.f32 %v1905, %v1908
    %vm1910 = vweird.f32 %v1889
    %vm1911 = vweird.f32 %v1905
    %vm1912 = vmor %vm1910, %vm1911
    %v1913 = vsel %vm1912, %v1905, %v1909
    %v1914 = vand.u32 2147483647, %v1889
    %vm1915 = vcmp.eq.f32.partialorder %v1914, 8.507059e+37
    %v1916 = vand.u32 %v1889, 2147483648
    %v1917 = vor.u32 1.1754944e-38, %v1916
    %v1918 = vsel %vm1915, %v1917, %v1913
    %v1919 = vmul.f32 1.0, %v1918
    %v1920 = vmul.f32 %v1904, %v1880
    %v1921 = vadd.f32 %v1840, %v1920
    %v1922 = vtanh.pop %v1921
    %v1923 = vsub.f32 1.0, %v1919
    %v1924 = vmul.f32 %v1923, %v1922
    %v1925 = vmul.f32 %v1919, %v1719
    %v1926 = vadd.f32 %v1924, %v1925
    %1927 = vst [vmem:[%s11] sm:$0xff] 0.0
    %v1928 = vlaneseq
    %v1929 = vand.u32 %v1928, 127
    %v1930 = vcvt.s32.f32 %v1929
    %v1931 = vld [vmem:[%s2] sm:$0xff]
    %v1933 = vperm.slane %v404, 0
    %v1934 = vperm.slane %v404, 1
    %v1935 = vperm.slane %v404, 2
    %v1936 = vperm.slane %v404, 3
    %1941 = vmatpush.msra.mxu0 %v272
    %1942 = vmatpush.msra.mxu0 %v268
    %1943 = vmatpush.msra.mxu0 %v264
    %1944 = vmatpush.msra.mxu0 %v260
    %1945 = vmatpush.msra.mxu0 %v256
    %1946 = vmatpush.msra.mxu0 %v252
    %1947 = vmatpush.msra.mxu0 %v248
    %1948 = vmatpush.msra.mxu0 %v244
    %1949 = vmatpush.msra.mxu0 %v240
    %1950 = vmatpush.msra.mxu0 %v236
    %1951 = vmatpush.msra.mxu0 %v232
    %1952 = vmatpush.msra.mxu0 %v228
    %1953 = vmatpush.msra.mxu0 %v224
    %1954 = vmatpush.msra.mxu0 %v220
    %1955 = vmatpush.msra.mxu0 %v216
    %1956 = vmatpush.msra.mxu0 %v212
    %1957 = vmatmul.f32.gmra.mxu0 %v1931
    %v1958 = vpop.f32.mrf.mxu0
    %v1959 = vadd.f32 %v1933, %v1958
    %1960 = vdwg.mxu0
    %1961 = vmatpush.msra.mxu0 %v336
    %1962 = vmatpush.msra.mxu0 %v332
    %1963 = vmatpush.msra.mxu0 %v328
    %1964 = vmatpush.msra.mxu0 %v324
    %1965 = vmatpush.msra.mxu0 %v320
    %1966 = vmatpush.msra.mxu0 %v316
    %1967 = vmatpush.msra.mxu0 %v312
    %1968 = vmatpush.msra.mxu0 %v308
    %1969 = vmatpush.msra.mxu0 %v304
    %1970 = vmatpush.msra.mxu0 %v300
    %1971 = vmatpush.msra.mxu0 %v296
    %1972 = vmatpush.msra.mxu0 %v292
    %1973 = vmatpush.msra.mxu0 %v288
    %1974 = vmatpush.msra.mxu0 %v284
    %1975 = vmatpush.msra.mxu0 %v280
    %1976 = vmatpush.msra.mxu0 %v276
    %1977 = vmatmul.f32.gmra.mxu0 %v1926
    %v1978 = vpop.f32.mrf.mxu0
    %v1979 = vadd.f32 %v1959, %v1978
    %1980 = vdwg.mxu0
    %1981 = vmatpush.msra.mxu0 %v400
    %1982 = vmatpush.msra.mxu0 %v396
    %1983 = vmatpush.msra.mxu0 %v392
    %1984 = vmatpush.msra.mxu0 %v388
    %1985 = vmatpush.msra.mxu0 %v384
    %1986 = vmatpush.msra.mxu0 %v380
    %1987 = vmatpush.msra.mxu0 %v376
    %1988 = vmatpush.msra.mxu0 %v372
    %1989 = vmatpush.msra.mxu0 %v368
    %1990 = vmatpush.msra.mxu0 %v364
    %1991 = vmatpush.msra.mxu0 %v360
    %1992 = vmatpush.msra.mxu0 %v356
    %1993 = vmatpush.msra.mxu0 %v352
    %1994 = vmatpush.msra.mxu0 %v348
    %1995 = vmatpush.msra.mxu0 %v344
    %1996 = vmatpush.msra.mxu0 %v340
    %1997 = vmatmul.f32.gmra.mxu0 %v1926
    %v1998 = vpop.f32.mrf.mxu0
    %v1999 = vadd.f32 %v1979, %v1998
    %2000 = vdwg.mxu0
    %2001 = vmatpush.msra.mxu0 %v273
    %2002 = vmatpush.msra.mxu0 %v269
    %2003 = vmatpush.msra.mxu0 %v265
    %2004 = vmatpush.msra.mxu0 %v261
    %2005 = vmatpush.msra.mxu0 %v257
    %2006 = vmatpush.msra.mxu0 %v253
    %2007 = vmatpush.msra.mxu0 %v249
    %2008 = vmatpush.msra.mxu0 %v245
    %2009 = vmatpush.msra.mxu0 %v241
    %2010 = vmatpush.msra.mxu0 %v237
    %2011 = vmatpush.msra.mxu0 %v233
    %2012 = vmatpush.msra.mxu0 %v229
    %2013 = vmatpush.msra.mxu0 %v225
    %2014 = vmatpush.msra.mxu0 %v221
    %2015 = vmatpush.msra.mxu0 %v217
    %2016 = vmatpush.msra.mxu0 %v213
    %2017 = vmatmul.f32.gmra.mxu0 %v1931
    %v2018 = vpop.f32.mrf.mxu0
    %v2019 = vadd.f32 %v1934, %v2018
    %2020 = vdwg.mxu0
    %2021 = vmatpush.msra.mxu0 %v337
    %2022 = vmatpush.msra.mxu0 %v333
    %2023 = vmatpush.msra.mxu0 %v329
    %2024 = vmatpush.msra.mxu0 %v325
    %2025 = vmatpush.msra.mxu0 %v321
    %2026 = vmatpush.msra.mxu0 %v317
    %2027 = vmatpush.msra.mxu0 %v313
    %2028 = vmatpush.msra.mxu0 %v309
    %2029 = vmatpush.msra.mxu0 %v305
    %2030 = vmatpush.msra.mxu0 %v301
    %2031 = vmatpush.msra.mxu0 %v297
    %2032 = vmatpush.msra.mxu0 %v293
    %2033 = vmatpush.msra.mxu0 %v289
    %2034 = vmatpush.msra.mxu0 %v285
    %2035 = vmatpush.msra.mxu0 %v281
    %2036 = vmatpush.msra.mxu0 %v277
    %2037 = vmatmul.f32.gmra.mxu0 %v1926
    %v2038 = vpop.f32.mrf.mxu0
    %v2039 = vadd.f32 %v2019, %v2038
    %2040 = vdwg.mxu0
    %2041 = vmatpush.msra.mxu0 %v401
    %2042 = vmatpush.msra.mxu0 %v397
    %2043 = vmatpush.msra.mxu0 %v393
    %2044 = vmatpush.msra.mxu0 %v389
    %2045 = vmatpush.msra.mxu0 %v385
    %2046 = vmatpush.msra.mxu0 %v381
    %2047 = vmatpush.msra.mxu0 %v377
    %2048 = vmatpush.msra.mxu0 %v373
    %2049 = vmatpush.msra.mxu0 %v369
    %2050 = vmatpush.msra.mxu0 %v365
    %2051 = vmatpush.msra.mxu0 %v361
    %2052 = vmatpush.msra.mxu0 %v357
    %2053 = vmatpush.msra.mxu0 %v353
    %2054 = vmatpush.msra.mxu0 %v349
    %2055 = vmatpush.msra.mxu0 %v345
    %2056 = vmatpush.msra.mxu0 %v341
    %2057 = vmatmul.f32.gmra.mxu0 %v1926
    %v2058 = vpop.f32.mrf.mxu0
    %v2059 = vadd.f32 %v2039, %v2058
    %2060 = vdwg.mxu0
    %2061 = vmatpush.msra.mxu0 %v274
    %2062 = vmatpush.msra.mxu0 %v270
    %2063 = vmatpush.msra.mxu0 %v266
    %2064 = vmatpush.msra.mxu0 %v262
    %2065 = vmatpush.msra.mxu0 %v258
    %2066 = vmatpush.msra.mxu0 %v254
    %2067 = vmatpush.msra.mxu0 %v250
    %2068 = vmatpush.msra.mxu0 %v246
    %2069 = vmatpush.msra.mxu0 %v242
    %2070 = vmatpush.msra.mxu0 %v238
    %2071 = vmatpush.msra.mxu0 %v234
    %2072 = vmatpush.msra.mxu0 %v230
    %2073 = vmatpush.msra.mxu0 %v226
    %2074 = vmatpush.msra.mxu0 %v222
    %2075 = vmatpush.msra.mxu0 %v218
    %2076 = vmatpush.msra.mxu0 %v214
    %2077 = vmatmul.f32.gmra.mxu0 %v1931
    %v2078 = vpop.f32.mrf.mxu0
    %v2079 = vadd.f32 %v1935, %v2078
    %2080 = vdwg.mxu0
    %2081 = vmatpush.msra.mxu0 %v338
    %2082 = vmatpush.msra.mxu0 %v334
    %2083 = vmatpush.msra.mxu0 %v330
    %2084 = vmatpush.msra.mxu0 %v326
    %2085 = vmatpush.msra.mxu0 %v322
    %2086 = vmatpush.msra.mxu0 %v318
    %2087 = vmatpush.msra.mxu0 %v314
    %2088 = vmatpush.msra.mxu0 %v310
    %2089 = vmatpush.msra.mxu0 %v306
    %2090 = vmatpush.msra.mxu0 %v302
    %2091 = vmatpush.msra.mxu0 %v298
    %2092 = vmatpush.msra.mxu0 %v294
    %2093 = vmatpush.msra.mxu0 %v290
    %2094 = vmatpush.msra.mxu0 %v286
    %2095 = vmatpush.msra.mxu0 %v282
    %2096 = vmatpush.msra.mxu0 %v278
    %2097 = vmatmul.f32.gmra.mxu0 %v1926
    %v2098 = vpop.f32.mrf.mxu0
    %v2099 = vadd.f32 %v2079, %v2098
    %2100 = vdwg.mxu0
    %2101 = vmatpush.msra.mxu0 %v402
    %2102 = vmatpush.msra.mxu0 %v398
    %2103 = vmatpush.msra.mxu0 %v394
    %2104 = vmatpush.msra.mxu0 %v390
    %2105 = vmatpush.msra.mxu0 %v386
    %2106 = vmatpush.msra.mxu0 %v382
    %2107 = vmatpush.msra.mxu0 %v378
    %2108 = vmatpush.msra.mxu0 %v374
    %2109 = vmatpush.msra.mxu0 %v370
    %2110 = vmatpush.msra.mxu0 %v366
    %2111 = vmatpush.msra.mxu0 %v362
    %2112 = vmatpush.msra.mxu0 %v358
    %2113 = vmatpush.msra.mxu0 %v354
    %2114 = vmatpush.msra.mxu0 %v350
    %2115 = vmatpush.msra.mxu0 %v346
    %2116 = vmatpush.msra.mxu0 %v342
    %2117 = vmatmul.f32.gmra.mxu0 %v1926
    %v2118 = vpop.f32.mrf.mxu0
    %v2119 = vadd.f32 %v2099, %v2118
    %2120 = vdwg.mxu0
    %2121 = vmatpush.msra.mxu0 %v275
    %2122 = vmatpush.msra.mxu0 %v271
    %2123 = vmatpush.msra.mxu0 %v267
    %2124 = vmatpush.msra.mxu0 %v263
    %2125 = vmatpush.msra.mxu0 %v259
    %2126 = vmatpush.msra.mxu0 %v255
    %2127 = vmatpush.msra.mxu0 %v251
    %2128 = vmatpush.msra.mxu0 %v247
    %2129 = vmatpush.msra.mxu0 %v243
    %2130 = vmatpush.msra.mxu0 %v239
    %2131 = vmatpush.msra.mxu0 %v235
    %2132 = vmatpush.msra.mxu0 %v231
    %2133 = vmatpush.msra.mxu0 %v227
    %2134 = vmatpush.msra.mxu0 %v223
    %2135 = vmatpush.msra.mxu0 %v219
    %2136 = vmatpush.msra.mxu0 %v215
    %2137 = vmatmul.f32.gmra.mxu0 %v1931
    %v2138 = vpop.f32.mrf.mxu0
    %v2139 = vadd.f32 %v1936, %v2138
    %2140 = vdwg.mxu0
    %2141 = vmatpush.msra.mxu0 %v339
    %2142 = vmatpush.msra.mxu0 %v335
    %2143 = vmatpush.msra.mxu0 %v331
    %2144 = vmatpush.msra.mxu0 %v327
    %2145 = vmatpush.msra.mxu0 %v323
    %2146 = vmatpush.msra.mxu0 %v319
    %2147 = vmatpush.msra.mxu0 %v315
    %2148 = vmatpush.msra.mxu0 %v311
    %2149 = vmatpush.msra.mxu0 %v307
    %2150 = vmatpush.msra.mxu0 %v303
    %2151 = vmatpush.msra.mxu0 %v299
    %2152 = vmatpush.msra.mxu0 %v295
    %2153 = vmatpush.msra.mxu0 %v291
    %2154 = vmatpush.msra.mxu0 %v287
    %2155 = vmatpush.msra.mxu0 %v283
    %2156 = vmatpush.msra.mxu0 %v279
    %2157 = vmatmul.f32.gmra.mxu0 %v1926
    %v2158 = vpop.f32.mrf.mxu0
    %v2159 = vadd.f32 %v2139, %v2158
    %2160 = vdwg.mxu0
    %2161 = vmatpush.msra.mxu0 %v403
    %2162 = vmatpush.msra.mxu0 %v399
    %2163 = vmatpush.msra.mxu0 %v395
    %2164 = vmatpush.msra.mxu0 %v391
    %2165 = vmatpush.msra.mxu0 %v387
    %2166 = vmatpush.msra.mxu0 %v383
    %2167 = vmatpush.msra.mxu0 %v379
    %2168 = vmatpush.msra.mxu0 %v375
    %2169 = vmatpush.msra.mxu0 %v371
    %2170 = vmatpush.msra.mxu0 %v367
    %2171 = vmatpush.msra.mxu0 %v363
    %2172 = vmatpush.msra.mxu0 %v359
    %2173 = vmatpush.msra.mxu0 %v355
    %2174 = vmatpush.msra.mxu0 %v351
    %2175 = vmatpush.msra.mxu0 %v347
    %2176 = vmatpush.msra.mxu0 %v343
    %2177 = vmatmul.f32.gmra.mxu0 %v1926
    %v2178 = vpop.f32.mrf.mxu0
    %v2179 = vadd.f32 %v2159, %v2178
    %2180 = vdwg.mxu0
    %v2181 = vxor.u32 %v1999, 2147483648
    %v2182 = vxor.u32 %v2059, 2147483648
    %v2183 = vmul.f32 %v2181, 1.442695
    %v2184 = vpow.pop %v2183
    %v2185 = vmul.f32 %v2182, 1.442695
    %v2186 = vpow.pop %v2185
    %v2187 = vadd.f32 %v2184, 1.0
    %v2188 = vadd.f32 %v2186, 1.0
    %v2189 = vrcp.pop %v2187
    %v2190 = vmul.f32 %v2187, %v2189
    %v2191 = vsub.f32 1.0, %v2190
    %v2192 = vmul.f32 %v2189, %v2191
    %v2193 = vadd.f32 %v2189, %v2192
    %vm2194 = vweird.f32 %v2187
    %vm2195 = vweird.f32 %v2189
    %vm2196 = vmor %vm2194, %vm2195
    %v2197 = vsel %vm2196, %v2189, %v2193
    %v2198 = vand.u32 2147483647, %v2187
    %vm2199 = vcmp.eq.f32.partialorder %v2198, 8.507059e+37
    %v2200 = vand.u32 %v2187, 2147483648
    %v2201 = vor.u32 1.1754944e-38, %v2200
    %v2202 = vsel %vm2199, %v2201, %v2197
    %v2203 = vmul.f32 1.0, %v2202
    %v2204 = vrcp.pop %v2188
    %v2205 = vmul.f32 %v2188, %v2204
    %v2206 = vsub.f32 1.0, %v2205
    %v2207 = vmul.f32 %v2204, %v2206
    %v2208 = vadd.f32 %v2204, %v2207
    %vm2209 = vweird.f32 %v2188
    %vm2210 = vweird.f32 %v2204
    %vm2211 = vmor %vm2209, %vm2210
    %v2212 = vsel %vm2211, %v2204, %v2208
    %v2213 = vand.u32 2147483647, %v2188
    %vm2214 = vcmp.eq.f32.partialorder %v2213, 8.507059e+37
    %v2215 = vand.u32 %v2188, 2147483648
    %v2216 = vor.u32 1.1754944e-38, %v2215
    %v2217 = vsel %vm2214, %v2216, %v2212
    %v2218 = vmul.f32 1.0, %v2217
    %v2219 = vmul.f32 %v2203, %v2179
    %v2220 = vadd.f32 %v2119, %v2219
    %v2221 = vtanh.pop %v2220
    %v2222 = vsub.f32 1.0, %v2218
    %v2223 = vmul.f32 %v2222, %v2221
    %v2224 = vmul.f32 %v2218, %v1926
    %v2225 = vadd.f32 %v2223, %v2224
    %v2227 = vperm.slane %v453, 0
    %2229 = vmatpush.msra.mxu0 %v420
    %2230 = vmatpush.msra.mxu0 %v419
    %2231 = vmatpush.msra.mxu0 %v418
    %2232 = vmatpush.msra.mxu0 %v417
    %2233 = vmatpush.msra.mxu0 %v416
    %2234 = vmatpush.msra.mxu0 %v415
    %2235 = vmatpush.msra.mxu0 %v414
    %2236 = vmatpush.msra.mxu0 %v413
    %2237 = vmatpush.msra.mxu0 %v412
    %2238 = vmatpush.msra.mxu0 %v411
    %2239 = vmatpush.msra.mxu0 %v410
    %2240 = vmatpush.msra.mxu0 %v409
    %2241 = vmatpush.msra.mxu0 %v408
    %2242 = vmatpush.msra.mxu0 %v407
    %2243 = vmatpush.msra.mxu0 %v406
    %2244 = vmatpush.msra.mxu0 %v405
    %2245 = vmatmul.f32.gmra.mxu0 %v1931
    %v2246 = vpop.f32.mrf.mxu0
    %v2247 = vadd.f32 %v2227, %v2246
    %2248 = vdwg.mxu0
    %2249 = vmatpush.msra.mxu0 %v436
    %2250 = vmatpush.msra.mxu0 %v435
    %2251 = vmatpush.msra.mxu0 %v434
    %2252 = vmatpush.msra.mxu0 %v433
    %2253 = vmatpush.msra.mxu0 %v432
    %2254 = vmatpush.msra.mxu0 %v431
    %2255 = vmatpush.msra.mxu0 %v430
    %2256 = vmatpush.msra.mxu0 %v429
    %2257 = vmatpush.msra.mxu0 %v428
    %2258 = vmatpush.msra.mxu0 %v427
    %2259 = vmatpush.msra.mxu0 %v426
    %2260 = vmatpush.msra.mxu0 %v425
    %2261 = vmatpush.msra.mxu0 %v424
    %2262 = vmatpush.msra.mxu0 %v423
    %2263 = vmatpush.msra.mxu0 %v422
    %2264 = vmatpush.msra.mxu0 %v421
    %2265 = vmatmul.f32.gmra.mxu0 %v1926
    %v2266 = vpop.f32.mrf.mxu0
    %v2267 = vadd.f32 %v2247, %v2266
    %2268 = vdwg.mxu0
    %2269 = vmatpush.msra.mxu0 %v452
    %2270 = vmatpush.msra.mxu0 %v451
    %2271 = vmatpush.msra.mxu0 %v450
    %2272 = vmatpush.msra.mxu0 %v449
    %2273 = vmatpush.msra.mxu0 %v448
    %2274 = vmatpush.msra.mxu0 %v447
    %2275 = vmatpush.msra.mxu0 %v446
    %2276 = vmatpush.msra.mxu0 %v445
    %2277 = vmatpush.msra.mxu0 %v444
    %2278 = vmatpush.msra.mxu0 %v443
    %2279 = vmatpush.msra.mxu0 %v442
    %2280 = vmatpush.msra.mxu0 %v441
    %2281 = vmatpush.msra.mxu0 %v440
    %2282 = vmatpush.msra.mxu0 %v439
    %2283 = vmatpush.msra.mxu0 %v438
    %2284 = vmatpush.msra.mxu0 %v437
    %2285 = vmatmul.f32.gmra.mxu0 %v2225
    %v2286 = vpop.f32.mrf.mxu0
    %v2287 = vadd.f32 %v2267, %v2286
    %2288 = vdwg.mxu0
    %s2289 = scalar_lea.vmem %s11, 8
    %2290 = vst [vmem:[%s2289] sm:$0xff] %v2287
    %2291 = vmax.xlane.f32.xlu0 %v2287
    %v2292 = vpop.xlane.xlu0 %2291
    %vm2293 = vcmp.ge.f32.partialorder %v2287, %v2292
    %v2294 = vsel %vm2293, %v1930, 128.0
    %2295 = vmin.xlane.f32.xlu0 %v2294
    %v2296 = vpop.xlane.xlu0 %2295
    %vm2297 = vcmp.eq.f32.partialorder %v1930, %v2296
    %v2298 = vsel %vm2297, 1, 0
    %v2299 = vcvt.s32.f32 %v2298
    %2300 = vmatpush.msra.mxu0 %v469
    %2301 = vmatpush.msra.mxu0 %v468
    %2302 = vmatpush.msra.mxu0 %v467
    %2303 = vmatpush.msra.mxu0 %v466
    %2304 = vmatpush.msra.mxu0 %v465
    %2305 = vmatpush.msra.mxu0 %v464
    %2306 = vmatpush.msra.mxu0 %v463
    %2307 = vmatpush.msra.mxu0 %v462
    %2308 = vmatpush.msra.mxu0 %v461
    %2309 = vmatpush.msra.mxu0 %v460
    %2310 = vmatpush.msra.mxu0 %v459
    %2311 = vmatpush.msra.mxu0 %v458
    %2312 = vmatpush.msra.mxu0 %v457
    %2313 = vmatpush.msra.mxu0 %v456
    %2314 = vmatpush.msra.mxu0 %v455
    %2315 = vmatpush.msra.mxu0 %v454
    %2316 = vmatmul.f32.gmra.mxu0 %v2299
    %v2317 = vpop.f32.mrf.mxu0
    %v2318 = vadd.f32 0.0, %v2317
    %2319 = vdwg.mxu0
    %s2320 = sld [smem:[#allocation2]]
    %s2321 = scvt.s32.f32 %s2320
    %v2322 = vld [vmem:[%s3] sm:$0xff]
    %v2323 = vstv %s2321
    %v2324 = vmul.f32 %v2323, %v2322
    %s2325 = ssub.f32 1.0, %s2321
    %v2326 = vstv %s2325
    %v2327 = vmul.f32 %v2326, %v2318
    %v2328 = vadd.f32 %v2324, %v2327
    %2329 = vmatpush.msra.mxu0 %v272
    %2330 = vmatpush.msra.mxu0 %v268
    %2331 = vmatpush.msra.mxu0 %v264
    %2332 = vmatpush.msra.mxu0 %v260
    %2333 = vmatpush.msra.mxu0 %v256
    %2334 = vmatpush.msra.mxu0 %v252
    %2335 = vmatpush.msra.mxu0 %v248
    %2336 = vmatpush.msra.mxu0 %v244
    %2337 = vmatpush.msra.mxu0 %v240
    %2338 = vmatpush.msra.mxu0 %v236
    %2339 = vmatpush.msra.mxu0 %v232
    %2340 = vmatpush.msra.mxu0 %v228
    %2341 = vmatpush.msra.mxu0 %v224
    %2342 = vmatpush.msra.mxu0 %v220
    %2343 = vmatpush.msra.mxu0 %v216
    %2344 = vmatpush.msra.mxu0 %v212
    %2345 = vmatmul.f32.gmra.mxu0 %v2328
    %v2346 = vpop.f32.mrf.mxu0
    %v2347 = vadd.f32 %v1933, %v2346
    %2348 = vdwg.mxu0
    %2349 = vmatpush.msra.mxu0 %v336
    %2350 = vmatpush.msra.mxu0 %v332
    %2351 = vmatpush.msra.mxu0 %v328
    %2352 = vmatpush.msra.mxu0 %v324
    %2353 = vmatpush.msra.mxu0 %v320
    %2354 = vmatpush.msra.mxu0 %v316
    %2355 = vmatpush.msra.mxu0 %v312
    %2356 = vmatpush.msra.mxu0 %v308
    %2357 = vmatpush.msra.mxu0 %v304
    %2358 = vmatpush.msra.mxu0 %v300
    %2359 = vmatpush.msra.mxu0 %v296
    %2360 = vmatpush.msra.mxu0 %v292
    %2361 = vmatpush.msra.mxu0 %v288
    %2362 = vmatpush.msra.mxu0 %v284
    %2363 = vmatpush.msra.mxu0 %v280
    %2364 = vmatpush.msra.mxu0 %v276
    %2365 = vmatmul.f32.gmra.mxu0 %v1926
    %v2366 = vpop.f32.mrf.mxu0
    %v2367 = vadd.f32 %v2347, %v2366
    %2368 = vdwg.mxu0
    %2369 = vmatpush.msra.mxu0 %v400
    %2370 = vmatpush.msra.mxu0 %v396
    %2371 = vmatpush.msra.mxu0 %v392
    %2372 = vmatpush.msra.mxu0 %v388
    %2373 = vmatpush.msra.mxu0 %v384
    %2374 = vmatpush.msra.mxu0 %v380
    %2375 = vmatpush.msra.mxu0 %v376
    %2376 = vmatpush.msra.mxu0 %v372
    %2377 = vmatpush.msra.mxu0 %v368
    %2378 = vmatpush.msra.mxu0 %v364
    %2379 = vmatpush.msra.mxu0 %v360
    %2380 = vmatpush.msra.mxu0 %v356
    %2381 = vmatpush.msra.mxu0 %v352
    %2382 = vmatpush.msra.mxu0 %v348
    %2383 = vmatpush.msra.mxu0 %v344
    %2384 = vmatpush.msra.mxu0 %v340
    %2385 = vmatmul.f32.gmra.mxu0 %v2225
    %v2386 = vpop.f32.mrf.mxu0
    %v2387 = vadd.f32 %v2367, %v2386
    %2388 = vdwg.mxu0
    %2389 = vmatpush.msra.mxu0 %v273
    %2390 = vmatpush.msra.mxu0 %v269
    %2391 = vmatpush.msra.mxu0 %v265
    %2392 = vmatpush.msra.mxu0 %v261
    %2393 = vmatpush.msra.mxu0 %v257
    %2394 = vmatpush.msra.mxu0 %v253
    %2395 = vmatpush.msra.mxu0 %v249
    %2396 = vmatpush.msra.mxu0 %v245
    %2397 = vmatpush.msra.mxu0 %v241
    %2398 = vmatpush.msra.mxu0 %v237
    %2399 = vmatpush.msra.mxu0 %v233
    %2400 = vmatpush.msra.mxu0 %v229
    %2401 = vmatpush.msra.mxu0 %v225
    %2402 = vmatpush.msra.mxu0 %v221
    %2403 = vmatpush.msra.mxu0 %v217
    %2404 = vmatpush.msra.mxu0 %v213
    %2405 = vmatmul.f32.gmra.mxu0 %v2328
    %v2406 = vpop.f32.mrf.mxu0
    %v2407 = vadd.f32 %v1934, %v2406
    %2408 = vdwg.mxu0
    %2409 = vmatpush.msra.mxu0 %v337
    %2410 = vmatpush.msra.mxu0 %v333
    %2411 = vmatpush.msra.mxu0 %v329
    %2412 = vmatpush.msra.mxu0 %v325
    %2413 = vmatpush.msra.mxu0 %v321
    %2414 = vmatpush.msra.mxu0 %v317
    %2415 = vmatpush.msra.mxu0 %v313
    %2416 = vmatpush.msra.mxu0 %v309
    %2417 = vmatpush.msra.mxu0 %v305
    %2418 = vmatpush.msra.mxu0 %v301
    %2419 = vmatpush.msra.mxu0 %v297
    %2420 = vmatpush.msra.mxu0 %v293
    %2421 = vmatpush.msra.mxu0 %v289
    %2422 = vmatpush.msra.mxu0 %v285
    %2423 = vmatpush.msra.mxu0 %v281
    %2424 = vmatpush.msra.mxu0 %v277
    %2425 = vmatmul.f32.gmra.mxu0 %v1926
    %v2426 = vpop.f32.mrf.mxu0
    %v2427 = vadd.f32 %v2407, %v2426
    %2428 = vdwg.mxu0
    %2429 = vmatpush.msra.mxu0 %v401
    %2430 = vmatpush.msra.mxu0 %v397
    %2431 = vmatpush.msra.mxu0 %v393
    %2432 = vmatpush.msra.mxu0 %v389
    %2433 = vmatpush.msra.mxu0 %v385
    %2434 = vmatpush.msra.mxu0 %v381
    %2435 = vmatpush.msra.mxu0 %v377
    %2436 = vmatpush.msra.mxu0 %v373
    %2437 = vmatpush.msra.mxu0 %v369
    %2438 = vmatpush.msra.mxu0 %v365
    %2439 = vmatpush.msra.mxu0 %v361
    %2440 = vmatpush.msra.mxu0 %v357
    %2441 = vmatpush.msra.mxu0 %v353
    %2442 = vmatpush.msra.mxu0 %v349
    %2443 = vmatpush.msra.mxu0 %v345
    %2444 = vmatpush.msra.mxu0 %v341
    %2445 = vmatmul.f32.gmra.mxu0 %v2225
    %v2446 = vpop.f32.mrf.mxu0
    %v2447 = vadd.f32 %v2427, %v2446
    %2448 = vdwg.mxu0
    %2449 = vmatpush.msra.mxu0 %v274
    %2450 = vmatpush.msra.mxu0 %v270
    %2451 = vmatpush.msra.mxu0 %v266
    %2452 = vmatpush.msra.mxu0 %v262
    %2453 = vmatpush.msra.mxu0 %v258
    %2454 = vmatpush.msra.mxu0 %v254
    %2455 = vmatpush.msra.mxu0 %v250
    %2456 = vmatpush.msra.mxu0 %v246
    %2457 = vmatpush.msra.mxu0 %v242
    %2458 = vmatpush.msra.mxu0 %v238
    %2459 = vmatpush.msra.mxu0 %v234
    %2460 = vmatpush.msra.mxu0 %v230
    %2461 = vmatpush.msra.mxu0 %v226
    %2462 = vmatpush.msra.mxu0 %v222
    %2463 = vmatpush.msra.mxu0 %v218
    %2464 = vmatpush.msra.mxu0 %v214
    %2465 = vmatmul.f32.gmra.mxu0 %v2328
    %v2466 = vpop.f32.mrf.mxu0
    %v2467 = vadd.f32 %v1935, %v2466
    %2468 = vdwg.mxu0
    %2469 = vmatpush.msra.mxu0 %v338
    %2470 = vmatpush.msra.mxu0 %v334
    %2471 = vmatpush.msra.mxu0 %v330
    %2472 = vmatpush.msra.mxu0 %v326
    %2473 = vmatpush.msra.mxu0 %v322
    %2474 = vmatpush.msra.mxu0 %v318
    %2475 = vmatpush.msra.mxu0 %v314
    %2476 = vmatpush.msra.mxu0 %v310
    %2477 = vmatpush.msra.mxu0 %v306
    %2478 = vmatpush.msra.mxu0 %v302
    %2479 = vmatpush.msra.mxu0 %v298
    %2480 = vmatpush.msra.mxu0 %v294
    %2481 = vmatpush.msra.mxu0 %v290
    %2482 = vmatpush.msra.mxu0 %v286
    %2483 = vmatpush.msra.mxu0 %v282
    %2484 = vmatpush.msra.mxu0 %v278
    %2485 = vmatmul.f32.gmra.mxu0 %v1926
    %v2486 = vpop.f32.mrf.mxu0
    %v2487 = vadd.f32 %v2467, %v2486
    %2488 = vdwg.mxu0
    %2489 = vmatpush.msra.mxu0 %v402
    %2490 = vmatpush.msra.mxu0 %v398
    %2491 = vmatpush.msra.mxu0 %v394
    %2492 = vmatpush.msra.mxu0 %v390
    %2493 = vmatpush.msra.mxu0 %v386
    %2494 = vmatpush.msra.mxu0 %v382
    %2495 = vmatpush.msra.mxu0 %v378
    %2496 = vmatpush.msra.mxu0 %v374
    %2497 = vmatpush.msra.mxu0 %v370
    %2498 = vmatpush.msra.mxu0 %v366
    %2499 = vmatpush.msra.mxu0 %v362
    %2500 = vmatpush.msra.mxu0 %v358
    %2501 = vmatpush.msra.mxu0 %v354
    %2502 = vmatpush.msra.mxu0 %v350
    %2503 = vmatpush.msra.mxu0 %v346
    %2504 = vmatpush.msra.mxu0 %v342
    %2505 = vmatmul.f32.gmra.mxu0 %v2225
    %v2506 = vpop.f32.mrf.mxu0
    %v2507 = vadd.f32 %v2487, %v2506
    %2508 = vdwg.mxu0
    %2509 = vmatpush.msra.mxu0 %v275
    %2510 = vmatpush.msra.mxu0 %v271
    %2511 = vmatpush.msra.mxu0 %v267
    %2512 = vmatpush.msra.mxu0 %v263
    %2513 = vmatpush.msra.mxu0 %v259
    %2514 = vmatpush.msra.mxu0 %v255
    %2515 = vmatpush.msra.mxu0 %v251
    %2516 = vmatpush.msra.mxu0 %v247
    %2517 = vmatpush.msra.mxu0 %v243
    %2518 = vmatpush.msra.mxu0 %v239
    %2519 = vmatpush.msra.mxu0 %v235
    %2520 = vmatpush.msra.mxu0 %v231
    %2521 = vmatpush.msra.mxu0 %v227
    %2522 = vmatpush.msra.mxu0 %v223
    %2523 = vmatpush.msra.mxu0 %v219
    %2524 = vmatpush.msra.mxu0 %v215
    %2525 = vmatmul.f32.gmra.mxu0 %v2328
    %v2526 = vpop.f32.mrf.mxu0
    %v2527 = vadd.f32 %v1936, %v2526
    %2528 = vdwg.mxu0
    %2529 = vmatpush.msra.mxu0 %v339
    %2530 = vmatpush.msra.mxu0 %v335
    %2531 = vmatpush.msra.mxu0 %v331
    %2532 = vmatpush.msra.mxu0 %v327
    %2533 = vmatpush.msra.mxu0 %v323
    %2534 = vmatpush.msra.mxu0 %v319
    %2535 = vmatpush.msra.mxu0 %v315
    %2536 = vmatpush.msra.mxu0 %v311
    %2537 = vmatpush.msra.mxu0 %v307
    %2538 = vmatpush.msra.mxu0 %v303
    %2539 = vmatpush.msra.mxu0 %v299
    %2540 = vmatpush.msra.mxu0 %v295
    %2541 = vmatpush.msra.mxu0 %v291
    %2542 = vmatpush.msra.mxu0 %v287
    %2543 = vmatpush.msra.mxu0 %v283
    %2544 = vmatpush.msra.mxu0 %v279
    %2545 = vmatmul.f32.gmra.mxu0 %v1926
    %v2546 = vpop.f32.mrf.mxu0
    %v2547 = vadd.f32 %v2527, %v2546
    %2548 = vdwg.mxu0
    %2549 = vmatpush.msra.mxu0 %v403
    %2550 = vmatpush.msra.mxu0 %v399
    %2551 = vmatpush.msra.mxu0 %v395
    %2552 = vmatpush.msra.mxu0 %v391
    %2553 = vmatpush.msra.mxu0 %v387
    %2554 = vmatpush.msra.mxu0 %v383
    %2555 = vmatpush.msra.mxu0 %v379
    %2556 = vmatpush.msra.mxu0 %v375
    %2557 = vmatpush.msra.mxu0 %v371
    %2558 = vmatpush.msra.mxu0 %v367
    %2559 = vmatpush.msra.mxu0 %v363
    %2560 = vmatpush.msra.mxu0 %v359
    %2561 = vmatpush.msra.mxu0 %v355
    %2562 = vmatpush.msra.mxu0 %v351
    %2563 = vmatpush.msra.mxu0 %v347
    %2564 = vmatpush.msra.mxu0 %v343
    %2565 = vmatmul.f32.gmra.mxu0 %v2225
    %v2566 = vpop.f32.mrf.mxu0
    %v2567 = vadd.f32 %v2547, %v2566
    %2568 = vdwg.mxu0
    %v2569 = vxor.u32 %v2387, 2147483648
    %v2570 = vxor.u32 %v2447, 2147483648
    %v2571 = vmul.f32 %v2569, 1.442695
    %v2572 = vpow.pop %v2571
    %v2573 = vmul.f32 %v2570, 1.442695
    %v2574 = vpow.pop %v2573
    %v2575 = vadd.f32 %v2572, 1.0
    %v2576 = vadd.f32 %v2574, 1.0
    %v2577 = vrcp.pop %v2575
    %v2578 = vmul.f32 %v2575, %v2577
    %v2579 = vsub.f32 1.0, %v2578
    %v2580 = vmul.f32 %v2577, %v2579
    %v2581 = vadd.f32 %v2577, %v2580
    %vm2582 = vweird.f32 %v2575
    %vm2583 = vweird.f32 %v2577
    %vm2584 = vmor %vm2582, %vm2583
    %v2585 = vsel %vm2584, %v2577, %v2581
    %v2586 = vand.u32 2147483647, %v2575
    %vm2587 = vcmp.eq.f32.partialorder %v2586, 8.507059e+37
    %v2588 = vand.u32 %v2575, 2147483648
    %v2589 = vor.u32 1.1754944e-38, %v2588
    %v2590 = vsel %vm2587, %v2589, %v2585
    %v2591 = vmul.f32 1.0, %v2590
    %v2592 = vrcp.pop %v2576
    %v2593 = vmul.f32 %v2576, %v2592
    %v2594 = vsub.f32 1.0, %v2593
    %v2595 = vmul.f32 %v2592, %v2594
    %v2596 = vadd.f32 %v2592, %v2595
    %vm2597 = vweird.f32 %v2576
    %vm2598 = vweird.f32 %v2592
    %vm2599 = vmor %vm2597, %vm2598
    %v2600 = vsel %vm2599, %v2592, %v2596
    %v2601 = vand.u32 2147483647, %v2576
    %vm2602 = vcmp.eq.f32.partialorder %v2601, 8.507059e+37
    %v2603 = vand.u32 %v2576, 2147483648
    %v2604 = vor.u32 1.1754944e-38, %v2603
    %v2605 = vsel %vm2602, %v2604, %v2600
    %v2606 = vmul.f32 1.0, %v2605
    %v2607 = vmul.f32 %v2591, %v2567
    %v2608 = vadd.f32 %v2507, %v2607
    %v2609 = vtanh.pop %v2608
    %v2610 = vsub.f32 1.0, %v2606
    %v2611 = vmul.f32 %v2610, %v2609
    %v2612 = vmul.f32 %v2606, %v2225
    %v2613 = vadd.f32 %v2611, %v2612
    %2614 = vmatpush.msra.mxu0 %v420
    %2615 = vmatpush.msra.mxu0 %v419
    %2616 = vmatpush.msra.mxu0 %v418
    %2617 = vmatpush.msra.mxu0 %v417
    %2618 = vmatpush.msra.mxu0 %v416
    %2619 = vmatpush.msra.mxu0 %v415
    %2620 = vmatpush.msra.mxu0 %v414
    %2621 = vmatpush.msra.mxu0 %v413
    %2622 = vmatpush.msra.mxu0 %v412
    %2623 = vmatpush.msra.mxu0 %v411
    %2624 = vmatpush.msra.mxu0 %v410
    %2625 = vmatpush.msra.mxu0 %v409
    %2626 = vmatpush.msra.mxu0 %v408
    %2627 = vmatpush.msra.mxu0 %v407
    %2628 = vmatpush.msra.mxu0 %v406
    %2629 = vmatpush.msra.mxu0 %v405
    %2630 = vmatmul.f32.gmra.mxu0 %v2328
    %v2631 = vpop.f32.mrf.mxu0
    %v2632 = vadd.f32 %v2227, %v2631
    %2633 = vdwg.mxu0
    %2634 = vmatpush.msra.mxu0 %v436
    %2635 = vmatpush.msra.mxu0 %v435
    %2636 = vmatpush.msra.mxu0 %v434
    %2637 = vmatpush.msra.mxu0 %v433
    %2638 = vmatpush.msra.mxu0 %v432
    %2639 = vmatpush.msra.mxu0 %v431
    %2640 = vmatpush.msra.mxu0 %v430
    %2641 = vmatpush.msra.mxu0 %v429
    %2642 = vmatpush.msra.mxu0 %v428
    %2643 = vmatpush.msra.mxu0 %v427
    %2644 = vmatpush.msra.mxu0 %v426
    %2645 = vmatpush.msra.mxu0 %v425
    %2646 = vmatpush.msra.mxu0 %v424
    %2647 = vmatpush.msra.mxu0 %v423
    %2648 = vmatpush.msra.mxu0 %v422
    %2649 = vmatpush.msra.mxu0 %v421
    %2650 = vmatmul.f32.gmra.mxu0 %v1926
    %v2651 = vpop.f32.mrf.mxu0
    %v2652 = vadd.f32 %v2632, %v2651
    %2653 = vdwg.mxu0
    %2654 = vmatpush.msra.mxu0 %v452
    %2655 = vmatpush.msra.mxu0 %v451
    %2656 = vmatpush.msra.mxu0 %v450
    %2657 = vmatpush.msra.mxu0 %v449
    %2658 = vmatpush.msra.mxu0 %v448
    %2659 = vmatpush.msra.mxu0 %v447
    %2660 = vmatpush.msra.mxu0 %v446
    %2661 = vmatpush.msra.mxu0 %v445
    %2662 = vmatpush.msra.mxu0 %v444
    %2663 = vmatpush.msra.mxu0 %v443
    %2664 = vmatpush.msra.mxu0 %v442
    %2665 = vmatpush.msra.mxu0 %v441
    %2666 = vmatpush.msra.mxu0 %v440
    %2667 = vmatpush.msra.mxu0 %v439
    %2668 = vmatpush.msra.mxu0 %v438
    %2669 = vmatpush.msra.mxu0 %v437
    %2670 = vmatmul.f32.gmra.mxu0 %v2613
    %v2671 = vpop.f32.mrf.mxu0
    %v2672 = vadd.f32 %v2652, %v2671
    %2673 = vdwg.mxu0
    %s2674 = scalar_lea.vmem %s11, 16
    %2675 = vst [vmem:[%s2674] sm:$0xff] %v2672
    %2676 = vmax.xlane.f32.xlu0 %v2672
    %v2677 = vpop.xlane.xlu0 %2676
    %vm2678 = vcmp.ge.f32.partialorder %v2672, %v2677
    %v2679 = vsel %vm2678, %v1930, 128.0
    %2680 = vmin.xlane.f32.xlu0 %v2679
    %v2681 = vpop.xlane.xlu0 %2680
    %vm2682 = vcmp.eq.f32.partialorder %v1930, %v2681
    %v2683 = vsel %vm2682, 1, 0
    %v2684 = vcvt.s32.f32 %v2683
    %2685 = vmatpush.msra.mxu0 %v469
    %2686 = vmatpush.msra.mxu0 %v468
    %2687 = vmatpush.msra.mxu0 %v467
    %2688 = vmatpush.msra.mxu0 %v466
    %2689 = vmatpush.msra.mxu0 %v465
    %2690 = vmatpush.msra.mxu0 %v464
    %2691 = vmatpush.msra.mxu0 %v463
    %2692 = vmatpush.msra.mxu0 %v462
    %2693 = vmatpush.msra.mxu0 %v461
    %2694 = vmatpush.msra.mxu0 %v460
    %2695 = vmatpush.msra.mxu0 %v459
    %2696 = vmatpush.msra.mxu0 %v458
    %2697 = vmatpush.msra.mxu0 %v457
    %2698 = vmatpush.msra.mxu0 %v456
    %2699 = vmatpush.msra.mxu0 %v455
    %2700 = vmatpush.msra.mxu0 %v454
    %2701 = vmatmul.f32.gmra.mxu0 %v2684
    %v2702 = vpop.f32.mrf.mxu0
    %v2703 = vadd.f32 0.0, %v2702
    %2704 = vdwg.mxu0
    %s2705 = sld [smem:[#allocation2 + $0x1]]
    %s2706 = scvt.s32.f32 %s2705
    %s2707 = scalar_lea.vmem %s3, 8
    %v2708 = vld [vmem:[%s2707] sm:$0xff]
    %v2709 = vstv %s2706
    %v2710 = vmul.f32 %v2709, %v2708
    %s2711 = ssub.f32 1.0, %s2706
    %v2712 = vstv %s2711
    %v2713 = vmul.f32 %v2712, %v2703
    %v2714 = vadd.f32 %v2710, %v2713
    %2715 = vmatpush.msra.mxu0 %v272
    %2716 = vmatpush.msra.mxu0 %v268
    %2717 = vmatpush.msra.mxu0 %v264
    %2718 = vmatpush.msra.mxu0 %v260
    %2719 = vmatpush.msra.mxu0 %v256
    %2720 = vmatpush.msra.mxu0 %v252
    %2721 = vmatpush.msra.mxu0 %v248
    %2722 = vmatpush.msra.mxu0 %v244
    %2723 = vmatpush.msra.mxu0 %v240
    %2724 = vmatpush.msra.mxu0 %v236
    %2725 = vmatpush.msra.mxu0 %v232
    %2726 = vmatpush.msra.mxu0 %v228
    %2727 = vmatpush.msra.mxu0 %v224
    %2728 = vmatpush.msra.mxu0 %v220
    %2729 = vmatpush.msra.mxu0 %v216
    %2730 = vmatpush.msra.mxu0 %v212
    %2731 = vmatmul.f32.gmra.mxu0 %v2714
    %v2732 = vpop.f32.mrf.mxu0
    %v2733 = vadd.f32 %v1933, %v2732
    %2734 = vdwg.mxu0
    %2735 = vmatpush.msra.mxu0 %v336
    %2736 = vmatpush.msra.mxu0 %v332
    %2737 = vmatpush.msra.mxu0 %v328
    %2738 = vmatpush.msra.mxu0 %v324
    %2739 = vmatpush.msra.mxu0 %v320
    %2740 = vmatpush.msra.mxu0 %v316
    %2741 = vmatpush.msra.mxu0 %v312
    %2742 = vmatpush.msra.mxu0 %v308
    %2743 = vmatpush.msra.mxu0 %v304
    %2744 = vmatpush.msra.mxu0 %v300
    %2745 = vmatpush.msra.mxu0 %v296
    %2746 = vmatpush.msra.mxu0 %v292
    %2747 = vmatpush.msra.mxu0 %v288
    %2748 = vmatpush.msra.mxu0 %v284
    %2749 = vmatpush.msra.mxu0 %v280
    %2750 = vmatpush.msra.mxu0 %v276
    %2751 = vmatmul.f32.gmra.mxu0 %v1926
    %v2752 = vpop.f32.mrf.mxu0
    %v2753 = vadd.f32 %v2733, %v2752
    %2754 = vdwg.mxu0
    %2755 = vmatpush.msra.mxu0 %v400
    %2756 = vmatpush.msra.mxu0 %v396
    %2757 = vmatpush.msra.mxu0 %v392
    %2758 = vmatpush.msra.mxu0 %v388
    %2759 = vmatpush.msra.mxu0 %v384
    %2760 = vmatpush.msra.mxu0 %v380
    %2761 = vmatpush.msra.mxu0 %v376
    %2762 = vmatpush.msra.mxu0 %v372
    %2763 = vmatpush.msra.mxu0 %v368
    %2764 = vmatpush.msra.mxu0 %v364
    %2765 = vmatpush.msra.mxu0 %v360
    %2766 = vmatpush.msra.mxu0 %v356
    %2767 = vmatpush.msra.mxu0 %v352
    %2768 = vmatpush.msra.mxu0 %v348
    %2769 = vmatpush.msra.mxu0 %v344
    %2770 = vmatpush.msra.mxu0 %v340
    %2771 = vmatmul.f32.gmra.mxu0 %v2613
    %v2772 = vpop.f32.mrf.mxu0
    %v2773 = vadd.f32 %v2753, %v2772
    %2774 = vdwg.mxu0
    %2775 = vmatpush.msra.mxu0 %v273
    %2776 = vmatpush.msra.mxu0 %v269
    %2777 = vmatpush.msra.mxu0 %v265
    %2778 = vmatpush.msra.mxu0 %v261
    %2779 = vmatpush.msra.mxu0 %v257
    %2780 = vmatpush.msra.mxu0 %v253
    %2781 = vmatpush.msra.mxu0 %v249
    %2782 = vmatpush.msra.mxu0 %v245
    %2783 = vmatpush.msra.mxu0 %v241
    %2784 = vmatpush.msra.mxu0 %v237
    %2785 = vmatpush.msra.mxu0 %v233
    %2786 = vmatpush.msra.mxu0 %v229
    %2787 = vmatpush.msra.mxu0 %v225
    %2788 = vmatpush.msra.mxu0 %v221
    %2789 = vmatpush.msra.mxu0 %v217
    %2790 = vmatpush.msra.mxu0 %v213
    %2791 = vmatmul.f32.gmra.mxu0 %v2714
    %v2792 = vpop.f32.mrf.mxu0
    %v2793 = vadd.f32 %v1934, %v2792
    %2794 = vdwg.mxu0
    %2795 = vmatpush.msra.mxu0 %v337
    %2796 = vmatpush.msra.mxu0 %v333
    %2797 = vmatpush.msra.mxu0 %v329
    %2798 = vmatpush.msra.mxu0 %v325
    %2799 = vmatpush.msra.mxu0 %v321
    %2800 = vmatpush.msra.mxu0 %v317
    %2801 = vmatpush.msra.mxu0 %v313
    %2802 = vmatpush.msra.mxu0 %v309
    %2803 = vmatpush.msra.mxu0 %v305
    %2804 = vmatpush.msra.mxu0 %v301
    %2805 = vmatpush.msra.mxu0 %v297
    %2806 = vmatpush.msra.mxu0 %v293
    %2807 = vmatpush.msra.mxu0 %v289
    %2808 = vmatpush.msra.mxu0 %v285
    %2809 = vmatpush.msra.mxu0 %v281
    %2810 = vmatpush.msra.mxu0 %v277
    %2811 = vmatmul.f32.gmra.mxu0 %v1926
    %v2812 = vpop.f32.mrf.mxu0
    %v2813 = vadd.f32 %v2793, %v2812
    %2814 = vdwg.mxu0
    %2815 = vmatpush.msra.mxu0 %v401
    %2816 = vmatpush.msra.mxu0 %v397
    %2817 = vmatpush.msra.mxu0 %v393
    %2818 = vmatpush.msra.mxu0 %v389
    %2819 = vmatpush.msra.mxu0 %v385
    %2820 = vmatpush.msra.mxu0 %v381
    %2821 = vmatpush.msra.mxu0 %v377
    %2822 = vmatpush.msra.mxu0 %v373
    %2823 = vmatpush.msra.mxu0 %v369
    %2824 = vmatpush.msra.mxu0 %v365
    %2825 = vmatpush.msra.mxu0 %v361
    %2826 = vmatpush.msra.mxu0 %v357
    %2827 = vmatpush.msra.mxu0 %v353
    %2828 = vmatpush.msra.mxu0 %v349
    %2829 = vmatpush.msra.mxu0 %v345
    %2830 = vmatpush.msra.mxu0 %v341
    %2831 = vmatmul.f32.gmra.mxu0 %v2613
    %v2832 = vpop.f32.mrf.mxu0
    %v2833 = vadd.f32 %v2813, %v2832
    %2834 = vdwg.mxu0
    %2835 = vmatpush.msra.mxu0 %v274
    %2836 = vmatpush.msra.mxu0 %v270
    %2837 = vmatpush.msra.mxu0 %v266
    %2838 = vmatpush.msra.mxu0 %v262
    %2839 = vmatpush.msra.mxu0 %v258
    %2840 = vmatpush.msra.mxu0 %v254
    %2841 = vmatpush.msra.mxu0 %v250
    %2842 = vmatpush.msra.mxu0 %v246
    %2843 = vmatpush.msra.mxu0 %v242
    %2844 = vmatpush.msra.mxu0 %v238
    %2845 = vmatpush.msra.mxu0 %v234
    %2846 = vmatpush.msra.mxu0 %v230
    %2847 = vmatpush.msra.mxu0 %v226
    %2848 = vmatpush.msra.mxu0 %v222
    %2849 = vmatpush.msra.mxu0 %v218
    %2850 = vmatpush.msra.mxu0 %v214
    %2851 = vmatmul.f32.gmra.mxu0 %v2714
    %v2852 = vpop.f32.mrf.mxu0
    %v2853 = vadd.f32 %v1935, %v2852
    %2854 = vdwg.mxu0
    %2855 = vmatpush.msra.mxu0 %v338
    %2856 = vmatpush.msra.mxu0 %v334
    %2857 = vmatpush.msra.mxu0 %v330
    %2858 = vmatpush.msra.mxu0 %v326
    %2859 = vmatpush.msra.mxu0 %v322
    %2860 = vmatpush.msra.mxu0 %v318
    %2861 = vmatpush.msra.mxu0 %v314
    %2862 = vmatpush.msra.mxu0 %v310
    %2863 = vmatpush.msra.mxu0 %v306
    %2864 = vmatpush.msra.mxu0 %v302
    %2865 = vmatpush.msra.mxu0 %v298
    %2866 = vmatpush.msra.mxu0 %v294
    %2867 = vmatpush.msra.mxu0 %v290
    %2868 = vmatpush.msra.mxu0 %v286
    %2869 = vmatpush.msra.mxu0 %v282
    %2870 = vmatpush.msra.mxu0 %v278
    %2871 = vmatmul.f32.gmra.mxu0 %v1926
    %v2872 = vpop.f32.mrf.mxu0
    %v2873 = vadd.f32 %v2853, %v2872
    %2874 = vdwg.mxu0
    %2875 = vmatpush.msra.mxu0 %v402
    %2876 = vmatpush.msra.mxu0 %v398
    %2877 = vmatpush.msra.mxu0 %v394
    %2878 = vmatpush.msra.mxu0 %v390
    %2879 = vmatpush.msra.mxu0 %v386
    %2880 = vmatpush.msra.mxu0 %v382
    %2881 = vmatpush.msra.mxu0 %v378
    %2882 = vmatpush.msra.mxu0 %v374
    %2883 = vmatpush.msra.mxu0 %v370
    %2884 = vmatpush.msra.mxu0 %v366
    %2885 = vmatpush.msra.mxu0 %v362
    %2886 = vmatpush.msra.mxu0 %v358
    %2887 = vmatpush.msra.mxu0 %v354
    %2888 = vmatpush.msra.mxu0 %v350
    %2889 = vmatpush.msra.mxu0 %v346
    %2890 = vmatpush.msra.mxu0 %v342
    %2891 = vmatmul.f32.gmra.mxu0 %v2613
    %v2892 = vpop.f32.mrf.mxu0
    %v2893 = vadd.f32 %v2873, %v2892
    %2894 = vdwg.mxu0
    %2895 = vmatpush.msra.mxu0 %v275
    %2896 = vmatpush.msra.mxu0 %v271
    %2897 = vmatpush.msra.mxu0 %v267
    %2898 = vmatpush.msra.mxu0 %v263
    %2899 = vmatpush.msra.mxu0 %v259
    %2900 = vmatpush.msra.mxu0 %v255
    %2901 = vmatpush.msra.mxu0 %v251
    %2902 = vmatpush.msra.mxu0 %v247
    %2903 = vmatpush.msra.mxu0 %v243
    %2904 = vmatpush.msra.mxu0 %v239
    %2905 = vmatpush.msra.mxu0 %v235
    %2906 = vmatpush.msra.mxu0 %v231
    %2907 = vmatpush.msra.mxu0 %v227
    %2908 = vmatpush.msra.mxu0 %v223
    %2909 = vmatpush.msra.mxu0 %v219
    %2910 = vmatpush.msra.mxu0 %v215
    %2911 = vmatmul.f32.gmra.mxu0 %v2714
    %v2912 = vpop.f32.mrf.mxu0
    %v2913 = vadd.f32 %v1936, %v2912
    %2914 = vdwg.mxu0
    %2915 = vmatpush.msra.mxu0 %v339
    %2916 = vmatpush.msra.mxu0 %v335
    %2917 = vmatpush.msra.mxu0 %v331
    %2918 = vmatpush.msra.mxu0 %v327
    %2919 = vmatpush.msra.mxu0 %v323
    %2920 = vmatpush.msra.mxu0 %v319
    %2921 = vmatpush.msra.mxu0 %v315
    %2922 = vmatpush.msra.mxu0 %v311
    %2923 = vmatpush.msra.mxu0 %v307
    %2924 = vmatpush.msra.mxu0 %v303
    %2925 = vmatpush.msra.mxu0 %v299
    %2926 = vmatpush.msra.mxu0 %v295
    %2927 = vmatpush.msra.mxu0 %v291
    %2928 = vmatpush.msra.mxu0 %v287
    %2929 = vmatpush.msra.mxu0 %v283
    %2930 = vmatpush.msra.mxu0 %v279
    %2931 = vmatmul.f32.gmra.mxu0 %v1926
    %v2932 = vpop.f32.mrf.mxu0
    %v2933 = vadd.f32 %v2913, %v2932
    %2934 = vdwg.mxu0
    %2935 = vmatpush.msra.mxu0 %v403
    %2936 = vmatpush.msra.mxu0 %v399
    %2937 = vmatpush.msra.mxu0 %v395
    %2938 = vmatpush.msra.mxu0 %v391
    %2939 = vmatpush.msra.mxu0 %v387
    %2940 = vmatpush.msra.mxu0 %v383
    %2941 = vmatpush.msra.mxu0 %v379
    %2942 = vmatpush.msra.mxu0 %v375
    %2943 = vmatpush.msra.mxu0 %v371
    %2944 = vmatpush.msra.mxu0 %v367
    %2945 = vmatpush.msra.mxu0 %v363
    %2946 = vmatpush.msra.mxu0 %v359
    %2947 = vmatpush.msra.mxu0 %v355
    %2948 = vmatpush.msra.mxu0 %v351
    %2949 = vmatpush.msra.mxu0 %v347
    %2950 = vmatpush.msra.mxu0 %v343
    %2951 = vmatmul.f32.gmra.mxu0 %v2613
    %v2952 = vpop.f32.mrf.mxu0
    %v2953 = vadd.f32 %v2933, %v2952
    %2954 = vdwg.mxu0
    %v2955 = vxor.u32 %v2773, 2147483648
    %v2956 = vxor.u32 %v2833, 2147483648
    %v2957 = vmul.f32 %v2955, 1.442695
    %v2958 = vpow.pop %v2957
    %v2959 = vmul.f32 %v2956, 1.442695
    %v2960 = vpow.pop %v2959
    %v2961 = vadd.f32 %v2958, 1.0
    %v2962 = vadd.f32 %v2960, 1.0
    %v2963 = vrcp.pop %v2961
    %v2964 = vmul.f32 %v2961, %v2963
    %v2965 = vsub.f32 1.0, %v2964
    %v2966 = vmul.f32 %v2963, %v2965
    %v2967 = vadd.f32 %v2963, %v2966
    %vm2968 = vweird.f32 %v2961
    %vm2969 = vweird.f32 %v2963
    %vm2970 = vmor %vm2968, %vm2969
    %v2971 = vsel %vm2970, %v2963, %v2967
    %v2972 = vand.u32 2147483647, %v2961
    %vm2973 = vcmp.eq.f32.partialorder %v2972, 8.507059e+37
    %v2974 = vand.u32 %v2961, 2147483648
    %v2975 = vor.u32 1.1754944e-38, %v2974
    %v2976 = vsel %vm2973, %v2975, %v2971
    %v2977 = vmul.f32 1.0, %v2976
    %v2978 = vrcp.pop %v2962
    %v2979 = vmul.f32 %v2962, %v2978
    %v2980 = vsub.f32 1.0, %v2979
    %v2981 = vmul.f32 %v2978, %v2980
    %v2982 = vadd.f32 %v2978, %v2981
    %vm2983 = vweird.f32 %v2962
    %vm2984 = vweird.f32 %v2978
    %vm2985 = vmor %vm2983, %vm2984
    %v2986 = vsel %vm2985, %v2978, %v2982
    %v2987 = vand.u32 2147483647, %v2962
    %vm2988 = vcmp.eq.f32.partialorder %v2987, 8.507059e+37
    %v2989 = vand.u32 %v2962, 2147483648
    %v2990 = vor.u32 1.1754944e-38, %v2989
    %v2991 = vsel %vm2988, %v2990, %v2986
    %v2992 = vmul.f32 1.0, %v2991
    %v2993 = vmul.f32 %v2977, %v2953
    %v2994 = vadd.f32 %v2893, %v2993
    %v2995 = vtanh.pop %v2994
    %v2996 = vsub.f32 1.0, %v2992
    %v2997 = vmul.f32 %v2996, %v2995
    %v2998 = vmul.f32 %v2992, %v2613
    %v2999 = vadd.f32 %v2997, %v2998
    %3000 = vmatpush.msra.mxu0 %v420
    %3001 = vmatpush.msra.mxu0 %v419
    %3002 = vmatpush.msra.mxu0 %v418
    %3003 = vmatpush.msra.mxu0 %v417
    %3004 = vmatpush.msra.mxu0 %v416
    %3005 = vmatpush.msra.mxu0 %v415
    %3006 = vmatpush.msra.mxu0 %v414
    %3007 = vmatpush.msra.mxu0 %v413
    %3008 = vmatpush.msra.mxu0 %v412
    %3009 = vmatpush.msra.mxu0 %v411
    %3010 = vmatpush.msra.mxu0 %v410
    %3011 = vmatpush.msra.mxu0 %v409
    %3012 = vmatpush.msra.mxu0 %v408
    %3013 = vmatpush.msra.mxu0 %v407
    %3014 = vmatpush.msra.mxu0 %v406
    %3015 = vmatpush.msra.mxu0 %v405
    %3016 = vmatmul.f32.gmra.mxu0 %v2714
    %v3017 = vpop.f32.mrf.mxu0
    %v3018 = vadd.f32 %v2227, %v3017
    %3019 = vdwg.mxu0
    %3020 = vmatpush.msra.mxu0 %v436
    %3021 = vmatpush.msra.mxu0 %v435
    %3022 = vmatpush.msra.mxu0 %v434
    %3023 = vmatpush.msra.mxu0 %v433
    %3024 = vmatpush.msra.mxu0 %v432
    %3025 = vmatpush.msra.mxu0 %v431
    %3026 = vmatpush.msra.mxu0 %v430
    %3027 = vmatpush.msra.mxu0 %v429
    %3028 = vmatpush.msra.mxu0 %v428
    %3029 = vmatpush.msra.mxu0 %v427
    %3030 = vmatpush.msra.mxu0 %v426
    %3031 = vmatpush.msra.mxu0 %v425
    %3032 = vmatpush.msra.mxu0 %v424
    %3033 = vmatpush.msra.mxu0 %v423
    %3034 = vmatpush.msra.mxu0 %v422
    %3035 = vmatpush.msra.mxu0 %v421
    %3036 = vmatmul.f32.gmra.mxu0 %v1926
    %v3037 = vpop.f32.mrf.mxu0
    %v3038 = vadd.f32 %v3018, %v3037
    %3039 = vdwg.mxu0
    %3040 = vmatpush.msra.mxu0 %v452
    %3041 = vmatpush.msra.mxu0 %v451
    %3042 = vmatpush.msra.mxu0 %v450
    %3043 = vmatpush.msra.mxu0 %v449
    %3044 = vmatpush.msra.mxu0 %v448
    %3045 = vmatpush.msra.mxu0 %v447
    %3046 = vmatpush.msra.mxu0 %v446
    %3047 = vmatpush.msra.mxu0 %v445
    %3048 = vmatpush.msra.mxu0 %v444
    %3049 = vmatpush.msra.mxu0 %v443
    %3050 = vmatpush.msra.mxu0 %v442
    %3051 = vmatpush.msra.mxu0 %v441
    %3052 = vmatpush.msra.mxu0 %v440
    %3053 = vmatpush.msra.mxu0 %v439
    %3054 = vmatpush.msra.mxu0 %v438
    %3055 = vmatpush.msra.mxu0 %v437
    %3056 = vmatmul.f32.gmra.mxu0 %v2999
    %v3057 = vpop.f32.mrf.mxu0
    %v3058 = vadd.f32 %v3038, %v3057
    %3059 = vdwg.mxu0
    %s3060 = scalar_lea.vmem %s11, 24
    %3061 = vst [vmem:[%s3060] sm:$0xff] %v3058
    %3062 = vmax.xlane.f32.xlu0 %v3058
    %v3063 = vpop.xlane.xlu0 %3062
    %vm3064 = vcmp.ge.f32.partialorder %v3058, %v3063
    %v3065 = vsel %vm3064, %v1930, 128.0
    %3066 = vmin.xlane.f32.xlu0 %v3065
    %v3067 = vpop.xlane.xlu0 %3066
    %vm3068 = vcmp.eq.f32.partialorder %v1930, %v3067
    %v3069 = vsel %vm3068, 1, 0
    %v3070 = vcvt.s32.f32 %v3069
    %3071 = vmatpush.msra.mxu0 %v469
    %3072 = vmatpush.msra.mxu0 %v468
    %3073 = vmatpush.msra.mxu0 %v467
    %3074 = vmatpush.msra.mxu0 %v466
    %3075 = vmatpush.msra.mxu0 %v465
    %3076 = vmatpush.msra.mxu0 %v464
    %3077 = vmatpush.msra.mxu0 %v463
    %3078 = vmatpush.msra.mxu0 %v462
    %3079 = vmatpush.msra.mxu0 %v461
    %3080 = vmatpush.msra.mxu0 %v460
    %3081 = vmatpush.msra.mxu0 %v459
    %3082 = vmatpush.msra.mxu0 %v458
    %3083 = vmatpush.msra.mxu0 %v457
    %3084 = vmatpush.msra.mxu0 %v456
    %3085 = vmatpush.msra.mxu0 %v455
    %3086 = vmatpush.msra.mxu0 %v454
    %3087 = vmatmul.f32.gmra.mxu0 %v3070
    %v3088 = vpop.f32.mrf.mxu0
    %v3089 = vadd.f32 0.0, %v3088
    %3090 = vdwg.mxu0
    %s3091 = sld [smem:[#allocation2 + $0x2]]
    %s3092 = scvt.s32.f32 %s3091
    %s3093 = scalar_lea.vmem %s3, 16
    %v3094 = vld [vmem:[%s3093] sm:$0xff]
    %v3095 = vstv %s3092
    %v3096 = vmul.f32 %v3095, %v3094
    %s3097 = ssub.f32 1.0, %s3092
    %v3098 = vstv %s3097
    %v3099 = vmul.f32 %v3098, %v3089
    %v3100 = vadd.f32 %v3096, %v3099
    %3101 = vmatpush.msra.mxu0 %v272
    %3102 = vmatpush.msra.mxu0 %v268
    %3103 = vmatpush.msra.mxu0 %v264
    %3104 = vmatpush.msra.mxu0 %v260
    %3105 = vmatpush.msra.mxu0 %v256
    %3106 = vmatpush.msra.mxu0 %v252
    %3107 = vmatpush.msra.mxu0 %v248
    %3108 = vmatpush.msra.mxu0 %v244
    %3109 = vmatpush.msra.mxu0 %v240
    %3110 = vmatpush.msra.mxu0 %v236
    %3111 = vmatpush.msra.mxu0 %v232
    %3112 = vmatpush.msra.mxu0 %v228
    %3113 = vmatpush.msra.mxu0 %v224
    %3114 = vmatpush.msra.mxu0 %v220
    %3115 = vmatpush.msra.mxu0 %v216
    %3116 = vmatpush.msra.mxu0 %v212
    %3117 = vmatmul.f32.gmra.mxu0 %v3100
    %v3118 = vpop.f32.mrf.mxu0
    %v3119 = vadd.f32 %v1933, %v3118
    %3120 = vdwg.mxu0
    %3121 = vmatpush.msra.mxu0 %v336
    %3122 = vmatpush.msra.mxu0 %v332
    %3123 = vmatpush.msra.mxu0 %v328
    %3124 = vmatpush.msra.mxu0 %v324
    %3125 = vmatpush.msra.mxu0 %v320
    %3126 = vmatpush.msra.mxu0 %v316
    %3127 = vmatpush.msra.mxu0 %v312
    %3128 = vmatpush.msra.mxu0 %v308
    %3129 = vmatpush.msra.mxu0 %v304
    %3130 = vmatpush.msra.mxu0 %v300
    %3131 = vmatpush.msra.mxu0 %v296
    %3132 = vmatpush.msra.mxu0 %v292
    %3133 = vmatpush.msra.mxu0 %v288
    %3134 = vmatpush.msra.mxu0 %v284
    %3135 = vmatpush.msra.mxu0 %v280
    %3136 = vmatpush.msra.mxu0 %v276
    %3137 = vmatmul.f32.gmra.mxu0 %v1926
    %v3138 = vpop.f32.mrf.mxu0
    %v3139 = vadd.f32 %v3119, %v3138
    %3140 = vdwg.mxu0
    %3141 = vmatpush.msra.mxu0 %v400
    %3142 = vmatpush.msra.mxu0 %v396
    %3143 = vmatpush.msra.mxu0 %v392
    %3144 = vmatpush.msra.mxu0 %v388
    %3145 = vmatpush.msra.mxu0 %v384
    %3146 = vmatpush.msra.mxu0 %v380
    %3147 = vmatpush.msra.mxu0 %v376
    %3148 = vmatpush.msra.mxu0 %v372
    %3149 = vmatpush.msra.mxu0 %v368
    %3150 = vmatpush.msra.mxu0 %v364
    %3151 = vmatpush.msra.mxu0 %v360
    %3152 = vmatpush.msra.mxu0 %v356
    %3153 = vmatpush.msra.mxu0 %v352
    %3154 = vmatpush.msra.mxu0 %v348
    %3155 = vmatpush.msra.mxu0 %v344
    %3156 = vmatpush.msra.mxu0 %v340
    %3157 = vmatmul.f32.gmra.mxu0 %v2999
    %v3158 = vpop.f32.mrf.mxu0
    %v3159 = vadd.f32 %v3139, %v3158
    %3160 = vdwg.mxu0
    %3161 = vmatpush.msra.mxu0 %v273
    %3162 = vmatpush.msra.mxu0 %v269
    %3163 = vmatpush.msra.mxu0 %v265
    %3164 = vmatpush.msra.mxu0 %v261
    %3165 = vmatpush.msra.mxu0 %v257
    %3166 = vmatpush.msra.mxu0 %v253
    %3167 = vmatpush.msra.mxu0 %v249
    %3168 = vmatpush.msra.mxu0 %v245
    %3169 = vmatpush.msra.mxu0 %v241
    %3170 = vmatpush.msra.mxu0 %v237
    %3171 = vmatpush.msra.mxu0 %v233
    %3172 = vmatpush.msra.mxu0 %v229
    %3173 = vmatpush.msra.mxu0 %v225
    %3174 = vmatpush.msra.mxu0 %v221
    %3175 = vmatpush.msra.mxu0 %v217
    %3176 = vmatpush.msra.mxu0 %v213
    %3177 = vmatmul.f32.gmra.mxu0 %v3100
    %v3178 = vpop.f32.mrf.mxu0
    %v3179 = vadd.f32 %v1934, %v3178
    %3180 = vdwg.mxu0
    %3181 = vmatpush.msra.mxu0 %v337
    %3182 = vmatpush.msra.mxu0 %v333
    %3183 = vmatpush.msra.mxu0 %v329
    %3184 = vmatpush.msra.mxu0 %v325
    %3185 = vmatpush.msra.mxu0 %v321
    %3186 = vmatpush.msra.mxu0 %v317
    %3187 = vmatpush.msra.mxu0 %v313
    %3188 = vmatpush.msra.mxu0 %v309
    %3189 = vmatpush.msra.mxu0 %v305
    %3190 = vmatpush.msra.mxu0 %v301
    %3191 = vmatpush.msra.mxu0 %v297
    %3192 = vmatpush.msra.mxu0 %v293
    %3193 = vmatpush.msra.mxu0 %v289
    %3194 = vmatpush.msra.mxu0 %v285
    %3195 = vmatpush.msra.mxu0 %v281
    %3196 = vmatpush.msra.mxu0 %v277
    %3197 = vmatmul.f32.gmra.mxu0 %v1926
    %v3198 = vpop.f32.mrf.mxu0
    %v3199 = vadd.f32 %v3179, %v3198
    %3200 = vdwg.mxu0
    %3201 = vmatpush.msra.mxu0 %v401
    %3202 = vmatpush.msra.mxu0 %v397
    %3203 = vmatpush.msra.mxu0 %v393
    %3204 = vmatpush.msra.mxu0 %v389
    %3205 = vmatpush.msra.mxu0 %v385
    %3206 = vmatpush.msra.mxu0 %v381
    %3207 = vmatpush.msra.mxu0 %v377
    %3208 = vmatpush.msra.mxu0 %v373
    %3209 = vmatpush.msra.mxu0 %v369
    %3210 = vmatpush.msra.mxu0 %v365
    %3211 = vmatpush.msra.mxu0 %v361
    %3212 = vmatpush.msra.mxu0 %v357
    %3213 = vmatpush.msra.mxu0 %v353
    %3214 = vmatpush.msra.mxu0 %v349
    %3215 = vmatpush.msra.mxu0 %v345
    %3216 = vmatpush.msra.mxu0 %v341
    %3217 = vmatmul.f32.gmra.mxu0 %v2999
    %v3218 = vpop.f32.mrf.mxu0
    %v3219 = vadd.f32 %v3199, %v3218
    %3220 = vdwg.mxu0
    %3221 = vmatpush.msra.mxu0 %v274
    %3222 = vmatpush.msra.mxu0 %v270
    %3223 = vmatpush.msra.mxu0 %v266
    %3224 = vmatpush.msra.mxu0 %v262
    %3225 = vmatpush.msra.mxu0 %v258
    %3226 = vmatpush.msra.mxu0 %v254
    %3227 = vmatpush.msra.mxu0 %v250
    %3228 = vmatpush.msra.mxu0 %v246
    %3229 = vmatpush.msra.mxu0 %v242
    %3230 = vmatpush.msra.mxu0 %v238
    %3231 = vmatpush.msra.mxu0 %v234
    %3232 = vmatpush.msra.mxu0 %v230
    %3233 = vmatpush.msra.mxu0 %v226
    %3234 = vmatpush.msra.mxu0 %v222
    %3235 = vmatpush.msra.mxu0 %v218
    %3236 = vmatpush.msra.mxu0 %v214
    %3237 = vmatmul.f32.gmra.mxu0 %v3100
    %v3238 = vpop.f32.mrf.mxu0
    %v3239 = vadd.f32 %v1935, %v3238
    %3240 = vdwg.mxu0
    %3241 = vmatpush.msra.mxu0 %v338
    %3242 = vmatpush.msra.mxu0 %v334
    %3243 = vmatpush.msra.mxu0 %v330
    %3244 = vmatpush.msra.mxu0 %v326
    %3245 = vmatpush.msra.mxu0 %v322
    %3246 = vmatpush.msra.mxu0 %v318
    %3247 = vmatpush.msra.mxu0 %v314
    %3248 = vmatpush.msra.mxu0 %v310
    %3249 = vmatpush.msra.mxu0 %v306
    %3250 = vmatpush.msra.mxu0 %v302
    %3251 = vmatpush.msra.mxu0 %v298
    %3252 = vmatpush.msra.mxu0 %v294
    %3253 = vmatpush.msra.mxu0 %v290
    %3254 = vmatpush.msra.mxu0 %v286
    %3255 = vmatpush.msra.mxu0 %v282
    %3256 = vmatpush.msra.mxu0 %v278
    %3257 = vmatmul.f32.gmra.mxu0 %v1926
    %v3258 = vpop.f32.mrf.mxu0
    %v3259 = vadd.f32 %v3239, %v3258
    %3260 = vdwg.mxu0
    %3261 = vmatpush.msra.mxu0 %v402
    %3262 = vmatpush.msra.mxu0 %v398
    %3263 = vmatpush.msra.mxu0 %v394
    %3264 = vmatpush.msra.mxu0 %v390
    %3265 = vmatpush.msra.mxu0 %v386
    %3266 = vmatpush.msra.mxu0 %v382
    %3267 = vmatpush.msra.mxu0 %v378
    %3268 = vmatpush.msra.mxu0 %v374
    %3269 = vmatpush.msra.mxu0 %v370
    %3270 = vmatpush.msra.mxu0 %v366
    %3271 = vmatpush.msra.mxu0 %v362
    %3272 = vmatpush.msra.mxu0 %v358
    %3273 = vmatpush.msra.mxu0 %v354
    %3274 = vmatpush.msra.mxu0 %v350
    %3275 = vmatpush.msra.mxu0 %v346
    %3276 = vmatpush.msra.mxu0 %v342
    %3277 = vmatmul.f32.gmra.mxu0 %v2999
    %v3278 = vpop.f32.mrf.mxu0
    %v3279 = vadd.f32 %v3259, %v3278
    %3280 = vdwg.mxu0
    %3281 = vmatpush.msra.mxu0 %v275
    %3282 = vmatpush.msra.mxu0 %v271
    %3283 = vmatpush.msra.mxu0 %v267
    %3284 = vmatpush.msra.mxu0 %v263
    %3285 = vmatpush.msra.mxu0 %v259
    %3286 = vmatpush.msra.mxu0 %v255
    %3287 = vmatpush.msra.mxu0 %v251
    %3288 = vmatpush.msra.mxu0 %v247
    %3289 = vmatpush.msra.mxu0 %v243
    %3290 = vmatpush.msra.mxu0 %v239
    %3291 = vmatpush.msra.mxu0 %v235
    %3292 = vmatpush.msra.mxu0 %v231
    %3293 = vmatpush.msra.mxu0 %v227
    %3294 = vmatpush.msra.mxu0 %v223
    %3295 = vmatpush.msra.mxu0 %v219
    %3296 = vmatpush.msra.mxu0 %v215
    %3297 = vmatmul.f32.gmra.mxu0 %v3100
    %v3298 = vpop.f32.mrf.mxu0
    %v3299 = vadd.f32 %v1936, %v3298
    %3300 = vdwg.mxu0
    %3301 = vmatpush.msra.mxu0 %v339
    %3302 = vmatpush.msra.mxu0 %v335
    %3303 = vmatpush.msra.mxu0 %v331
    %3304 = vmatpush.msra.mxu0 %v327
    %3305 = vmatpush.msra.mxu0 %v323
    %3306 = vmatpush.msra.mxu0 %v319
    %3307 = vmatpush.msra.mxu0 %v315
    %3308 = vmatpush.msra.mxu0 %v311
    %3309 = vmatpush.msra.mxu0 %v307
    %3310 = vmatpush.msra.mxu0 %v303
    %3311 = vmatpush.msra.mxu0 %v299
    %3312 = vmatpush.msra.mxu0 %v295
    %3313 = vmatpush.msra.mxu0 %v291
    %3314 = vmatpush.msra.mxu0 %v287
    %3315 = vmatpush.msra.mxu0 %v283
    %3316 = vmatpush.msra.mxu0 %v279
    %3317 = vmatmul.f32.gmra.mxu0 %v1926
    %v3318 = vpop.f32.mrf.mxu0
    %v3319 = vadd.f32 %v3299, %v3318
    %3320 = vdwg.mxu0
    %3321 = vmatpush.msra.mxu0 %v403
    %3322 = vmatpush.msra.mxu0 %v399
    %3323 = vmatpush.msra.mxu0 %v395
    %3324 = vmatpush.msra.mxu0 %v391
    %3325 = vmatpush.msra.mxu0 %v387
    %3326 = vmatpush.msra.mxu0 %v383
    %3327 = vmatpush.msra.mxu0 %v379
    %3328 = vmatpush.msra.mxu0 %v375
    %3329 = vmatpush.msra.mxu0 %v371
    %3330 = vmatpush.msra.mxu0 %v367
    %3331 = vmatpush.msra.mxu0 %v363
    %3332 = vmatpush.msra.mxu0 %v359
    %3333 = vmatpush.msra.mxu0 %v355
    %3334 = vmatpush.msra.mxu0 %v351
    %3335 = vmatpush.msra.mxu0 %v347
    %3336 = vmatpush.msra.mxu0 %v343
    %3337 = vmatmul.f32.gmra.mxu0 %v2999
    %v3338 = vpop.f32.mrf.mxu0
    %v3339 = vadd.f32 %v3319, %v3338
    %3340 = vdwg.mxu0
    %v3341 = vxor.u32 %v3159, 2147483648
    %v3342 = vxor.u32 %v3219, 2147483648
    %v3343 = vmul.f32 %v3341, 1.442695
    %v3344 = vpow.pop %v3343
    %v3345 = vmul.f32 %v3342, 1.442695
    %v3346 = vpow.pop %v3345
    %v3347 = vadd.f32 %v3344, 1.0
    %v3348 = vadd.f32 %v3346, 1.0
    %v3349 = vrcp.pop %v3347
    %v3350 = vmul.f32 %v3347, %v3349
    %v3351 = vsub.f32 1.0, %v3350
    %v3352 = vmul.f32 %v3349, %v3351
    %v3353 = vadd.f32 %v3349, %v3352
    %vm3354 = vweird.f32 %v3347
    %vm3355 = vweird.f32 %v3349
    %vm3356 = vmor %vm3354, %vm3355
    %v3357 = vsel %vm3356, %v3349, %v3353
    %v3358 = vand.u32 2147483647, %v3347
    %vm3359 = vcmp.eq.f32.partialorder %v3358, 8.507059e+37
    %v3360 = vand.u32 %v3347, 2147483648
    %v3361 = vor.u32 1.1754944e-38, %v3360
    %v3362 = vsel %vm3359, %v3361, %v3357
    %v3363 = vmul.f32 1.0, %v3362
    %v3364 = vrcp.pop %v3348
    %v3365 = vmul.f32 %v3348, %v3364
    %v3366 = vsub.f32 1.0, %v3365
    %v3367 = vmul.f32 %v3364, %v3366
    %v3368 = vadd.f32 %v3364, %v3367
    %vm3369 = vweird.f32 %v3348
    %vm3370 = vweird.f32 %v3364
    %vm3371 = vmor %vm3369, %vm3370
    %v3372 = vsel %vm3371, %v3364, %v3368
    %v3373 = vand.u32 2147483647, %v3348
    %vm3374 = vcmp.eq.f32.partialorder %v3373, 8.507059e+37
    %v3375 = vand.u32 %v3348, 2147483648
    %v3376 = vor.u32 1.1754944e-38, %v3375
    %v3377 = vsel %vm3374, %v3376, %v3372
    %v3378 = vmul.f32 1.0, %v3377
    %v3379 = vmul.f32 %v3363, %v3339
    %v3380 = vadd.f32 %v3279, %v3379
    %v3381 = vtanh.pop %v3380
    %v3382 = vsub.f32 1.0, %v3378
    %v3383 = vmul.f32 %v3382, %v3381
    %v3384 = vmul.f32 %v3378, %v2999
    %v3385 = vadd.f32 %v3383, %v3384
    %3386 = vmatpush.msra.mxu0 %v420
    %3387 = vmatpush.msra.mxu0 %v419
    %3388 = vmatpush.msra.mxu0 %v418
    %3389 = vmatpush.msra.mxu0 %v417
    %3390 = vmatpush.msra.mxu0 %v416
    %3391 = vmatpush.msra.mxu0 %v415
    %3392 = vmatpush.msra.mxu0 %v414
    %3393 = vmatpush.msra.mxu0 %v413
    %3394 = vmatpush.msra.mxu0 %v412
    %3395 = vmatpush.msra.mxu0 %v411
    %3396 = vmatpush.msra.mxu0 %v410
    %3397 = vmatpush.msra.mxu0 %v409
    %3398 = vmatpush.msra.mxu0 %v408
    %3399 = vmatpush.msra.mxu0 %v407
    %3400 = vmatpush.msra.mxu0 %v406
    %3401 = vmatpush.msra.mxu0 %v405
    %3402 = vmatmul.f32.gmra.mxu0 %v3100
    %v3403 = vpop.f32.mrf.mxu0
    %v3404 = vadd.f32 %v2227, %v3403
    %3405 = vdwg.mxu0
    %3406 = vmatpush.msra.mxu0 %v436
    %3407 = vmatpush.msra.mxu0 %v435
    %3408 = vmatpush.msra.mxu0 %v434
    %3409 = vmatpush.msra.mxu0 %v433
    %3410 = vmatpush.msra.mxu0 %v432
    %3411 = vmatpush.msra.mxu0 %v431
    %3412 = vmatpush.msra.mxu0 %v430
    %3413 = vmatpush.msra.mxu0 %v429
    %3414 = vmatpush.msra.mxu0 %v428
    %3415 = vmatpush.msra.mxu0 %v427
    %3416 = vmatpush.msra.mxu0 %v426
    %3417 = vmatpush.msra.mxu0 %v425
    %3418 = vmatpush.msra.mxu0 %v424
    %3419 = vmatpush.msra.mxu0 %v423
    %3420 = vmatpush.msra.mxu0 %v422
    %3421 = vmatpush.msra.mxu0 %v421
    %3422 = vmatmul.f32.gmra.mxu0 %v1926
    %v3423 = vpop.f32.mrf.mxu0
    %v3424 = vadd.f32 %v3404, %v3423
    %3425 = vdwg.mxu0
    %3426 = vmatpush.msra.mxu0 %v452
    %3427 = vmatpush.msra.mxu0 %v451
    %3428 = vmatpush.msra.mxu0 %v450
    %3429 = vmatpush.msra.mxu0 %v449
    %3430 = vmatpush.msra.mxu0 %v448
    %3431 = vmatpush.msra.mxu0 %v447
    %3432 = vmatpush.msra.mxu0 %v446
    %3433 = vmatpush.msra.mxu0 %v445
    %3434 = vmatpush.msra.mxu0 %v444
    %3435 = vmatpush.msra.mxu0 %v443
    %3436 = vmatpush.msra.mxu0 %v442
    %3437 = vmatpush.msra.mxu0 %v441
    %3438 = vmatpush.msra.mxu0 %v440
    %3439 = vmatpush.msra.mxu0 %v439
    %3440 = vmatpush.msra.mxu0 %v438
    %3441 = vmatpush.msra.mxu0 %v437
    %3442 = vmatmul.f32.gmra.mxu0 %v3385
    %v3443 = vpop.f32.mrf.mxu0
    %v3444 = vadd.f32 %v3424, %v3443
    %3445 = vdwg.mxu0
    %s3446 = scalar_lea.vmem %s11, 32
    %3447 = vst [vmem:[%s3446] sm:$0xff] %v3444
    %3448 = vmax.xlane.f32.xlu0 %v3444
    %v3449 = vpop.xlane.xlu0 %3448
    %vm3450 = vcmp.ge.f32.partialorder %v3444, %v3449
    %v3451 = vsel %vm3450, %v1930, 128.0
    %3452 = vmin.xlane.f32.xlu0 %v3451
    %v3453 = vpop.xlane.xlu0 %3452
    %vm3454 = vcmp.eq.f32.partialorder %v1930, %v3453
    %v3455 = vsel %vm3454, 1, 0
    %v3456 = vcvt.s32.f32 %v3455
    %3457 = vmatpush.msra.mxu0 %v469
    %3458 = vmatpush.msra.mxu0 %v468
    %3459 = vmatpush.msra.mxu0 %v467
    %3460 = vmatpush.msra.mxu0 %v466
    %3461 = vmatpush.msra.mxu0 %v465
    %3462 = vmatpush.msra.mxu0 %v464
    %3463 = vmatpush.msra.mxu0 %v463
    %3464 = vmatpush.msra.mxu0 %v462
    %3465 = vmatpush.msra.mxu0 %v461
    %3466 = vmatpush.msra.mxu0 %v460
    %3467 = vmatpush.msra.mxu0 %v459
    %3468 = vmatpush.msra.mxu0 %v458
    %3469 = vmatpush.msra.mxu0 %v457
    %3470 = vmatpush.msra.mxu0 %v456
    %3471 = vmatpush.msra.mxu0 %v455
    %3472 = vmatpush.msra.mxu0 %v454
    %3473 = vmatmul.f32.gmra.mxu0 %v3456
    %v3474 = vpop.f32.mrf.mxu0
    %v3475 = vadd.f32 0.0, %v3474
    %3476 = vdwg.mxu0
    %s3477 = sld [smem:[#allocation2 + $0x3]]
    %s3478 = scvt.s32.f32 %s3477
    %s3479 = scalar_lea.vmem %s3, 24
    %v3480 = vld [vmem:[%s3479] sm:$0xff]
    %v3481 = vstv %s3478
    %v3482 = vmul.f32 %v3481, %v3480
    %s3483 = ssub.f32 1.0, %s3478
    %v3484 = vstv %s3483
    %v3485 = vmul.f32 %v3484, %v3475
    %v3486 = vadd.f32 %v3482, %v3485
    %3487 = vmatpush.msra.mxu0 %v272
    %3488 = vmatpush.msra.mxu0 %v268
    %3489 = vmatpush.msra.mxu0 %v264
    %3490 = vmatpush.msra.mxu0 %v260
    %3491 = vmatpush.msra.mxu0 %v256
    %3492 = vmatpush.msra.mxu0 %v252
    %3493 = vmatpush.msra.mxu0 %v248
    %3494 = vmatpush.msra.mxu0 %v244
    %3495 = vmatpush.msra.mxu0 %v240
    %3496 = vmatpush.msra.mxu0 %v236
    %3497 = vmatpush.msra.mxu0 %v232
    %3498 = vmatpush.msra.mxu0 %v228
    %3499 = vmatpush.msra.mxu0 %v224
    %3500 = vmatpush.msra.mxu0 %v220
    %3501 = vmatpush.msra.mxu0 %v216
    %3502 = vmatpush.msra.mxu0 %v212
    %3503 = vmatmul.f32.gmra.mxu0 %v3486
    %v3504 = vpop.f32.mrf.mxu0
    %v3505 = vadd.f32 %v1933, %v3504
    %3506 = vdwg.mxu0
    %3507 = vmatpush.msra.mxu0 %v336
    %3508 = vmatpush.msra.mxu0 %v332
    %3509 = vmatpush.msra.mxu0 %v328
    %3510 = vmatpush.msra.mxu0 %v324
    %3511 = vmatpush.msra.mxu0 %v320
    %3512 = vmatpush.msra.mxu0 %v316
    %3513 = vmatpush.msra.mxu0 %v312
    %3514 = vmatpush.msra.mxu0 %v308
    %3515 = vmatpush.msra.mxu0 %v304
    %3516 = vmatpush.msra.mxu0 %v300
    %3517 = vmatpush.msra.mxu0 %v296
    %3518 = vmatpush.msra.mxu0 %v292
    %3519 = vmatpush.msra.mxu0 %v288
    %3520 = vmatpush.msra.mxu0 %v284
    %3521 = vmatpush.msra.mxu0 %v280
    %3522 = vmatpush.msra.mxu0 %v276
    %3523 = vmatmul.f32.gmra.mxu0 %v1926
    %v3524 = vpop.f32.mrf.mxu0
    %v3525 = vadd.f32 %v3505, %v3524
    %3526 = vdwg.mxu0
    %3527 = vmatpush.msra.mxu0 %v400
    %3528 = vmatpush.msra.mxu0 %v396
    %3529 = vmatpush.msra.mxu0 %v392
    %3530 = vmatpush.msra.mxu0 %v388
    %3531 = vmatpush.msra.mxu0 %v384
    %3532 = vmatpush.msra.mxu0 %v380
    %3533 = vmatpush.msra.mxu0 %v376
    %3534 = vmatpush.msra.mxu0 %v372
    %3535 = vmatpush.msra.mxu0 %v368
    %3536 = vmatpush.msra.mxu0 %v364
    %3537 = vmatpush.msra.mxu0 %v360
    %3538 = vmatpush.msra.mxu0 %v356
    %3539 = vmatpush.msra.mxu0 %v352
    %3540 = vmatpush.msra.mxu0 %v348
    %3541 = vmatpush.msra.mxu0 %v344
    %3542 = vmatpush.msra.mxu0 %v340
    %3543 = vmatmul.f32.gmra.mxu0 %v3385
    %v3544 = vpop.f32.mrf.mxu0
    %v3545 = vadd.f32 %v3525, %v3544
    %3546 = vdwg.mxu0
    %3547 = vmatpush.msra.mxu0 %v273
    %3548 = vmatpush.msra.mxu0 %v269
    %3549 = vmatpush.msra.mxu0 %v265
    %3550 = vmatpush.msra.mxu0 %v261
    %3551 = vmatpush.msra.mxu0 %v257
    %3552 = vmatpush.msra.mxu0 %v253
    %3553 = vmatpush.msra.mxu0 %v249
    %3554 = vmatpush.msra.mxu0 %v245
    %3555 = vmatpush.msra.mxu0 %v241
    %3556 = vmatpush.msra.mxu0 %v237
    %3557 = vmatpush.msra.mxu0 %v233
    %3558 = vmatpush.msra.mxu0 %v229
    %3559 = vmatpush.msra.mxu0 %v225
    %3560 = vmatpush.msra.mxu0 %v221
    %3561 = vmatpush.msra.mxu0 %v217
    %3562 = vmatpush.msra.mxu0 %v213
    %3563 = vmatmul.f32.gmra.mxu0 %v3486
    %v3564 = vpop.f32.mrf.mxu0
    %v3565 = vadd.f32 %v1934, %v3564
    %3566 = vdwg.mxu0
    %3567 = vmatpush.msra.mxu0 %v337
    %3568 = vmatpush.msra.mxu0 %v333
    %3569 = vmatpush.msra.mxu0 %v329
    %3570 = vmatpush.msra.mxu0 %v325
    %3571 = vmatpush.msra.mxu0 %v321
    %3572 = vmatpush.msra.mxu0 %v317
    %3573 = vmatpush.msra.mxu0 %v313
    %3574 = vmatpush.msra.mxu0 %v309
    %3575 = vmatpush.msra.mxu0 %v305
    %3576 = vmatpush.msra.mxu0 %v301
    %3577 = vmatpush.msra.mxu0 %v297
    %3578 = vmatpush.msra.mxu0 %v293
    %3579 = vmatpush.msra.mxu0 %v289
    %3580 = vmatpush.msra.mxu0 %v285
    %3581 = vmatpush.msra.mxu0 %v281
    %3582 = vmatpush.msra.mxu0 %v277
    %3583 = vmatmul.f32.gmra.mxu0 %v1926
    %v3584 = vpop.f32.mrf.mxu0
    %v3585 = vadd.f32 %v3565, %v3584
    %3586 = vdwg.mxu0
    %3587 = vmatpush.msra.mxu0 %v401
    %3588 = vmatpush.msra.mxu0 %v397
    %3589 = vmatpush.msra.mxu0 %v393
    %3590 = vmatpush.msra.mxu0 %v389
    %3591 = vmatpush.msra.mxu0 %v385
    %3592 = vmatpush.msra.mxu0 %v381
    %3593 = vmatpush.msra.mxu0 %v377
    %3594 = vmatpush.msra.mxu0 %v373
    %3595 = vmatpush.msra.mxu0 %v369
    %3596 = vmatpush.msra.mxu0 %v365
    %3597 = vmatpush.msra.mxu0 %v361
    %3598 = vmatpush.msra.mxu0 %v357
    %3599 = vmatpush.msra.mxu0 %v353
    %3600 = vmatpush.msra.mxu0 %v349
    %3601 = vmatpush.msra.mxu0 %v345
    %3602 = vmatpush.msra.mxu0 %v341
    %3603 = vmatmul.f32.gmra.mxu0 %v3385
    %v3604 = vpop.f32.mrf.mxu0
    %v3605 = vadd.f32 %v3585, %v3604
    %3606 = vdwg.mxu0
    %3607 = vmatpush.msra.mxu0 %v274
    %3608 = vmatpush.msra.mxu0 %v270
    %3609 = vmatpush.msra.mxu0 %v266
    %3610 = vmatpush.msra.mxu0 %v262
    %3611 = vmatpush.msra.mxu0 %v258
    %3612 = vmatpush.msra.mxu0 %v254
    %3613 = vmatpush.msra.mxu0 %v250
    %3614 = vmatpush.msra.mxu0 %v246
    %3615 = vmatpush.msra.mxu0 %v242
    %3616 = vmatpush.msra.mxu0 %v238
    %3617 = vmatpush.msra.mxu0 %v234
    %3618 = vmatpush.msra.mxu0 %v230
    %3619 = vmatpush.msra.mxu0 %v226
    %3620 = vmatpush.msra.mxu0 %v222
    %3621 = vmatpush.msra.mxu0 %v218
    %3622 = vmatpush.msra.mxu0 %v214
    %3623 = vmatmul.f32.gmra.mxu0 %v3486
    %v3624 = vpop.f32.mrf.mxu0
    %v3625 = vadd.f32 %v1935, %v3624
    %3626 = vdwg.mxu0
    %3627 = vmatpush.msra.mxu0 %v338
    %3628 = vmatpush.msra.mxu0 %v334
    %3629 = vmatpush.msra.mxu0 %v330
    %3630 = vmatpush.msra.mxu0 %v326
    %3631 = vmatpush.msra.mxu0 %v322
    %3632 = vmatpush.msra.mxu0 %v318
    %3633 = vmatpush.msra.mxu0 %v314
    %3634 = vmatpush.msra.mxu0 %v310
    %3635 = vmatpush.msra.mxu0 %v306
    %3636 = vmatpush.msra.mxu0 %v302
    %3637 = vmatpush.msra.mxu0 %v298
    %3638 = vmatpush.msra.mxu0 %v294
    %3639 = vmatpush.msra.mxu0 %v290
    %3640 = vmatpush.msra.mxu0 %v286
    %3641 = vmatpush.msra.mxu0 %v282
    %3642 = vmatpush.msra.mxu0 %v278
    %3643 = vmatmul.f32.gmra.mxu0 %v1926
    %v3644 = vpop.f32.mrf.mxu0
    %v3645 = vadd.f32 %v3625, %v3644
    %3646 = vdwg.mxu0
    %3647 = vmatpush.msra.mxu0 %v402
    %3648 = vmatpush.msra.mxu0 %v398
    %3649 = vmatpush.msra.mxu0 %v394
    %3650 = vmatpush.msra.mxu0 %v390
    %3651 = vmatpush.msra.mxu0 %v386
    %3652 = vmatpush.msra.mxu0 %v382
    %3653 = vmatpush.msra.mxu0 %v378
    %3654 = vmatpush.msra.mxu0 %v374
    %3655 = vmatpush.msra.mxu0 %v370
    %3656 = vmatpush.msra.mxu0 %v366
    %3657 = vmatpush.msra.mxu0 %v362
    %3658 = vmatpush.msra.mxu0 %v358
    %3659 = vmatpush.msra.mxu0 %v354
    %3660 = vmatpush.msra.mxu0 %v350
    %3661 = vmatpush.msra.mxu0 %v346
    %3662 = vmatpush.msra.mxu0 %v342
    %3663 = vmatmul.f32.gmra.mxu0 %v3385
    %v3664 = vpop.f32.mrf.mxu0
    %v3665 = vadd.f32 %v3645, %v3664
    %3666 = vdwg.mxu0
    %3667 = vmatpush.msra.mxu0 %v275
    %3668 = vmatpush.msra.mxu0 %v271
    %3669 = vmatpush.msra.mxu0 %v267
    %3670 = vmatpush.msra.mxu0 %v263
    %3671 = vmatpush.msra.mxu0 %v259
    %3672 = vmatpush.msra.mxu0 %v255
    %3673 = vmatpush.msra.mxu0 %v251
    %3674 = vmatpush.msra.mxu0 %v247
    %3675 = vmatpush.msra.mxu0 %v243
    %3676 = vmatpush.msra.mxu0 %v239
    %3677 = vmatpush.msra.mxu0 %v235
    %3678 = vmatpush.msra.mxu0 %v231
    %3679 = vmatpush.msra.mxu0 %v227
    %3680 = vmatpush.msra.mxu0 %v223
    %3681 = vmatpush.msra.mxu0 %v219
    %3682 = vmatpush.msra.mxu0 %v215
    %3683 = vmatmul.f32.gmra.mxu0 %v3486
    %v3684 = vpop.f32.mrf.mxu0
    %v3685 = vadd.f32 %v1936, %v3684
    %3686 = vdwg.mxu0
    %3687 = vmatpush.msra.mxu0 %v339
    %3688 = vmatpush.msra.mxu0 %v335
    %3689 = vmatpush.msra.mxu0 %v331
    %3690 = vmatpush.msra.mxu0 %v327
    %3691 = vmatpush.msra.mxu0 %v323
    %3692 = vmatpush.msra.mxu0 %v319
    %3693 = vmatpush.msra.mxu0 %v315
    %3694 = vmatpush.msra.mxu0 %v311
    %3695 = vmatpush.msra.mxu0 %v307
    %3696 = vmatpush.msra.mxu0 %v303
    %3697 = vmatpush.msra.mxu0 %v299
    %3698 = vmatpush.msra.mxu0 %v295
    %3699 = vmatpush.msra.mxu0 %v291
    %3700 = vmatpush.msra.mxu0 %v287
    %3701 = vmatpush.msra.mxu0 %v283
    %3702 = vmatpush.msra.mxu0 %v279
    %3703 = vmatmul.f32.gmra.mxu0 %v1926
    %v3704 = vpop.f32.mrf.mxu0
    %v3705 = vadd.f32 %v3685, %v3704
    %3706 = vdwg.mxu0
    %3707 = vmatpush.msra.mxu0 %v403
    %3708 = vmatpush.msra.mxu0 %v399
    %3709 = vmatpush.msra.mxu0 %v395
    %3710 = vmatpush.msra.mxu0 %v391
    %3711 = vmatpush.msra.mxu0 %v387
    %3712 = vmatpush.msra.mxu0 %v383
    %3713 = vmatpush.msra.mxu0 %v379
    %3714 = vmatpush.msra.mxu0 %v375
    %3715 = vmatpush.msra.mxu0 %v371
    %3716 = vmatpush.msra.mxu0 %v367
    %3717 = vmatpush.msra.mxu0 %v363
    %3718 = vmatpush.msra.mxu0 %v359
    %3719 = vmatpush.msra.mxu0 %v355
    %3720 = vmatpush.msra.mxu0 %v351
    %3721 = vmatpush.msra.mxu0 %v347
    %3722 = vmatpush.msra.mxu0 %v343
    %3723 = vmatmul.f32.gmra.mxu0 %v3385
    %v3724 = vpop.f32.mrf.mxu0
    %v3725 = vadd.f32 %v3705, %v3724
    %3726 = vdwg.mxu0
    %v3727 = vxor.u32 %v3545, 2147483648
    %v3728 = vxor.u32 %v3605, 2147483648
    %v3729 = vmul.f32 %v3727, 1.442695
    %v3730 = vpow.pop %v3729
    %v3731 = vmul.f32 %v3728, 1.442695
    %v3732 = vpow.pop %v3731
    %v3733 = vadd.f32 %v3730, 1.0
    %v3734 = vadd.f32 %v3732, 1.0
    %v3735 = vrcp.pop %v3733
    %v3736 = vmul.f32 %v3733, %v3735
    %v3737 = vsub.f32 1.0, %v3736
    %v3738 = vmul.f32 %v3735, %v3737
    %v3739 = vadd.f32 %v3735, %v3738
    %vm3740 = vweird.f32 %v3733
    %vm3741 = vweird.f32 %v3735
    %vm3742 = vmor %vm3740, %vm3741
    %v3743 = vsel %vm3742, %v3735, %v3739
    %v3744 = vand.u32 2147483647, %v3733
    %vm3745 = vcmp.eq.f32.partialorder %v3744, 8.507059e+37
    %v3746 = vand.u32 %v3733, 2147483648
    %v3747 = vor.u32 1.1754944e-38, %v3746
    %v3748 = vsel %vm3745, %v3747, %v3743
    %v3749 = vmul.f32 1.0, %v3748
    %v3750 = vrcp.pop %v3734
    %v3751 = vmul.f32 %v3734, %v3750
    %v3752 = vsub.f32 1.0, %v3751
    %v3753 = vmul.f32 %v3750, %v3752
    %v3754 = vadd.f32 %v3750, %v3753
    %vm3755 = vweird.f32 %v3734
    %vm3756 = vweird.f32 %v3750
    %vm3757 = vmor %vm3755, %vm3756
    %v3758 = vsel %vm3757, %v3750, %v3754
    %v3759 = vand.u32 2147483647, %v3734
    %vm3760 = vcmp.eq.f32.partialorder %v3759, 8.507059e+37
    %v3761 = vand.u32 %v3734, 2147483648
    %v3762 = vor.u32 1.1754944e-38, %v3761
    %v3763 = vsel %vm3760, %v3762, %v3758
    %v3764 = vmul.f32 1.0, %v3763
    %v3765 = vmul.f32 %v3749, %v3725
    %v3766 = vadd.f32 %v3665, %v3765
    %v3767 = vtanh.pop %v3766
    %v3768 = vsub.f32 1.0, %v3764
    %v3769 = vmul.f32 %v3768, %v3767
    %v3770 = vmul.f32 %v3764, %v3385
    %v3771 = vadd.f32 %v3769, %v3770
    %3772 = vmatpush.msra.mxu0 %v420
    %3773 = vmatpush.msra.mxu0 %v419
    %3774 = vmatpush.msra.mxu0 %v418
    %3775 = vmatpush.msra.mxu0 %v417
    %3776 = vmatpush.msra.mxu0 %v416
    %3777 = vmatpush.msra.mxu0 %v415
    %3778 = vmatpush.msra.mxu0 %v414
    %3779 = vmatpush.msra.mxu0 %v413
    %3780 = vmatpush.msra.mxu0 %v412
    %3781 = vmatpush.msra.mxu0 %v411
    %3782 = vmatpush.msra.mxu0 %v410
    %3783 = vmatpush.msra.mxu0 %v409
    %3784 = vmatpush.msra.mxu0 %v408
    %3785 = vmatpush.msra.mxu0 %v407
    %3786 = vmatpush.msra.mxu0 %v406
    %3787 = vmatpush.msra.mxu0 %v405
    %3788 = vmatmul.f32.gmra.mxu0 %v3486
    %v3789 = vpop.f32.mrf.mxu0
    %v3790 = vadd.f32 %v2227, %v3789
    %3791 = vdwg.mxu0
    %3792 = vmatpush.msra.mxu0 %v436
    %3793 = vmatpush.msra.mxu0 %v435
    %3794 = vmatpush.msra.mxu0 %v434
    %3795 = vmatpush.msra.mxu0 %v433
    %3796 = vmatpush.msra.mxu0 %v432
    %3797 = vmatpush.msra.mxu0 %v431
    %3798 = vmatpush.msra.mxu0 %v430
    %3799 = vmatpush.msra.mxu0 %v429
    %3800 = vmatpush.msra.mxu0 %v428
    %3801 = vmatpush.msra.mxu0 %v427
    %3802 = vmatpush.msra.mxu0 %v426
    %3803 = vmatpush.msra.mxu0 %v425
    %3804 = vmatpush.msra.mxu0 %v424
    %3805 = vmatpush.msra.mxu0 %v423
    %3806 = vmatpush.msra.mxu0 %v422
    %3807 = vmatpush.msra.mxu0 %v421
    %3808 = vmatmul.f32.gmra.mxu0 %v1926
    %v3809 = vpop.f32.mrf.mxu0
    %v3810 = vadd.f32 %v3790, %v3809
    %3811 = vdwg.mxu0
    %3812 = vmatpush.msra.mxu0 %v452
    %3813 = vmatpush.msra.mxu0 %v451
    %3814 = vmatpush.msra.mxu0 %v450
    %3815 = vmatpush.msra.mxu0 %v449
    %3816 = vmatpush.msra.mxu0 %v448
    %3817 = vmatpush.msra.mxu0 %v447
    %3818 = vmatpush.msra.mxu0 %v446
    %3819 = vmatpush.msra.mxu0 %v445
    %3820 = vmatpush.msra.mxu0 %v444
    %3821 = vmatpush.msra.mxu0 %v443
    %3822 = vmatpush.msra.mxu0 %v442
    %3823 = vmatpush.msra.mxu0 %v441
    %3824 = vmatpush.msra.mxu0 %v440
    %3825 = vmatpush.msra.mxu0 %v439
    %3826 = vmatpush.msra.mxu0 %v438
    %3827 = vmatpush.msra.mxu0 %v437
    %3828 = vmatmul.f32.gmra.mxu0 %v3771
    %v3829 = vpop.f32.mrf.mxu0
    %v3830 = vadd.f32 %v3810, %v3829
    %3831 = vdwg.mxu0
    %s3832 = scalar_lea.vmem %s11, 40
    %3833 = vst [vmem:[%s3832] sm:$0xff] %v3830
    // Predicated region
    $region58: #{seq2seq_forward.1} parent=1 // pred_check
      _
    $region59: #{seq2seq_forward.1} parent=1 // pred_check_branch
      %3835 = sbr.rel (0) target = $region61
    $region60: #{seq2seq_forward.1} parent=1 // pred_region
      _
    $region61: #{seq2seq_forward.1} parent=1 // pred_fallthru
      _
    // Predicated region
    $region62: #{seq2seq_forward.1} parent=1 // pred_check
      _
    $region63: #{seq2seq_forward.1} parent=1 // pred_check_branch
      %3837 = sbr.rel (0) target = $region65
    $region64: #{seq2seq_forward.1} parent=1 // pred_region
      _
    $region65: #{seq2seq_forward.1} parent=1 // pred_fallthru
      _
    %3838 = vsyncpa [#allocation3], 1
    %3839 = vsyncpa [#allocation7], 1
    %3840 = vsyncpa [#allocation4], 1

</llo_original>
